<compile_context>
chip_gen: v5e
topology: v5e:2x2
jax: 0.10.0
libtpu: 0.0.40
codegen_flags: <defaults>
</compile_context>

<pallas_src>
import functools

import jax
import jax.numpy as jnp
from jax.experimental import pallas as pl
from jax.experimental.pallas import tpu as pltpu

FEAT_C = 576      # mobilenet_v3_small features[-1].out_channels
CATS = 6          # cats_num
FEAT_DIM = 8      # feat_dim
HIDDEN = 128      # line1 out
SMALL_W = 16      # packed per-sample scalars: one_hot(6)|roi_wh(2)|mean_size(3)|pad(5)
OUT_W = 128       # lane-dense output width (unmasked vst)
_SUM_CHUNK = 16   # sublane chunk for the f32 spatial-sum (bf16 VMEM tile = (16,128))


def _spatial_mean_f32(ref, inv_hw):
    """AdaptiveAvgPool over the HW axis of a (TB, HW, C) bf16 block, in f32.

    Accumulates 16-sublane chunks (static, unrolled slices) into a (TB, C) f32
    value so only a (TB, 16, C) f32 temporary is ever live — no f32 copy of the
    whole feature block.
    """
    tb, hw, c = ref.shape
    acc = jnp.zeros((tb, c), jnp.float32)
    for s in range(0, hw, _SUM_CHUNK):
        e = min(s + _SUM_CHUNK, hw)
        acc = acc + jnp.sum(ref[:, s:e, :].astype(jnp.float32), axis=1)
    return acc * inv_hw


def scale_net_kernel(roi_ref, full_ref, small_ref,
                     w1a_ref, w1b_ref, b1_ref,
                     w2a_ref, w2b_ref, b2_ref,
                     w3_ref, b3_ref,
                     o_ref, *, inv_hw):
    # ---- backbone heads: AdaptiveAvgPool2d((1,1)) + Flatten ----
    feat_roi = _spatial_mean_f32(roi_ref, inv_hw)     # (TB, C) f32
    feat_full = _spatial_mean_f32(full_ref, inv_hw)   # (TB, C) f32
    # Dropout(p=0.2) is identity at inference time.

    # ---- line1: cat([roi, full]) @ W1 == roi @ W1[:C] + full @ W1[C:] ----
    # bf16 operands -> native MXU rate on v6e/v7x; f32 accumulation.
    x = (jnp.dot(feat_roi.astype(jnp.bfloat16), w1a_ref[...],
                 preferred_element_type=jnp.float32)
         + jnp.dot(feat_full.astype(jnp.bfloat16), w1b_ref[...],
                   preferred_element_type=jnp.float32)
         + b1_ref[...])
    x = jnp.maximum(x, 0.0)                           # (TB, 128)

    # ---- packed per-sample scalars ----
    small = small_ref[...]                            # (TB, 16)
    oh = small[:, 0:CATS]                             # (TB, 6)
    wh = small[:, CATS:CATS + 2]                      # (TB, 2)  (/100 folded into w3)
    ms = small[:, CATS + 2:CATS + 5]                  # (TB, 3)

    # ---- line2: x part on the MXU; one_hot rows (K=6) on the VPU ----
    y = jnp.dot(x, w2a_ref[...], preferred_element_type=jnp.float32) + b2_ref[...]
    w2b = w2b_ref[...]                                # (6, 8)
    for c in range(CATS):
        y = y + oh[:, c:c + 1] * w2b[c:c + 1, :]
    y = jnp.maximum(y, 0.0)                           # (TB, 8)

    # ---- line3 (out-dim 1): VPU broadcast-multiply + lane reduce ----
    w3 = w3_ref[...]                                  # (1, 16): [w3_y(8)|w3_oh(6)|w3_hw/100(2)]
    resi = (jnp.sum(y * w3[:, 0:FEAT_DIM], axis=1, keepdims=True)
            + jnp.sum(oh * w3[:, FEAT_DIM:FEAT_DIM + CATS], axis=1, keepdims=True)
            + jnp.sum(wh * w3[:, FEAT_DIM + CATS:FEAT_DIM + CATS + 2],
                      axis=1, keepdims=True)
            + b3_ref[...])                            # (TB, 1)

    # mean_scale = data['mean_size'].norm(dim=1)
    mean_scale = jnp.sqrt(jnp.sum(ms * ms, axis=1, keepdims=True))

    # lane-dense unmasked store: broadcast the per-sample scalar across 128 lanes.
    o_ref[...] = jnp.broadcast_to(resi + mean_scale, o_ref.shape)


def _round_up(x, m):
    return (x + m - 1) // m * m


def _pick_batch_tile(hw, c, b):
    """Batch tile sized from this generation's physical VMEM, padding-aware."""
    try:
        vmem_bytes = int(pltpu.get_tpu_info().vmem_capacity_bytes)
    except Exception:  # conservative fallback (covers non-TPU interpret runs)
        vmem_bytes = 64 * 1024 * 1024

    # Mosaic stores the (HW, C) slices tiled: bf16 -> (16,128) tiles.
    hw_pad = _round_up(hw, 16)
    c_pad = _round_up(c, 128)
    per_sample = (
        2 * 2 * hw_pad * c_pad * 2          # 2 feature maps x 2 pipeline buffers, bf16
        + 2 * _SUM_CHUNK * c_pad * 4        # f32 chunk temporaries (both branches, worst case)
        + 6 * c_pad * 4                     # (TB, C) f32 accumulators / bf16 casts / slack
    )
    # ~55% of physical VMEM for the batch-scaled working set; the rest covers
    # weights (double-buffered by default), small blocks, output and scratch.
    budget = int(vmem_bytes * 0.55)
    tb = budget // max(per_sample, 1)
    tb = int(max(8, min(512, (tb // 8) * 8)))

    # v7x megacore: keep >=2 grid steps whenever the batch allows so
    # dimension_semantics=("parallel",) can use both TensorCores.
    if b > 8:
        tb = min(tb, max(8, _round_up((b + 1) // 2, 8)))
    tb = min(tb, _round_up(b, 8))
    return tb, vmem_bytes


def scale_net_forward(data, params):
    """Pallas forward of Scale_net's own head.

    roi_img / full_img are the channels-last (B, H', W', 576) feature maps of
    the two MobileNetV3-small backbones.  The backbone is expected to hand them
    over already in bf16 so no wrapper-side HBM pass re-casts them.
    """
    roi = data['roi_img']
    full = data['full_img']
    B, Hf, Wf, C = roi.shape
    HW = Hf * Wf

    feat_dtype = jnp.bfloat16
    if roi.dtype != feat_dtype:
        # TODO(synk): upstream backbone should emit bf16 directly; this cast is
        # an extra HBM pass over the dominant tensors.
        roi = roi.astype(feat_dtype)
    if full.dtype != feat_dtype:
        full = full.astype(feat_dtype)
    roi_t = roi.reshape(B, HW, C)       # free reshape, no transpose
    full_t = full.reshape(B, HW, C)

    # Pack the tiny per-sample streams into one lane-padded block -> one DMA/step.
    one_hot = data['one_hot'].astype(jnp.float32)
    roi_wh = data['roi_wh'].astype(jnp.float32)
    mean_size = data['mean_size'].astype(jnp.float32)
    small = jnp.concatenate(
        [one_hot, roi_wh, mean_size,
         jnp.zeros((B, SMALL_W - (CATS + 2 + 3)), jnp.float32)], axis=1)  # (B, 16)

    # ---- weights: split the concat rows; straight bf16 cast of w1 ----
    w1 = params['w1']
    w1a = w1[:C].astype(feat_dtype)                     # (576, 128)
    w1b = w1[C:].astype(feat_dtype)                     # (576, 128)
    b1 = params['b1'].reshape(1, HIDDEN).astype(jnp.float32)
    w2 = params['w2'].astype(jnp.float32)
    w2a = w2[:HIDDEN]                                   # (128, 8)
    w2b = w2[HIDDEN:]                                   # (6, 8)
    b2 = params['b2'].reshape(1, FEAT_DIM).astype(jnp.float32)
    w3f = params['w3'].astype(jnp.float32).reshape(-1)  # (16,)
    w3row = jnp.concatenate(
        [w3f[:FEAT_DIM + CATS], w3f[FEAT_DIM + CATS:] * 0.01]  # /100 folded in
    ).reshape(1, FEAT_DIM + CATS + 2)                   # (1, 16)
    b3 = params['b3'].reshape(1, 1).astype(jnp.float32)

    # ---- batch-tiled grid (double-buffered HBM->VMEM pipeline) ----
    TB, vmem_bytes = _pick_batch_tile(HW, C, B)
    Bp = _round_up(B, TB)
    if Bp != B:
        roi_t = jnp.pad(roi_t, ((0, Bp - B), (0, 0), (0, 0)))
        full_t = jnp.pad(full_t, ((0, Bp - B), (0, 0), (0, 0)))
        small = jnp.pad(small, ((0, Bp - B), (0, 0)))

    grid = (Bp // TB,)
    bmap3 = lambda i: (i, 0, 0)   # batch-tiled feature maps
    bmap = lambda i: (i, 0)       # batch-tiled 2-D input / output
    wmap = lambda i: (0, 0)       # weights: resident, same block every step

    in_specs = [
        pl.BlockSpec((TB, HW, C), bmap3),        # roi features
        pl.BlockSpec((TB, HW, C), bmap3),        # full features
        pl.BlockSpec((TB, SMALL_W), bmap),       # packed one_hot|roi_wh|mean_size
        pl.BlockSpec((C, HIDDEN), wmap),         # w1a
        pl.BlockSpec((C, HIDDEN), wmap),         # w1b
        pl.BlockSpec((1, HIDDEN), wmap),         # b1
        pl.BlockSpec((HIDDEN, FEAT_DIM), wmap),  # w2a
        pl.BlockSpec((CATS, FEAT_DIM), wmap),    # w2b
        pl.BlockSpec((1, FEAT_DIM), wmap),       # b2
        pl.BlockSpec((1, SMALL_W), wmap),        # packed line3 weights
        pl.BlockSpec((1, 1), wmap),              # b3
    ]
    out_specs = pl.BlockSpec((TB, OUT_W), bmap)

    out = pl.pallas_call(
        functools.partial(scale_net_kernel, inv_hw=1.0 / float(HW)),
        out_shape=jax.ShapeDtypeStruct((Bp, OUT_W), jnp.float32),
        grid_spec=pltpu.PrefetchScalarGridSpec(
            num_scalar_prefetch=0,
            grid=grid,
            in_specs=in_specs,
            out_specs=out_specs,
        ),
        compiler_params=pltpu.CompilerParams(
            dimension_semantics=("parallel",),
            vmem_limit_bytes=int(vmem_bytes * 3 // 4),
        ),
    )(roi_t, full_t, small, w1a, w1b, b1, w2a, w2b, b2, w3row, b3)

    return out[:B, 0]          # .squeeze() -> (B,)


def scale_net_reference(data, params):
    """Pure-JAX reference mirroring the PyTorch forward (for verification)."""
    roi = data['roi_img'].astype(jnp.float32)
    full = data['full_img'].astype(jnp.float32)
    feat_roi = jnp.mean(roi, axis=(1, 2))
    feat_full = jnp.mean(full, axis=(1, 2))
    feat = jnp.concatenate([feat_roi, feat_full], axis=1)
    hp = jax.lax.Precision.HIGHEST
    x = jnp.maximum(jnp.dot(feat, params['w1'], precision=hp) + params['b1'], 0.0)
    x = jnp.concatenate([x, data['one_hot']], axis=1)
    x = jnp.maximum(jnp.dot(x, params['w2'], precision=hp) + params['b2'], 0.0)
    x = jnp.concatenate([x, data['one_hot'], data['roi_wh'] / 100.0], axis=1)
    resi = (jnp.dot(x, params['w3'], precision=hp) + params['b3'])[:, 0]
    mean_scale = jnp.sqrt(jnp.sum(data['mean_size'] ** 2, axis=1))
    return resi + mean_scale


def init_params(key):
    """Deterministic synthetic parameters (Linear weights stored as (in, out))."""
    ks = jax.random.split(key, 6)
    in1 = 2 * FEAT_C
    in2 = HIDDEN + CATS
    in3 = FEAT_DIM + CATS + 2   # use_hw=True adds 2
    return {
        'w1': jax.random.normal(ks[0], (in1, HIDDEN), jnp.float32) * (in1 ** -0.5),
        'b1': jax.random.normal(ks[1], (1, HIDDEN), jnp.float32) * 0.01,
        'w2': jax.random.normal(ks[2], (in2, FEAT_DIM), jnp.float32) * (in2 ** -0.5),
        'b2': jax.random.normal(ks[3], (1, FEAT_DIM), jnp.float32) * 0.01,
        'w3': jax.random.normal(ks[4], (in3, 1), jnp.float32) * (in3 ** -0.5),
        'b3': jax.random.normal(ks[5], (1, 1), jnp.float32) * 0.01,
    }


if __name__ == "__main__":
    # mobilenet_v3_small on a 224 input emits a (7, 7, 576) final feature map.
    B, Hf, Wf = 2, 7, 7
    key = jax.random.PRNGKey(0)
    kp, k1, k2, k3, k4, k5 = jax.random.split(key, 6)

    params = init_params(kp)
    one_hot = jax.nn.one_hot(
        jax.random.randint(k3, (B,), 0, CATS), CATS, dtype=jnp.float32)
    data = {
        # channels-last bf16 backbone feature maps (B, H', W', 576)
        'roi_img': jax.random.normal(
            k1, (B, Hf, Wf, FEAT_C), jnp.float32).astype(jnp.bfloat16),
        'full_img': jax.random.normal(
            k2, (B, Hf, Wf, FEAT_C), jnp.float32).astype(jnp.bfloat16),
        'one_hot': one_hot,
        'roi_wh': jax.random.uniform(k4, (B, 2), jnp.float32, 10.0, 200.0),
        'mean_size': jax.random.uniform(k5, (B, 3), jnp.float32, 0.1, 2.0),
    }

    scale = jax.block_until_ready(scale_net_forward(data, params))
    ref = jax.block_until_ready(scale_net_reference(data, params))

    assert scale.shape == (B,)
    assert jnp.allclose(scale, ref, rtol=2e-2, atol=2e-2), (scale, ref)
    print("KERNEL_OK")
</pallas_src>

<mosaic_0001>
module attributes {stable_mosaic.version = 11 : i64} {
  func.func @scale_net_kernel(%arg0: i32, %arg1: memref<8x49x576xbf16, #tpu.memory_space<vmem>>, %arg2: memref<8x49x576xbf16, #tpu.memory_space<vmem>>, %arg3: memref<8x16xf32, #tpu.memory_space<vmem>>, %arg4: memref<576x128xbf16, #tpu.memory_space<vmem>>, %arg5: memref<576x128xbf16, #tpu.memory_space<vmem>>, %arg6: memref<1x128xf32, #tpu.memory_space<vmem>>, %arg7: memref<128x8xf32, #tpu.memory_space<vmem>>, %arg8: memref<6x8xf32, #tpu.memory_space<vmem>>, %arg9: memref<1x8xf32, #tpu.memory_space<vmem>>, %arg10: memref<1x16xf32, #tpu.memory_space<vmem>>, %arg11: memref<1x1xf32, #tpu.memory_space<vmem>>, %arg12: memref<8x128xf32, #tpu.memory_space<vmem>>) attributes {dimension_semantics = [#tpu.dimension_semantics<parallel>], iteration_bounds = array<i64: 1>, scalar_prefetch = 0 : i64, scratch_operands = 0 : i64, tpu.core_type = #tpu.core_type<tc>, window_params = [{transform_indices = @transform_0, window_bounds = array<i64: 8, 49, 576>}, {transform_indices = @transform_1, window_bounds = array<i64: 8, 49, 576>}, {transform_indices = @transform_2, window_bounds = array<i64: 8, 16>}, {pipeline_mode = #tpu.pipeline_mode<synchronous>, transform_indices = @transform_3, window_bounds = array<i64: 576, 128>}, {pipeline_mode = #tpu.pipeline_mode<synchronous>, transform_indices = @transform_4, window_bounds = array<i64: 576, 128>}, {pipeline_mode = #tpu.pipeline_mode<synchronous>, transform_indices = @transform_5, window_bounds = array<i64: 1, 128>}, {pipeline_mode = #tpu.pipeline_mode<synchronous>, transform_indices = @transform_6, window_bounds = array<i64: 128, 8>}, {pipeline_mode = #tpu.pipeline_mode<synchronous>, transform_indices = @transform_7, window_bounds = array<i64: 6, 8>}, {pipeline_mode = #tpu.pipeline_mode<synchronous>, transform_indices = @transform_8, window_bounds = array<i64: 1, 8>}, {pipeline_mode = #tpu.pipeline_mode<synchronous>, transform_indices = @transform_9, window_bounds = array<i64: 1, 16>}, {pipeline_mode = #tpu.pipeline_mode<synchronous>, transform_indices = @transform_10, window_bounds = array<i64: 1, 1>}, {transform_indices = @transform_11, window_bounds = array<i64: 8, 128>}]} {
    %cst = arith.constant 0.000000e+00 : f32
    %0 = vector.broadcast %cst : f32 to vector<8x576xf32>
    %c0 = arith.constant 0 : index
    %c0_0 = arith.constant 0 : index
    %c0_1 = arith.constant 0 : index
    %1 = vector.load %arg1[%c0, %c0_0, %c0_1] : memref<8x49x576xbf16, #tpu.memory_space<vmem>>, vector<8x16x576xbf16>
    %2 = arith.extf %1 : vector<8x16x576xbf16> to vector<8x16x576xf32>
    %cst_2 = arith.constant dense<0.000000e+00> : vector<8x576xf32>
    %3 = vector.multi_reduction <add>, %2, %cst_2 [1] : vector<8x16x576xf32> to vector<8x576xf32>
    %4 = arith.addf %0, %3 : vector<8x576xf32>
    %c0_3 = arith.constant 0 : index
    %c16 = arith.constant 16 : index
    %c0_4 = arith.constant 0 : index
    %5 = vector.load %arg1[%c0_3, %c16, %c0_4] : memref<8x49x576xbf16, #tpu.memory_space<vmem>>, vector<8x16x576xbf16>
    %6 = arith.extf %5 : vector<8x16x576xbf16> to vector<8x16x576xf32>
    %cst_5 = arith.constant dense<0.000000e+00> : vector<8x576xf32>
    %7 = vector.multi_reduction <add>, %6, %cst_5 [1] : vector<8x16x576xf32> to vector<8x576xf32>
    %8 = arith.addf %4, %7 : vector<8x576xf32>
    %c0_6 = arith.constant 0 : index
    %c32 = arith.constant 32 : index
    %c0_7 = arith.constant 0 : index
    %9 = vector.load %arg1[%c0_6, %c32, %c0_7] : memref<8x49x576xbf16, #tpu.memory_space<vmem>>, vector<8x16x576xbf16>
    %10 = arith.extf %9 : vector<8x16x576xbf16> to vector<8x16x576xf32>
    %cst_8 = arith.constant dense<0.000000e+00> : vector<8x576xf32>
    %11 = vector.multi_reduction <add>, %10, %cst_8 [1] : vector<8x16x576xf32> to vector<8x576xf32>
    %12 = arith.addf %8, %11 : vector<8x576xf32>
    %c0_9 = arith.constant 0 : index
    %c48 = arith.constant 48 : index
    %c0_10 = arith.constant 0 : index
    %13 = vector.load %arg1[%c0_9, %c48, %c0_10] : memref<8x49x576xbf16, #tpu.memory_space<vmem>>, vector<8x1x576xbf16>
    %14 = arith.extf %13 : vector<8x1x576xbf16> to vector<8x1x576xf32>
    %cst_11 = arith.constant dense<0.000000e+00> : vector<8x576xf32>
    %15 = vector.multi_reduction <add>, %14, %cst_11 [1] : vector<8x1x576xf32> to vector<8x576xf32>
    %16 = arith.addf %12, %15 : vector<8x576xf32>
    %cst_12 = arith.constant 0.0204081628 : f32
    %17 = vector.broadcast %cst_12 : f32 to vector<8x576xf32>
    %18 = arith.mulf %16, %17 : vector<8x576xf32>
    %cst_13 = arith.constant 0.000000e+00 : f32
    %19 = vector.broadcast %cst_13 : f32 to vector<8x576xf32>
    %c0_14 = arith.constant 0 : index
    %c0_15 = arith.constant 0 : index
    %c0_16 = arith.constant 0 : index
    %20 = vector.load %arg2[%c0_14, %c0_15, %c0_16] : memref<8x49x576xbf16, #tpu.memory_space<vmem>>, vector<8x16x576xbf16>
    %21 = arith.extf %20 : vector<8x16x576xbf16> to vector<8x16x576xf32>
    %cst_17 = arith.constant dense<0.000000e+00> : vector<8x576xf32>
    %22 = vector.multi_reduction <add>, %21, %cst_17 [1] : vector<8x16x576xf32> to vector<8x576xf32>
    %23 = arith.addf %19, %22 : vector<8x576xf32>
    %c0_18 = arith.constant 0 : index
    %c16_19 = arith.constant 16 : index
    %c0_20 = arith.constant 0 : index
    %24 = vector.load %arg2[%c0_18, %c16_19, %c0_20] : memref<8x49x576xbf16, #tpu.memory_space<vmem>>, vector<8x16x576xbf16>
    %25 = arith.extf %24 : vector<8x16x576xbf16> to vector<8x16x576xf32>
    %cst_21 = arith.constant dense<0.000000e+00> : vector<8x576xf32>
    %26 = vector.multi_reduction <add>, %25, %cst_21 [1] : vector<8x16x576xf32> to vector<8x576xf32>
    %27 = arith.addf %23, %26 : vector<8x576xf32>
    %c0_22 = arith.constant 0 : index
    %c32_23 = arith.constant 32 : index
    %c0_24 = arith.constant 0 : index
    %28 = vector.load %arg2[%c0_22, %c32_23, %c0_24] : memref<8x49x576xbf16, #tpu.memory_space<vmem>>, vector<8x16x576xbf16>
    %29 = arith.extf %28 : vector<8x16x576xbf16> to vector<8x16x576xf32>
    %cst_25 = arith.constant dense<0.000000e+00> : vector<8x576xf32>
    %30 = vector.multi_reduction <add>, %29, %cst_25 [1] : vector<8x16x576xf32> to vector<8x576xf32>
    %31 = arith.addf %27, %30 : vector<8x576xf32>
    %c0_26 = arith.constant 0 : index
    %c48_27 = arith.constant 48 : index
    %c0_28 = arith.constant 0 : index
    %32 = vector.load %arg2[%c0_26, %c48_27, %c0_28] : memref<8x49x576xbf16, #tpu.memory_space<vmem>>, vector<8x1x576xbf16>
    %33 = arith.extf %32 : vector<8x1x576xbf16> to vector<8x1x576xf32>
    %cst_29 = arith.constant dense<0.000000e+00> : vector<8x576xf32>
    %34 = vector.multi_reduction <add>, %33, %cst_29 [1] : vector<8x1x576xf32> to vector<8x576xf32>
    %35 = arith.addf %31, %34 : vector<8x576xf32>
    %cst_30 = arith.constant 0.0204081628 : f32
    %36 = vector.broadcast %cst_30 : f32 to vector<8x576xf32>
    %37 = arith.mulf %35, %36 : vector<8x576xf32>
    %38 = arith.truncf %18 : vector<8x576xf32> to vector<8x576xbf16>
    %c0_31 = arith.constant 0 : index
    %c0_32 = arith.constant 0 : index
    %39 = vector.load %arg4[%c0_31, %c0_32] : memref<576x128xbf16, #tpu.memory_space<vmem>>, vector<576x128xbf16>
    %cst_33 = arith.constant dense<0.000000e+00> : vector<8x128xf32>
    %40 = tpu.matmul %38, %39, %cst_33 {dimension_numbers = #tpu.dot_dimension_numbers<[1], [0], [0], [1], [0, 0, 1, 1], [], []>} : vector<8x576xbf16>, vector<576x128xbf16>, vector<8x128xf32> -> vector<8x128xf32>
    %41 = arith.truncf %37 : vector<8x576xf32> to vector<8x576xbf16>
    %c0_34 = arith.constant 0 : index
    %c0_35 = arith.constant 0 : index
    %42 = vector.load %arg5[%c0_34, %c0_35] : memref<576x128xbf16, #tpu.memory_space<vmem>>, vector<576x128xbf16>
    %cst_36 = arith.constant dense<0.000000e+00> : vector<8x128xf32>
    %43 = tpu.matmul %41, %42, %cst_36 {dimension_numbers = #tpu.dot_dimension_numbers<[1], [0], [0], [1], [0, 0, 1, 1], [], []>} : vector<8x576xbf16>, vector<576x128xbf16>, vector<8x128xf32> -> vector<8x128xf32>
    %44 = arith.addf %40, %43 : vector<8x128xf32>
    %c0_37 = arith.constant 0 : index
    %c0_38 = arith.constant 0 : index
    %45 = vector.load %arg6[%c0_37, %c0_38] : memref<1x128xf32, #tpu.memory_space<vmem>>, vector<1x128xf32>
    %46 = vector.broadcast %45 : vector<1x128xf32> to vector<8x128xf32>
    %47 = arith.addf %44, %46 : vector<8x128xf32>
    %cst_39 = arith.constant 0.000000e+00 : f32
    %48 = vector.broadcast %cst_39 : f32 to vector<8x128xf32>
    %49 = arith.maximumf %47, %48 : vector<8x128xf32>
    %c0_40 = arith.constant 0 : index
    %c0_41 = arith.constant 0 : index
    %50 = vector.load %arg3[%c0_40, %c0_41] : memref<8x16xf32, #tpu.memory_space<vmem>>, vector<8x16xf32>
    %51 = vector.extract_strided_slice %50 {offsets = [0, 0], sizes = [8, 6], strides = [1, 1]} : vector<8x16xf32> to vector<8x6xf32>
    %52 = vector.extract_strided_slice %50 {offsets = [0, 6], sizes = [8, 2], strides = [1, 1]} : vector<8x16xf32> to vector<8x2xf32>
    %53 = vector.extract_strided_slice %50 {offsets = [0, 8], sizes = [8, 3], strides = [1, 1]} : vector<8x16xf32> to vector<8x3xf32>
    %c0_42 = arith.constant 0 : index
    %c0_43 = arith.constant 0 : index
    %54 = vector.load %arg7[%c0_42, %c0_43] : memref<128x8xf32, #tpu.memory_space<vmem>>, vector<128x8xf32>
    %cst_44 = arith.constant dense<0.000000e+00> : vector<8x8xf32>
    %55 = tpu.matmul %49, %54, %cst_44 {dimension_numbers = #tpu.dot_dimension_numbers<[1], [0], [0], [1], [0, 0, 1, 1], [], []>} : vector<8x128xf32>, vector<128x8xf32>, vector<8x8xf32> -> vector<8x8xf32>
    %c0_45 = arith.constant 0 : index
    %c0_46 = arith.constant 0 : index
    %56 = vector.load %arg9[%c0_45, %c0_46] : memref<1x8xf32, #tpu.memory_space<vmem>>, vector<1x8xf32>
    %57 = vector.broadcast %56 : vector<1x8xf32> to vector<8x8xf32>
    %58 = arith.addf %55, %57 : vector<8x8xf32>
    %c0_47 = arith.constant 0 : index
    %c0_48 = arith.constant 0 : index
    %59 = vector.load %arg8[%c0_47, %c0_48] : memref<6x8xf32, #tpu.memory_space<vmem>>, vector<6x8xf32>
    %60 = vector.extract_strided_slice %51 {offsets = [0, 0], sizes = [8, 1], strides = [1, 1]} : vector<8x6xf32> to vector<8x1xf32>
    %61 = vector.extract_strided_slice %59 {offsets = [0, 0], sizes = [1, 8], strides = [1, 1]} : vector<6x8xf32> to vector<1x8xf32>
    %62 = vector.broadcast %60 : vector<8x1xf32> to vector<8x8xf32>
    %63 = vector.broadcast %61 : vector<1x8xf32> to vector<8x8xf32>
    %64 = arith.mulf %62, %63 : vector<8x8xf32>
    %65 = arith.addf %58, %64 : vector<8x8xf32>
    %66 = vector.extract_strided_slice %51 {offsets = [0, 1], sizes = [8, 1], strides = [1, 1]} : vector<8x6xf32> to vector<8x1xf32>
    %67 = vector.extract_strided_slice %59 {offsets = [1, 0], sizes = [1, 8], strides = [1, 1]} : vector<6x8xf32> to vector<1x8xf32>
    %68 = vector.broadcast %66 : vector<8x1xf32> to vector<8x8xf32>
    %69 = vector.broadcast %67 : vector<1x8xf32> to vector<8x8xf32>
    %70 = arith.mulf %68, %69 : vector<8x8xf32>
    %71 = arith.addf %65, %70 : vector<8x8xf32>
    %72 = vector.extract_strided_slice %51 {offsets = [0, 2], sizes = [8, 1], strides = [1, 1]} : vector<8x6xf32> to vector<8x1xf32>
    %73 = vector.extract_strided_slice %59 {offsets = [2, 0], sizes = [1, 8], strides = [1, 1]} : vector<6x8xf32> to vector<1x8xf32>
    %74 = vector.broadcast %72 : vector<8x1xf32> to vector<8x8xf32>
    %75 = vector.broadcast %73 : vector<1x8xf32> to vector<8x8xf32>
    %76 = arith.mulf %74, %75 : vector<8x8xf32>
    %77 = arith.addf %71, %76 : vector<8x8xf32>
    %78 = vector.extract_strided_slice %51 {offsets = [0, 3], sizes = [8, 1], strides = [1, 1]} : vector<8x6xf32> to vector<8x1xf32>
    %79 = vector.extract_strided_slice %59 {offsets = [3, 0], sizes = [1, 8], strides = [1, 1]} : vector<6x8xf32> to vector<1x8xf32>
    %80 = vector.broadcast %78 : vector<8x1xf32> to vector<8x8xf32>
    %81 = vector.broadcast %79 : vector<1x8xf32> to vector<8x8xf32>
    %82 = arith.mulf %80, %81 : vector<8x8xf32>
    %83 = arith.addf %77, %82 : vector<8x8xf32>
    %84 = vector.extract_strided_slice %51 {offsets = [0, 4], sizes = [8, 1], strides = [1, 1]} : vector<8x6xf32> to vector<8x1xf32>
    %85 = vector.extract_strided_slice %59 {offsets = [4, 0], sizes = [1, 8], strides = [1, 1]} : vector<6x8xf32> to vector<1x8xf32>
    %86 = vector.broadcast %84 : vector<8x1xf32> to vector<8x8xf32>
    %87 = vector.broadcast %85 : vector<1x8xf32> to vector<8x8xf32>
    %88 = arith.mulf %86, %87 : vector<8x8xf32>
    %89 = arith.addf %83, %88 : vector<8x8xf32>
    %90 = vector.extract_strided_slice %51 {offsets = [0, 5], sizes = [8, 1], strides = [1, 1]} : vector<8x6xf32> to vector<8x1xf32>
    %91 = vector.extract_strided_slice %59 {offsets = [5, 0], sizes = [1, 8], strides = [1, 1]} : vector<6x8xf32> to vector<1x8xf32>
    %92 = vector.broadcast %90 : vector<8x1xf32> to vector<8x8xf32>
    %93 = vector.broadcast %91 : vector<1x8xf32> to vector<8x8xf32>
    %94 = arith.mulf %92, %93 : vector<8x8xf32>
    %95 = arith.addf %89, %94 : vector<8x8xf32>
    %cst_49 = arith.constant 0.000000e+00 : f32
    %96 = vector.broadcast %cst_49 : f32 to vector<8x8xf32>
    %97 = arith.maximumf %95, %96 : vector<8x8xf32>
    %c0_50 = arith.constant 0 : index
    %c0_51 = arith.constant 0 : index
    %98 = vector.load %arg10[%c0_50, %c0_51] : memref<1x16xf32, #tpu.memory_space<vmem>>, vector<1x16xf32>
    %99 = vector.extract_strided_slice %98 {offsets = [0, 0], sizes = [1, 8], strides = [1, 1]} : vector<1x16xf32> to vector<1x8xf32>
    %100 = vector.broadcast %99 : vector<1x8xf32> to vector<8x8xf32>
    %101 = arith.mulf %97, %100 : vector<8x8xf32>
    %cst_52 = arith.constant dense<0.000000e+00> : vector<8xf32>
    %102 = vector.multi_reduction <add>, %101, %cst_52 [1] : vector<8x8xf32> to vector<8xf32>
    %103 = vector.shape_cast %102 : vector<8xf32> to vector<8x1xf32>
    %104 = vector.extract_strided_slice %98 {offsets = [0, 8], sizes = [1, 6], strides = [1, 1]} : vector<1x16xf32> to vector<1x6xf32>
    %105 = vector.broadcast %104 : vector<1x6xf32> to vector<8x6xf32>
    %106 = arith.mulf %51, %105 : vector<8x6xf32>
    %cst_53 = arith.constant dense<0.000000e+00> : vector<8xf32>
    %107 = vector.multi_reduction <add>, %106, %cst_53 [1] : vector<8x6xf32> to vector<8xf32>
    %108 = vector.shape_cast %107 : vector<8xf32> to vector<8x1xf32>
    %109 = arith.addf %103, %108 : vector<8x1xf32>
    %110 = vector.extract_strided_slice %98 {offsets = [0, 14], sizes = [1, 2], strides = [1, 1]} : vector<1x16xf32> to vector<1x2xf32>
    %111 = vector.broadcast %110 : vector<1x2xf32> to vector<8x2xf32>
    %112 = arith.mulf %52, %111 : vector<8x2xf32>
    %cst_54 = arith.constant dense<0.000000e+00> : vector<8xf32>
    %113 = vector.multi_reduction <add>, %112, %cst_54 [1] : vector<8x2xf32> to vector<8xf32>
    %114 = vector.shape_cast %113 : vector<8xf32> to vector<8x1xf32>
    %115 = arith.addf %109, %114 : vector<8x1xf32>
    %c0_55 = arith.constant 0 : index
    %c0_56 = arith.constant 0 : index
    %116 = vector.load %arg11[%c0_55, %c0_56] : memref<1x1xf32, #tpu.memory_space<vmem>>, vector<1x1xf32>
    %117 = vector.broadcast %116 : vector<1x1xf32> to vector<8x1xf32>
    %118 = arith.addf %115, %117 : vector<8x1xf32>
    %119 = arith.mulf %53, %53 : vector<8x3xf32>
    %cst_57 = arith.constant dense<0.000000e+00> : vector<8xf32>
    %120 = vector.multi_reduction <add>, %119, %cst_57 [1] : vector<8x3xf32> to vector<8xf32>
    %121 = vector.shape_cast %120 : vector<8xf32> to vector<8x1xf32>
    %122 = math.sqrt %121 : vector<8x1xf32>
    %123 = arith.addf %118, %122 : vector<8x1xf32>
    %124 = vector.shape_cast %123 : vector<8x1xf32> to vector<8x1xf32>
    %125 = vector.broadcast %124 : vector<8x1xf32> to vector<8x128xf32>
    %c0_58 = arith.constant 0 : index
    %c0_59 = arith.constant 0 : index
    %126 = vector.load %arg12[%c0_58, %c0_59] : memref<8x128xf32, #tpu.memory_space<vmem>>, vector<8x128xf32>
    tpu.vector_store %arg12[%c0_58, %c0_59], %125 {strides = array<i32>} : memref<8x128xf32, #tpu.memory_space<vmem>>, vector<8x128xf32>,
    return
  }
  func.func @transform_0(%arg0: i32) -> (i32, i32, i32) {
    %c0_i32 = arith.constant 0 : i32
    %c0_i32_0 = arith.constant 0 : i32
    %c0_i32_1 = arith.constant 0 : i32
    return %arg0, %c0_i32, %c0_i32_0 : i32, i32, i32
  }
  func.func @transform_1(%arg0: i32) -> (i32, i32, i32) {
    %c0_i32 = arith.constant 0 : i32
    %c0_i32_0 = arith.constant 0 : i32
    %c0_i32_1 = arith.constant 0 : i32
    return %arg0, %c0_i32, %c0_i32_0 : i32, i32, i32
  }
  func.func @transform_2(%arg0: i32) -> (i32, i32) {
    %c0_i32 = arith.constant 0 : i32
    %c0_i32_0 = arith.constant 0 : i32
    return %arg0, %c0_i32 : i32, i32
  }
  func.func @transform_3(%arg0: i32) -> (i32, i32) {
    %c0_i32 = arith.constant 0 : i32
    %c0_i32_0 = arith.constant 0 : i32
    %c0_i32_1 = arith.constant 0 : i32
    return %c0_i32, %c0_i32_0 : i32, i32
  }
  func.func @transform_4(%arg0: i32) -> (i32, i32) {
    %c0_i32 = arith.constant 0 : i32
    %c0_i32_0 = arith.constant 0 : i32
    %c0_i32_1 = arith.constant 0 : i32
    return %c0_i32, %c0_i32_0 : i32, i32
  }
  func.func @transform_5(%arg0: i32) -> (i32, i32) {
    %c0_i32 = arith.constant 0 : i32
    %c0_i32_0 = arith.constant 0 : i32
    %c0_i32_1 = arith.constant 0 : i32
    return %c0_i32, %c0_i32_0 : i32, i32
  }
  func.func @transform_6(%arg0: i32) -> (i32, i32) {
    %c0_i32 = arith.constant 0 : i32
    %c0_i32_0 = arith.constant 0 : i32
    %c0_i32_1 = arith.constant 0 : i32
    return %c0_i32, %c0_i32_0 : i32, i32
  }
  func.func @transform_7(%arg0: i32) -> (i32, i32) {
    %c0_i32 = arith.constant 0 : i32
    %c0_i32_0 = arith.constant 0 : i32
    %c0_i32_1 = arith.constant 0 : i32
    return %c0_i32, %c0_i32_0 : i32, i32
  }
  func.func @transform_8(%arg0: i32) -> (i32, i32) {
    %c0_i32 = arith.constant 0 : i32
    %c0_i32_0 = arith.constant 0 : i32
    %c0_i32_1 = arith.constant 0 : i32
    return %c0_i32, %c0_i32_0 : i32, i32
  }
  func.func @transform_9(%arg0: i32) -> (i32, i32) {
    %c0_i32 = arith.constant 0 : i32
    %c0_i32_0 = arith.constant 0 : i32
    %c0_i32_1 = arith.constant 0 : i32
    return %c0_i32, %c0_i32_0 : i32, i32
  }
  func.func @transform_10(%arg0: i32) -> (i32, i32) {
    %c0_i32 = arith.constant 0 : i32
    %c0_i32_0 = arith.constant 0 : i32
    %c0_i32_1 = arith.constant 0 : i32
    return %c0_i32, %c0_i32_0 : i32, i32
  }
  func.func @transform_11(%arg0: i32) -> (i32, i32) {
    %c0_i32 = arith.constant 0 : i32
    %c0_i32_0 = arith.constant 0 : i32
    return %arg0, %c0_i32 : i32, i32
  }
}

</mosaic_0001>

<llo_original>
// kernel: tpu_custom_call.1
$region0: #{tpu_custom_call.1}
  #allocation0 [shape = 'u32[]', space=smem, size = 0x4, offset = 0x4, fixed_abs, tag = 'smem constant byte address 0x4 - core index']
  #allocation1 [shape = 'u32[72,128]{1,0:T(1,128)}', space=vmem, size = 0x9000, scoped, tag = 'internal scratch']
  #allocation2 [shape = 'f32[1,1]{1,0:T(1,128)S(1)}', space=vmem, size = 0x200, scoped, tag = 'scoped memory for tpu_custom_call.1']
  %s0 = inlined_call_operand.vmem [shape: bf16[8,49,576], index: 0, kind: input, shape index: {}]
  %s1 = inlined_call_operand.vmem [shape: bf16[8,49,576], index: 1, kind: input, shape index: {}]
  %s2 = inlined_call_operand.vmem [shape: f32[8,16], index: 2, kind: input, shape index: {}]
  %s3 = inlined_call_operand.vmem [shape: bf16[576,128], index: 3, kind: input, shape index: {}]
  %s4 = inlined_call_operand.vmem [shape: bf16[576,128], index: 4, kind: input, shape index: {}]
  %s5 = inlined_call_operand.vmem [shape: f32[1,128], index: 5, kind: input, shape index: {}]
  %s6 = inlined_call_operand.vmem [shape: f32[128,8], index: 6, kind: input, shape index: {}]
  %s7 = inlined_call_operand.vmem [shape: f32[6,8], index: 7, kind: input, shape index: {}]
  %s8 = inlined_call_operand.vmem [shape: f32[1,8], index: 8, kind: input, shape index: {}]
  %s9 = inlined_call_operand.vmem [shape: f32[1,16], index: 9, kind: input, shape index: {}]
  %s10 = inlined_call_operand.<no memory space> [shape: f32[1,1], index: 10, kind: input, shape index: {}]
  %s11 = inlined_call_operand.hbm [shape: f32[8,128], index: 11, kind: output, shape index: {}]
  %s12 = sld [smem:[#allocation0]]
  $region54: #{tpu_custom_call.1} parent=0
    _
  %s14 = ssub.s32 1, %s12
  %s15 = scalar_select 0, %s14, %s12
  %v16 = vstv %s10
  %17 = vst [vmem:[#allocation2] sm:$0x1] %v16
  $region1: #{tpu_custom_call.1} parent=0
    #allocation3 [shape = 'u8[4096]{0}', space=vmem, size = 0x1000, scoped, tag = 'output window, operand 0, single buffered']
    #allocation4 [shape = 's32[1]{0}', space=sflag, size = 0x4, scoped, tag = 'scoped memory for tpu_custom_call.1']
    %18 = vsyncpa [#allocation4], 0
    // Predicated region
    $region2: #{tpu_custom_call.1} parent=1 // pred_check
      _
    $region3: #{tpu_custom_call.1} parent=1 // pred_check_branch
      %20 = sbr.rel (0) target = $region5
    $region4: #{tpu_custom_call.1} parent=1 // pred_region
      _
    $region5: #{tpu_custom_call.1} parent=1 // pred_fallthru
      _
    // Predicated region
    $region6: #{tpu_custom_call.1} parent=1 // pred_check
      _
    $region7: #{tpu_custom_call.1} parent=1 // pred_check_branch
      %22 = sbr.rel (0) target = $region9
    $region8: #{tpu_custom_call.1} parent=1 // pred_region
      _
    $region9: #{tpu_custom_call.1} parent=1 // pred_fallthru
      _
    // Predicated region
    $region10: #{tpu_custom_call.1} parent=1 // pred_check
      _
    $region11: #{tpu_custom_call.1} parent=1 // pred_check_branch
      %24 = sbr.rel (0) target = $region13
    $region12: #{tpu_custom_call.1} parent=1 // pred_region
      _
    $region13: #{tpu_custom_call.1} parent=1 // pred_fallthru
      _
    // Predicated region
    $region14: #{tpu_custom_call.1} parent=1 // pred_check
      _
    $region15: #{tpu_custom_call.1} parent=1 // pred_check_branch
      %26 = sbr.rel (0) target = $region17
    $region16: #{tpu_custom_call.1} parent=1 // pred_region
      _
    $region17: #{tpu_custom_call.1} parent=1 // pred_fallthru
      _
    // Predicated region
    $region18: #{tpu_custom_call.1} parent=1 // pred_check
      _
    $region19: #{tpu_custom_call.1} parent=1 // pred_check_branch
      %28 = sbr.rel (0) target = $region21
    $region20: #{tpu_custom_call.1} parent=1 // pred_region
      _
    $region21: #{tpu_custom_call.1} parent=1 // pred_fallthru
      _
    // Predicated region
    $region22: #{tpu_custom_call.1} parent=1 // pred_check
      _
    $region23: #{tpu_custom_call.1} parent=1 // pred_check_branch
      %30 = sbr.rel (0) target = $region25
    $region24: #{tpu_custom_call.1} parent=1 // pred_region
      _
    $region25: #{tpu_custom_call.1} parent=1 // pred_fallthru
      _
    // Predicated region
    $region26: #{tpu_custom_call.1} parent=1 // pred_check
      _
    $region27: #{tpu_custom_call.1} parent=1 // pred_check_branch
      %32 = sbr.rel (0) target = $region29
    $region28: #{tpu_custom_call.1} parent=1 // pred_region
      _
    $region29: #{tpu_custom_call.1} parent=1 // pred_fallthru
      _
    // Predicated region
    $region30: #{tpu_custom_call.1} parent=1 // pred_check
      _
    $region31: #{tpu_custom_call.1} parent=1 // pred_check_branch
      %34 = sbr.rel (0) target = $region33
    $region32: #{tpu_custom_call.1} parent=1 // pred_region
      _
    $region33: #{tpu_custom_call.1} parent=1 // pred_fallthru
      _
    // Predicated region
    $region34: #{tpu_custom_call.1} parent=1 // pred_check
      _
    $region35: #{tpu_custom_call.1} parent=1 // pred_check_branch
      %36 = sbr.rel (0) target = $region37
    $region36: #{tpu_custom_call.1} parent=1 // pred_region
      _
    $region37: #{tpu_custom_call.1} parent=1 // pred_fallthru
      _
    // Predicated region
    $region38: #{tpu_custom_call.1} parent=1 // pred_check
      _
    $region39: #{tpu_custom_call.1} parent=1 // pred_check_branch
      %38 = sbr.rel (0) target = $region41
    $region40: #{tpu_custom_call.1} parent=1 // pred_region
      _
    $region41: #{tpu_custom_call.1} parent=1 // pred_fallthru
      _
    // Predicated region
    $region42: #{tpu_custom_call.1} parent=1 // pred_check
      _
    $region43: #{tpu_custom_call.1} parent=1 // pred_check_branch
      %40 = sbr.rel (0) target = $region45
    $region44: #{tpu_custom_call.1} parent=1 // pred_region
      _
    $region45: #{tpu_custom_call.1} parent=1 // pred_fallthru
      _
    %v42 = vld [vmem:[%s0] sm:$0xff]
    %v43 = vld [vmem:[%s0 + $0x8] sm:$0xff]
    %v44 = vld [vmem:[%s0 + $0x10] sm:$0xf]
    %v45 = vld [vmem:[%s0 + $0x14] sm:$0xff]
    %v46 = vld [vmem:[%s0 + $0x1c] sm:$0xff]
    %v47 = vld [vmem:[%s0 + $0x24] sm:$0xf]
    %v48 = vld [vmem:[%s0 + $0x8c] sm:$0xff]
    %v49 = vld [vmem:[%s0 + $0x94] sm:$0xff]
    %v50 = vld [vmem:[%s0 + $0x9c] sm:$0xf]
    %v51 = vld [vmem:[%s0 + $0xa0] sm:$0xff]
    %v52 = vld [vmem:[%s0 + $0xa8] sm:$0xff]
    %v53 = vld [vmem:[%s0 + $0xb0] sm:$0xf]
    %v54 = vld [vmem:[%s0 + $0x118] sm:$0xff]
    %v55 = vld [vmem:[%s0 + $0x120] sm:$0xff]
    %v56 = vld [vmem:[%s0 + $0x128] sm:$0xf]
    %v57 = vld [vmem:[%s0 + $0x12c] sm:$0xff]
    %v58 = vld [vmem:[%s0 + $0x134] sm:$0xff]
    %v59 = vld [vmem:[%s0 + $0x13c] sm:$0xf]
    %v60 = vld [vmem:[%s0 + $0x1a4] sm:$0xff]
    %v61 = vld [vmem:[%s0 + $0x1ac] sm:$0xff]
    %v62 = vld [vmem:[%s0 + $0x1b4] sm:$0xf]
    %v63 = vld [vmem:[%s0 + $0x1b8] sm:$0xff]
    %v64 = vld [vmem:[%s0 + $0x1c0] sm:$0xff]
    %v65 = vld [vmem:[%s0 + $0x1c8] sm:$0xf]
    %v66 = vld [vmem:[%s0 + $0x230] sm:$0xff]
    %v67 = vld [vmem:[%s0 + $0x238] sm:$0xff]
    %v68 = vld [vmem:[%s0 + $0x240] sm:$0xf]
    %v69 = vld [vmem:[%s0 + $0x244] sm:$0xff]
    %v70 = vld [vmem:[%s0 + $0x24c] sm:$0xff]
    %v71 = vld [vmem:[%s0 + $0x254] sm:$0xf]
    %v72 = vld [vmem:[%s0 + $0x2bc] sm:$0xff]
    %v73 = vld [vmem:[%s0 + $0x2c4] sm:$0xff]
    %v74 = vld [vmem:[%s0 + $0x2cc] sm:$0xf]
    %v75 = vld [vmem:[%s0 + $0x2d0] sm:$0xff]
    %v76 = vld [vmem:[%s0 + $0x2d8] sm:$0xff]
    %v77 = vld [vmem:[%s0 + $0x2e0] sm:$0xf]
    %v78 = vld [vmem:[%s0 + $0x348] sm:$0xff]
    %v79 = vld [vmem:[%s0 + $0x350] sm:$0xff]
    %v80 = vld [vmem:[%s0 + $0x358] sm:$0xf]
    %v81 = vld [vmem:[%s0 + $0x35c] sm:$0xff]
    %v82 = vld [vmem:[%s0 + $0x364] sm:$0xff]
    %v83 = vld [vmem:[%s0 + $0x36c] sm:$0xf]
    %v84 = vld [vmem:[%s0 + $0x3d4] sm:$0xff]
    %v85 = vld [vmem:[%s0 + $0x3dc] sm:$0xff]
    %v86 = vld [vmem:[%s0 + $0x3e4] sm:$0xf]
    %v87 = vld [vmem:[%s0 + $0x3e8] sm:$0xff]
    %v88 = vld [vmem:[%s0 + $0x3f0] sm:$0xff]
    %v89 = vld [vmem:[%s0 + $0x3f8] sm:$0xf]
    %v90 = vunpack.c.l.bf16 %v42
    %v91 = vunpack.c.h.bf16 %v42
    %v92 = vunpack.c.l.bf16 %v43
    %v93 = vunpack.c.h.bf16 %v43
    %v94 = vunpack.c.l.bf16 %v44
    %v95 = vunpack.c.l.bf16 %v45
    %v96 = vunpack.c.h.bf16 %v45
    %v97 = vunpack.c.l.bf16 %v46
    %v98 = vunpack.c.h.bf16 %v46
    %v99 = vunpack.c.l.bf16 %v47
    %v100 = vunpack.c.l.bf16 %v48
    %v101 = vunpack.c.h.bf16 %v48
    %v102 = vunpack.c.l.bf16 %v49
    %v103 = vunpack.c.h.bf16 %v49
    %v104 = vunpack.c.l.bf16 %v50
    %v105 = vunpack.c.l.bf16 %v51
    %v106 = vunpack.c.h.bf16 %v51
    %v107 = vunpack.c.l.bf16 %v52
    %v108 = vunpack.c.h.bf16 %v52
    %v109 = vunpack.c.l.bf16 %v53
    %v110 = vunpack.c.l.bf16 %v54
    %v111 = vunpack.c.h.bf16 %v54
    %v112 = vunpack.c.l.bf16 %v55
    %v113 = vunpack.c.h.bf16 %v55
    %v114 = vunpack.c.l.bf16 %v56
    %v115 = vunpack.c.l.bf16 %v57
    %v116 = vunpack.c.h.bf16 %v57
    %v117 = vunpack.c.l.bf16 %v58
    %v118 = vunpack.c.h.bf16 %v58
    %v119 = vunpack.c.l.bf16 %v59
    %v120 = vunpack.c.l.bf16 %v60
    %v121 = vunpack.c.h.bf16 %v60
    %v122 = vunpack.c.l.bf16 %v61
    %v123 = vunpack.c.h.bf16 %v61
    %v124 = vunpack.c.l.bf16 %v62
    %v125 = vunpack.c.l.bf16 %v63
    %v126 = vunpack.c.h.bf16 %v63
    %v127 = vunpack.c.l.bf16 %v64
    %v128 = vunpack.c.h.bf16 %v64
    %v129 = vunpack.c.l.bf16 %v65
    %v130 = vunpack.c.l.bf16 %v66
    %v131 = vunpack.c.h.bf16 %v66
    %v132 = vunpack.c.l.bf16 %v67
    %v133 = vunpack.c.h.bf16 %v67
    %v134 = vunpack.c.l.bf16 %v68
    %v135 = vunpack.c.l.bf16 %v69
    %v136 = vunpack.c.h.bf16 %v69
    %v137 = vunpack.c.l.bf16 %v70
    %v138 = vunpack.c.h.bf16 %v70
    %v139 = vunpack.c.l.bf16 %v71
    %v140 = vunpack.c.l.bf16 %v72
    %v141 = vunpack.c.h.bf16 %v72
    %v142 = vunpack.c.l.bf16 %v73
    %v143 = vunpack.c.h.bf16 %v73
    %v144 = vunpack.c.l.bf16 %v74
    %v145 = vunpack.c.l.bf16 %v75
    %v146 = vunpack.c.h.bf16 %v75
    %v147 = vunpack.c.l.bf16 %v76
    %v148 = vunpack.c.h.bf16 %v76
    %v149 = vunpack.c.l.bf16 %v77
    %v150 = vunpack.c.l.bf16 %v78
    %v151 = vunpack.c.h.bf16 %v78
    %v152 = vunpack.c.l.bf16 %v79
    %v153 = vunpack.c.h.bf16 %v79
    %v154 = vunpack.c.l.bf16 %v80
    %v155 = vunpack.c.l.bf16 %v81
    %v156 = vunpack.c.h.bf16 %v81
    %v157 = vunpack.c.l.bf16 %v82
    %v158 = vunpack.c.h.bf16 %v82
    %v159 = vunpack.c.l.bf16 %v83
    %v160 = vunpack.c.l.bf16 %v84
    %v161 = vunpack.c.h.bf16 %v84
    %v162 = vunpack.c.l.bf16 %v85
    %v163 = vunpack.c.h.bf16 %v85
    %v164 = vunpack.c.l.bf16 %v86
    %v165 = vunpack.c.l.bf16 %v87
    %v166 = vunpack.c.h.bf16 %v87
    %v167 = vunpack.c.l.bf16 %v88
    %v168 = vunpack.c.h.bf16 %v88
    %v169 = vunpack.c.l.bf16 %v89
    %v170 = vadd.f32 %v90, %v95
    %v171 = vrot.slane %v170, 4
    %v172 = vadd.f32 %v170, %v171
    %v173 = vrot.slane %v172, 2
    %v174 = vadd.f32 %v172, %v173
    %v175 = vrot.slane %v174, 1
    %v176 = vadd.f32 %v174, %v175
    %v177 = vadd.f32 %v91, %v96
    %v178 = vrot.slane %v177, 4
    %v179 = vadd.f32 %v177, %v178
    %v180 = vrot.slane %v179, 2
    %v181 = vadd.f32 %v179, %v180
    %v182 = vrot.slane %v181, 1
    %v183 = vadd.f32 %v181, %v182
    %v184 = vadd.f32 %v92, %v97
    %v185 = vrot.slane %v184, 4
    %v186 = vadd.f32 %v184, %v185
    %v187 = vrot.slane %v186, 2
    %v188 = vadd.f32 %v186, %v187
    %v189 = vrot.slane %v188, 1
    %v190 = vadd.f32 %v188, %v189
    %v191 = vadd.f32 %v93, %v98
    %v192 = vrot.slane %v191, 4
    %v193 = vadd.f32 %v191, %v192
    %v194 = vrot.slane %v193, 2
    %v195 = vadd.f32 %v193, %v194
    %v196 = vrot.slane %v195, 1
    %v197 = vadd.f32 %v195, %v196
    %vm198 = vcmask 523264
    %v199 = vsel %vm198, %v94, 0.0
    %v200 = vsel %vm198, %v99, 0.0
    %v201 = vadd.f32 %v199, %v200
    %v202 = vrot.slane %v201, 4
    %v203 = vadd.f32 %v201, %v202
    %v204 = vrot.slane %v203, 2
    %v205 = vadd.f32 %v203, %v204
    %v206 = vrot.slane %v205, 1
    %v207 = vadd.f32 %v205, %v206
    %v208 = vadd.f32 %v100, %v105
    %v209 = vrot.slane %v208, 4
    %v210 = vadd.f32 %v208, %v209
    %v211 = vrot.slane %v210, 2
    %v212 = vadd.f32 %v210, %v211
    %v213 = vrot.slane %v212, 1
    %v214 = vadd.f32 %v212, %v213
    %v215 = vadd.f32 %v101, %v106
    %v216 = vrot.slane %v215, 4
    %v217 = vadd.f32 %v215, %v216
    %v218 = vrot.slane %v217, 2
    %v219 = vadd.f32 %v217, %v218
    %v220 = vrot.slane %v219, 1
    %v221 = vadd.f32 %v219, %v220
    %v222 = vadd.f32 %v102, %v107
    %v223 = vrot.slane %v222, 4
    %v224 = vadd.f32 %v222, %v223
    %v225 = vrot.slane %v224, 2
    %v226 = vadd.f32 %v224, %v225
    %v227 = vrot.slane %v226, 1
    %v228 = vadd.f32 %v226, %v227
    %v229 = vadd.f32 %v103, %v108
    %v230 = vrot.slane %v229, 4
    %v231 = vadd.f32 %v229, %v230
    %v232 = vrot.slane %v231, 2
    %v233 = vadd.f32 %v231, %v232
    %v234 = vrot.slane %v233, 1
    %v235 = vadd.f32 %v233, %v234
    %v236 = vsel %vm198, %v104, 0.0
    %v237 = vsel %vm198, %v109, 0.0
    %v238 = vadd.f32 %v236, %v237
    %v239 = vrot.slane %v238, 4
    %v240 = vadd.f32 %v238, %v239
    %v241 = vrot.slane %v240, 2
    %v242 = vadd.f32 %v240, %v241
    %v243 = vrot.slane %v242, 1
    %v244 = vadd.f32 %v242, %v243
    %v245 = vadd.f32 %v110, %v115
    %v246 = vrot.slane %v245, 4
    %v247 = vadd.f32 %v245, %v246
    %v248 = vrot.slane %v247, 2
    %v249 = vadd.f32 %v247, %v248
    %v250 = vrot.slane %v249, 1
    %v251 = vadd.f32 %v249, %v250
    %v252 = vadd.f32 %v111, %v116
    %v253 = vrot.slane %v252, 4
    %v254 = vadd.f32 %v252, %v253
    %v255 = vrot.slane %v254, 2
    %v256 = vadd.f32 %v254, %v255
    %v257 = vrot.slane %v256, 1
    %v258 = vadd.f32 %v256, %v257
    %v259 = vadd.f32 %v112, %v117
    %v260 = vrot.slane %v259, 4
    %v261 = vadd.f32 %v259, %v260
    %v262 = vrot.slane %v261, 2
    %v263 = vadd.f32 %v261, %v262
    %v264 = vrot.slane %v263, 1
    %v265 = vadd.f32 %v263, %v264
    %v266 = vadd.f32 %v113, %v118
    %v267 = vrot.slane %v266, 4
    %v268 = vadd.f32 %v266, %v267
    %v269 = vrot.slane %v268, 2
    %v270 = vadd.f32 %v268, %v269
    %v271 = vrot.slane %v270, 1
    %v272 = vadd.f32 %v270, %v271
    %v273 = vsel %vm198, %v114, 0.0
    %v274 = vsel %vm198, %v119, 0.0
    %v275 = vadd.f32 %v273, %v274
    %v276 = vrot.slane %v275, 4
    %v277 = vadd.f32 %v275, %v276
    %v278 = vrot.slane %v277, 2
    %v279 = vadd.f32 %v277, %v278
    %v280 = vrot.slane %v279, 1
    %v281 = vadd.f32 %v279, %v280
    %v282 = vadd.f32 %v120, %v125
    %v283 = vrot.slane %v282, 4
    %v284 = vadd.f32 %v282, %v283
    %v285 = vrot.slane %v284, 2
    %v286 = vadd.f32 %v284, %v285
    %v287 = vrot.slane %v286, 1
    %v288 = vadd.f32 %v286, %v287
    %v289 = vadd.f32 %v121, %v126
    %v290 = vrot.slane %v289, 4
    %v291 = vadd.f32 %v289, %v290
    %v292 = vrot.slane %v291, 2
    %v293 = vadd.f32 %v291, %v292
    %v294 = vrot.slane %v293, 1
    %v295 = vadd.f32 %v293, %v294
    %v296 = vadd.f32 %v122, %v127
    %v297 = vrot.slane %v296, 4
    %v298 = vadd.f32 %v296, %v297
    %v299 = vrot.slane %v298, 2
    %v300 = vadd.f32 %v298, %v299
    %v301 = vrot.slane %v300, 1
    %v302 = vadd.f32 %v300, %v301
    %v303 = vadd.f32 %v123, %v128
    %v304 = vrot.slane %v303, 4
    %v305 = vadd.f32 %v303, %v304
    %v306 = vrot.slane %v305, 2
    %v307 = vadd.f32 %v305, %v306
    %v308 = vrot.slane %v307, 1
    %v309 = vadd.f32 %v307, %v308
    %v310 = vsel %vm198, %v124, 0.0
    %v311 = vsel %vm198, %v129, 0.0
    %v312 = vadd.f32 %v310, %v311
    %v313 = vrot.slane %v312, 4
    %v314 = vadd.f32 %v312, %v313
    %v315 = vrot.slane %v314, 2
    %v316 = vadd.f32 %v314, %v315
    %v317 = vrot.slane %v316, 1
    %v318 = vadd.f32 %v316, %v317
    %v319 = vadd.f32 %v130, %v135
    %v320 = vrot.slane %v319, 4
    %v321 = vadd.f32 %v319, %v320
    %v322 = vrot.slane %v321, 2
    %v323 = vadd.f32 %v321, %v322
    %v324 = vrot.slane %v323, 1
    %v325 = vadd.f32 %v323, %v324
    %v326 = vadd.f32 %v131, %v136
    %v327 = vrot.slane %v326, 4
    %v328 = vadd.f32 %v326, %v327
    %v329 = vrot.slane %v328, 2
    %v330 = vadd.f32 %v328, %v329
    %v331 = vrot.slane %v330, 1
    %v332 = vadd.f32 %v330, %v331
    %v333 = vadd.f32 %v132, %v137
    %v334 = vrot.slane %v333, 4
    %v335 = vadd.f32 %v333, %v334
    %v336 = vrot.slane %v335, 2
    %v337 = vadd.f32 %v335, %v336
    %v338 = vrot.slane %v337, 1
    %v339 = vadd.f32 %v337, %v338
    %v340 = vadd.f32 %v133, %v138
    %v341 = vrot.slane %v340, 4
    %v342 = vadd.f32 %v340, %v341
    %v343 = vrot.slane %v342, 2
    %v344 = vadd.f32 %v342, %v343
    %v345 = vrot.slane %v344, 1
    %v346 = vadd.f32 %v344, %v345
    %v347 = vsel %vm198, %v134, 0.0
    %v348 = vsel %vm198, %v139, 0.0
    %v349 = vadd.f32 %v347, %v348
    %v350 = vrot.slane %v349, 4
    %v351 = vadd.f32 %v349, %v350
    %v352 = vrot.slane %v351, 2
    %v353 = vadd.f32 %v351, %v352
    %v354 = vrot.slane %v353, 1
    %v355 = vadd.f32 %v353, %v354
    %v356 = vadd.f32 %v140, %v145
    %v357 = vrot.slane %v356, 4
    %v358 = vadd.f32 %v356, %v357
    %v359 = vrot.slane %v358, 2
    %v360 = vadd.f32 %v358, %v359
    %v361 = vrot.slane %v360, 1
    %v362 = vadd.f32 %v360, %v361
    %v363 = vadd.f32 %v141, %v146
    %v364 = vrot.slane %v363, 4
    %v365 = vadd.f32 %v363, %v364
    %v366 = vrot.slane %v365, 2
    %v367 = vadd.f32 %v365, %v366
    %v368 = vrot.slane %v367, 1
    %v369 = vadd.f32 %v367, %v368
    %v370 = vadd.f32 %v142, %v147
    %v371 = vrot.slane %v370, 4
    %v372 = vadd.f32 %v370, %v371
    %v373 = vrot.slane %v372, 2
    %v374 = vadd.f32 %v372, %v373
    %v375 = vrot.slane %v374, 1
    %v376 = vadd.f32 %v374, %v375
    %v377 = vadd.f32 %v143, %v148
    %v378 = vrot.slane %v377, 4
    %v379 = vadd.f32 %v377, %v378
    %v380 = vrot.slane %v379, 2
    %v381 = vadd.f32 %v379, %v380
    %v382 = vrot.slane %v381, 1
    %v383 = vadd.f32 %v381, %v382
    %v384 = vsel %vm198, %v144, 0.0
    %v385 = vsel %vm198, %v149, 0.0
    %v386 = vadd.f32 %v384, %v385
    %v387 = vrot.slane %v386, 4
    %v388 = vadd.f32 %v386, %v387
    %v389 = vrot.slane %v388, 2
    %v390 = vadd.f32 %v388, %v389
    %v391 = vrot.slane %v390, 1
    %v392 = vadd.f32 %v390, %v391
    %v393 = vadd.f32 %v150, %v155
    %v394 = vrot.slane %v393, 4
    %v395 = vadd.f32 %v393, %v394
    %v396 = vrot.slane %v395, 2
    %v397 = vadd.f32 %v395, %v396
    %v398 = vrot.slane %v397, 1
    %v399 = vadd.f32 %v397, %v398
    %v400 = vadd.f32 %v151, %v156
    %v401 = vrot.slane %v400, 4
    %v402 = vadd.f32 %v400, %v401
    %v403 = vrot.slane %v402, 2
    %v404 = vadd.f32 %v402, %v403
    %v405 = vrot.slane %v404, 1
    %v406 = vadd.f32 %v404, %v405
    %v407 = vadd.f32 %v152, %v157
    %v408 = vrot.slane %v407, 4
    %v409 = vadd.f32 %v407, %v408
    %v410 = vrot.slane %v409, 2
    %v411 = vadd.f32 %v409, %v410
    %v412 = vrot.slane %v411, 1
    %v413 = vadd.f32 %v411, %v412
    %v414 = vadd.f32 %v153, %v158
    %v415 = vrot.slane %v414, 4
    %v416 = vadd.f32 %v414, %v415
    %v417 = vrot.slane %v416, 2
    %v418 = vadd.f32 %v416, %v417
    %v419 = vrot.slane %v418, 1
    %v420 = vadd.f32 %v418, %v419
    %v421 = vsel %vm198, %v154, 0.0
    %v422 = vsel %vm198, %v159, 0.0
    %v423 = vadd.f32 %v421, %v422
    %v424 = vrot.slane %v423, 4
    %v425 = vadd.f32 %v423, %v424
    %v426 = vrot.slane %v425, 2
    %v427 = vadd.f32 %v425, %v426
    %v428 = vrot.slane %v427, 1
    %v429 = vadd.f32 %v427, %v428
    %v430 = vadd.f32 %v160, %v165
    %v431 = vrot.slane %v430, 4
    %v432 = vadd.f32 %v430, %v431
    %v433 = vrot.slane %v432, 2
    %v434 = vadd.f32 %v432, %v433
    %v435 = vrot.slane %v434, 1
    %v436 = vadd.f32 %v434, %v435
    %v437 = vadd.f32 %v161, %v166
    %v438 = vrot.slane %v437, 4
    %v439 = vadd.f32 %v437, %v438
    %v440 = vrot.slane %v439, 2
    %v441 = vadd.f32 %v439, %v440
    %v442 = vrot.slane %v441, 1
    %v443 = vadd.f32 %v441, %v442
    %v444 = vadd.f32 %v162, %v167
    %v445 = vrot.slane %v444, 4
    %v446 = vadd.f32 %v444, %v445
    %v447 = vrot.slane %v446, 2
    %v448 = vadd.f32 %v446, %v447
    %v449 = vrot.slane %v448, 1
    %v450 = vadd.f32 %v448, %v449
    %v451 = vadd.f32 %v163, %v168
    %v452 = vrot.slane %v451, 4
    %v453 = vadd.f32 %v451, %v452
    %v454 = vrot.slane %v453, 2
    %v455 = vadd.f32 %v453, %v454
    %v456 = vrot.slane %v455, 1
    %v457 = vadd.f32 %v455, %v456
    %v458 = vsel %vm198, %v164, 0.0
    %v459 = vsel %vm198, %v169, 0.0
    %v460 = vadd.f32 %v458, %v459
    %v461 = vrot.slane %v460, 4
    %v462 = vadd.f32 %v460, %v461
    %v463 = vrot.slane %v462, 2
    %v464 = vadd.f32 %v462, %v463
    %v465 = vrot.slane %v464, 1
    %v466 = vadd.f32 %v464, %v465
    %v467 = vadd.f32 %v176, 0.0
    %v468 = vadd.f32 %v183, 0.0
    %v469 = vadd.f32 %v190, 0.0
    %v470 = vadd.f32 %v197, 0.0
    %v471 = vadd.f32 %v207, 0.0
    %v472 = vadd.f32 %v214, 0.0
    %v473 = vadd.f32 %v221, 0.0
    %v474 = vadd.f32 %v228, 0.0
    %v475 = vadd.f32 %v235, 0.0
    %v476 = vadd.f32 %v244, 0.0
    %v477 = vadd.f32 %v251, 0.0
    %v478 = vadd.f32 %v258, 0.0
    %v479 = vadd.f32 %v265, 0.0
    %v480 = vadd.f32 %v272, 0.0
    %v481 = vadd.f32 %v281, 0.0
    %v482 = vadd.f32 %v288, 0.0
    %v483 = vadd.f32 %v295, 0.0
    %v484 = vadd.f32 %v302, 0.0
    %v485 = vadd.f32 %v309, 0.0
    %v486 = vadd.f32 %v318, 0.0
    %v487 = vadd.f32 %v325, 0.0
    %v488 = vadd.f32 %v332, 0.0
    %v489 = vadd.f32 %v339, 0.0
    %v490 = vadd.f32 %v346, 0.0
    %v491 = vadd.f32 %v355, 0.0
    %v492 = vadd.f32 %v362, 0.0
    %v493 = vadd.f32 %v369, 0.0
    %v494 = vadd.f32 %v376, 0.0
    %v495 = vadd.f32 %v383, 0.0
    %v496 = vadd.f32 %v392, 0.0
    %v497 = vadd.f32 %v399, 0.0
    %v498 = vadd.f32 %v406, 0.0
    %v499 = vadd.f32 %v413, 0.0
    %v500 = vadd.f32 %v420, 0.0
    %v501 = vadd.f32 %v429, 0.0
    %v502 = vadd.f32 %v436, 0.0
    %v503 = vadd.f32 %v443, 0.0
    %v504 = vadd.f32 %v450, 0.0
    %v505 = vadd.f32 %v457, 0.0
    %v506 = vadd.f32 %v466, 0.0
    %v507 = vld [vmem:[%s0 + $0x28] sm:$0xff]
    %v508 = vld [vmem:[%s0 + $0x30] sm:$0xff]
    %v509 = vld [vmem:[%s0 + $0x38] sm:$0xf]
    %v510 = vld [vmem:[%s0 + $0x3c] sm:$0xff]
    %v511 = vld [vmem:[%s0 + $0x44] sm:$0xff]
    %v512 = vld [vmem:[%s0 + $0x4c] sm:$0xf]
    %v513 = vld [vmem:[%s0 + $0xb4] sm:$0xff]
    %v514 = vld [vmem:[%s0 + $0xbc] sm:$0xff]
    %v515 = vld [vmem:[%s0 + $0xc4] sm:$0xf]
    %v516 = vld [vmem:[%s0 + $0xc8] sm:$0xff]
    %v517 = vld [vmem:[%s0 + $0xd0] sm:$0xff]
    %v518 = vld [vmem:[%s0 + $0xd8] sm:$0xf]
    %v519 = vld [vmem:[%s0 + $0x140] sm:$0xff]
    %v520 = vld [vmem:[%s0 + $0x148] sm:$0xff]
    %v521 = vld [vmem:[%s0 + $0x150] sm:$0xf]
    %v522 = vld [vmem:[%s0 + $0x154] sm:$0xff]
    %v523 = vld [vmem:[%s0 + $0x15c] sm:$0xff]
    %v524 = vld [vmem:[%s0 + $0x164] sm:$0xf]
    %v525 = vld [vmem:[%s0 + $0x1cc] sm:$0xff]
    %v526 = vld [vmem:[%s0 + $0x1d4] sm:$0xff]
    %v527 = vld [vmem:[%s0 + $0x1dc] sm:$0xf]
    %v528 = vld [vmem:[%s0 + $0x1e0] sm:$0xff]
    %v529 = vld [vmem:[%s0 + $0x1e8] sm:$0xff]
    %v530 = vld [vmem:[%s0 + $0x1f0] sm:$0xf]
    %v531 = vld [vmem:[%s0 + $0x258] sm:$0xff]
    %v532 = vld [vmem:[%s0 + $0x260] sm:$0xff]
    %v533 = vld [vmem:[%s0 + $0x268] sm:$0xf]
    %v534 = vld [vmem:[%s0 + $0x26c] sm:$0xff]
    %v535 = vld [vmem:[%s0 + $0x274] sm:$0xff]
    %v536 = vld [vmem:[%s0 + $0x27c] sm:$0xf]
    %v537 = vld [vmem:[%s0 + $0x2e4] sm:$0xff]
    %v538 = vld [vmem:[%s0 + $0x2ec] sm:$0xff]
    %v539 = vld [vmem:[%s0 + $0x2f4] sm:$0xf]
    %v540 = vld [vmem:[%s0 + $0x2f8] sm:$0xff]
    %v541 = vld [vmem:[%s0 + $0x300] sm:$0xff]
    %v542 = vld [vmem:[%s0 + $0x308] sm:$0xf]
    %v543 = vld [vmem:[%s0 + $0x370] sm:$0xff]
    %v544 = vld [vmem:[%s0 + $0x378] sm:$0xff]
    %v545 = vld [vmem:[%s0 + $0x380] sm:$0xf]
    %v546 = vld [vmem:[%s0 + $0x384] sm:$0xff]
    %v547 = vld [vmem:[%s0 + $0x38c] sm:$0xff]
    %v548 = vld [vmem:[%s0 + $0x394] sm:$0xf]
    %v549 = vld [vmem:[%s0 + $0x3fc] sm:$0xff]
    %v550 = vld [vmem:[%s0 + $0x404] sm:$0xff]
    %v551 = vld [vmem:[%s0 + $0x40c] sm:$0xf]
    %v552 = vld [vmem:[%s0 + $0x410] sm:$0xff]
    %v553 = vld [vmem:[%s0 + $0x418] sm:$0xff]
    %v554 = vld [vmem:[%s0 + $0x420] sm:$0xf]
    %v555 = vunpack.c.l.bf16 %v507
    %v556 = vunpack.c.h.bf16 %v507
    %v557 = vunpack.c.l.bf16 %v508
    %v558 = vunpack.c.h.bf16 %v508
    %v559 = vunpack.c.l.bf16 %v509
    %v560 = vunpack.c.l.bf16 %v510
    %v561 = vunpack.c.h.bf16 %v510
    %v562 = vunpack.c.l.bf16 %v511
    %v563 = vunpack.c.h.bf16 %v511
    %v564 = vunpack.c.l.bf16 %v512
    %v565 = vunpack.c.l.bf16 %v513
    %v566 = vunpack.c.h.bf16 %v513
    %v567 = vunpack.c.l.bf16 %v514
    %v568 = vunpack.c.h.bf16 %v514
    %v569 = vunpack.c.l.bf16 %v515
    %v570 = vunpack.c.l.bf16 %v516
    %v571 = vunpack.c.h.bf16 %v516
    %v572 = vunpack.c.l.bf16 %v517
    %v573 = vunpack.c.h.bf16 %v517
    %v574 = vunpack.c.l.bf16 %v518
    %v575 = vunpack.c.l.bf16 %v519
    %v576 = vunpack.c.h.bf16 %v519
    %v577 = vunpack.c.l.bf16 %v520
    %v578 = vunpack.c.h.bf16 %v520
    %v579 = vunpack.c.l.bf16 %v521
    %v580 = vunpack.c.l.bf16 %v522
    %v581 = vunpack.c.h.bf16 %v522
    %v582 = vunpack.c.l.bf16 %v523
    %v583 = vunpack.c.h.bf16 %v523
    %v584 = vunpack.c.l.bf16 %v524
    %v585 = vunpack.c.l.bf16 %v525
    %v586 = vunpack.c.h.bf16 %v525
    %v587 = vunpack.c.l.bf16 %v526
    %v588 = vunpack.c.h.bf16 %v526
    %v589 = vunpack.c.l.bf16 %v527
    %v590 = vunpack.c.l.bf16 %v528
    %v591 = vunpack.c.h.bf16 %v528
    %v592 = vunpack.c.l.bf16 %v529
    %v593 = vunpack.c.h.bf16 %v529
    %v594 = vunpack.c.l.bf16 %v530
    %v595 = vunpack.c.l.bf16 %v531
    %v596 = vunpack.c.h.bf16 %v531
    %v597 = vunpack.c.l.bf16 %v532
    %v598 = vunpack.c.h.bf16 %v532
    %v599 = vunpack.c.l.bf16 %v533
    %v600 = vunpack.c.l.bf16 %v534
    %v601 = vunpack.c.h.bf16 %v534
    %v602 = vunpack.c.l.bf16 %v535
    %v603 = vunpack.c.h.bf16 %v535
    %v604 = vunpack.c.l.bf16 %v536
    %v605 = vunpack.c.l.bf16 %v537
    %v606 = vunpack.c.h.bf16 %v537
    %v607 = vunpack.c.l.bf16 %v538
    %v608 = vunpack.c.h.bf16 %v538
    %v609 = vunpack.c.l.bf16 %v539
    %v610 = vunpack.c.l.bf16 %v540
    %v611 = vunpack.c.h.bf16 %v540
    %v612 = vunpack.c.l.bf16 %v541
    %v613 = vunpack.c.h.bf16 %v541
    %v614 = vunpack.c.l.bf16 %v542
    %v615 = vunpack.c.l.bf16 %v543
    %v616 = vunpack.c.h.bf16 %v543
    %v617 = vunpack.c.l.bf16 %v544
    %v618 = vunpack.c.h.bf16 %v544
    %v619 = vunpack.c.l.bf16 %v545
    %v620 = vunpack.c.l.bf16 %v546
    %v621 = vunpack.c.h.bf16 %v546
    %v622 = vunpack.c.l.bf16 %v547
    %v623 = vunpack.c.h.bf16 %v547
    %v624 = vunpack.c.l.bf16 %v548
    %v625 = vunpack.c.l.bf16 %v549
    %v626 = vunpack.c.h.bf16 %v549
    %v627 = vunpack.c.l.bf16 %v550
    %v628 = vunpack.c.h.bf16 %v550
    %v629 = vunpack.c.l.bf16 %v551
    %v630 = vunpack.c.l.bf16 %v552
    %v631 = vunpack.c.h.bf16 %v552
    %v632 = vunpack.c.l.bf16 %v553
    %v633 = vunpack.c.h.bf16 %v553
    %v634 = vunpack.c.l.bf16 %v554
    %v635 = vadd.f32 %v555, %v560
    %v636 = vrot.slane %v635, 4
    %v637 = vadd.f32 %v635, %v636
    %v638 = vrot.slane %v637, 2
    %v639 = vadd.f32 %v637, %v638
    %v640 = vrot.slane %v639, 1
    %v641 = vadd.f32 %v639, %v640
    %v642 = vadd.f32 %v556, %v561
    %v643 = vrot.slane %v642, 4
    %v644 = vadd.f32 %v642, %v643
    %v645 = vrot.slane %v644, 2
    %v646 = vadd.f32 %v644, %v645
    %v647 = vrot.slane %v646, 1
    %v648 = vadd.f32 %v646, %v647
    %v649 = vadd.f32 %v557, %v562
    %v650 = vrot.slane %v649, 4
    %v651 = vadd.f32 %v649, %v650
    %v652 = vrot.slane %v651, 2
    %v653 = vadd.f32 %v651, %v652
    %v654 = vrot.slane %v653, 1
    %v655 = vadd.f32 %v653, %v654
    %v656 = vadd.f32 %v558, %v563
    %v657 = vrot.slane %v656, 4
    %v658 = vadd.f32 %v656, %v657
    %v659 = vrot.slane %v658, 2
    %v660 = vadd.f32 %v658, %v659
    %v661 = vrot.slane %v660, 1
    %v662 = vadd.f32 %v660, %v661
    %v663 = vsel %vm198, %v559, 0.0
    %v664 = vsel %vm198, %v564, 0.0
    %v665 = vadd.f32 %v663, %v664
    %v666 = vrot.slane %v665, 4
    %v667 = vadd.f32 %v665, %v666
    %v668 = vrot.slane %v667, 2
    %v669 = vadd.f32 %v667, %v668
    %v670 = vrot.slane %v669, 1
    %v671 = vadd.f32 %v669, %v670
    %v672 = vadd.f32 %v565, %v570
    %v673 = vrot.slane %v672, 4
    %v674 = vadd.f32 %v672, %v673
    %v675 = vrot.slane %v674, 2
    %v676 = vadd.f32 %v674, %v675
    %v677 = vrot.slane %v676, 1
    %v678 = vadd.f32 %v676, %v677
    %v679 = vadd.f32 %v566, %v571
    %v680 = vrot.slane %v679, 4
    %v681 = vadd.f32 %v679, %v680
    %v682 = vrot.slane %v681, 2
    %v683 = vadd.f32 %v681, %v682
    %v684 = vrot.slane %v683, 1
    %v685 = vadd.f32 %v683, %v684
    %v686 = vadd.f32 %v567, %v572
    %v687 = vrot.slane %v686, 4
    %v688 = vadd.f32 %v686, %v687
    %v689 = vrot.slane %v688, 2
    %v690 = vadd.f32 %v688, %v689
    %v691 = vrot.slane %v690, 1
    %v692 = vadd.f32 %v690, %v691
    %v693 = vadd.f32 %v568, %v573
    %v694 = vrot.slane %v693, 4
    %v695 = vadd.f32 %v693, %v694
    %v696 = vrot.slane %v695, 2
    %v697 = vadd.f32 %v695, %v696
    %v698 = vrot.slane %v697, 1
    %v699 = vadd.f32 %v697, %v698
    %v700 = vsel %vm198, %v569, 0.0
    %v701 = vsel %vm198, %v574, 0.0
    %v702 = vadd.f32 %v700, %v701
    %v703 = vrot.slane %v702, 4
    %v704 = vadd.f32 %v702, %v703
    %v705 = vrot.slane %v704, 2
    %v706 = vadd.f32 %v704, %v705
    %v707 = vrot.slane %v706, 1
    %v708 = vadd.f32 %v706, %v707
    %v709 = vadd.f32 %v575, %v580
    %v710 = vrot.slane %v709, 4
    %v711 = vadd.f32 %v709, %v710
    %v712 = vrot.slane %v711, 2
    %v713 = vadd.f32 %v711, %v712
    %v714 = vrot.slane %v713, 1
    %v715 = vadd.f32 %v713, %v714
    %v716 = vadd.f32 %v576, %v581
    %v717 = vrot.slane %v716, 4
    %v718 = vadd.f32 %v716, %v717
    %v719 = vrot.slane %v718, 2
    %v720 = vadd.f32 %v718, %v719
    %v721 = vrot.slane %v720, 1
    %v722 = vadd.f32 %v720, %v721
    %v723 = vadd.f32 %v577, %v582
    %v724 = vrot.slane %v723, 4
    %v725 = vadd.f32 %v723, %v724
    %v726 = vrot.slane %v725, 2
    %v727 = vadd.f32 %v725, %v726
    %v728 = vrot.slane %v727, 1
    %v729 = vadd.f32 %v727, %v728
    %v730 = vadd.f32 %v578, %v583
    %v731 = vrot.slane %v730, 4
    %v732 = vadd.f32 %v730, %v731
    %v733 = vrot.slane %v732, 2
    %v734 = vadd.f32 %v732, %v733
    %v735 = vrot.slane %v734, 1
    %v736 = vadd.f32 %v734, %v735
    %v737 = vsel %vm198, %v579, 0.0
    %v738 = vsel %vm198, %v584, 0.0
    %v739 = vadd.f32 %v737, %v738
    %v740 = vrot.slane %v739, 4
    %v741 = vadd.f32 %v739, %v740
    %v742 = vrot.slane %v741, 2
    %v743 = vadd.f32 %v741, %v742
    %v744 = vrot.slane %v743, 1
    %v745 = vadd.f32 %v743, %v744
    %v746 = vadd.f32 %v585, %v590
    %v747 = vrot.slane %v746, 4
    %v748 = vadd.f32 %v746, %v747
    %v749 = vrot.slane %v748, 2
    %v750 = vadd.f32 %v748, %v749
    %v751 = vrot.slane %v750, 1
    %v752 = vadd.f32 %v750, %v751
    %v753 = vadd.f32 %v586, %v591
    %v754 = vrot.slane %v753, 4
    %v755 = vadd.f32 %v753, %v754
    %v756 = vrot.slane %v755, 2
    %v757 = vadd.f32 %v755, %v756
    %v758 = vrot.slane %v757, 1
    %v759 = vadd.f32 %v757, %v758
    %v760 = vadd.f32 %v587, %v592
    %v761 = vrot.slane %v760, 4
    %v762 = vadd.f32 %v760, %v761
    %v763 = vrot.slane %v762, 2
    %v764 = vadd.f32 %v762, %v763
    %v765 = vrot.slane %v764, 1
    %v766 = vadd.f32 %v764, %v765
    %v767 = vadd.f32 %v588, %v593
    %v768 = vrot.slane %v767, 4
    %v769 = vadd.f32 %v767, %v768
    %v770 = vrot.slane %v769, 2
    %v771 = vadd.f32 %v769, %v770
    %v772 = vrot.slane %v771, 1
    %v773 = vadd.f32 %v771, %v772
    %v774 = vsel %vm198, %v589, 0.0
    %v775 = vsel %vm198, %v594, 0.0
    %v776 = vadd.f32 %v774, %v775
    %v777 = vrot.slane %v776, 4
    %v778 = vadd.f32 %v776, %v777
    %v779 = vrot.slane %v778, 2
    %v780 = vadd.f32 %v778, %v779
    %v781 = vrot.slane %v780, 1
    %v782 = vadd.f32 %v780, %v781
    %v783 = vadd.f32 %v595, %v600
    %v784 = vrot.slane %v783, 4
    %v785 = vadd.f32 %v783, %v784
    %v786 = vrot.slane %v785, 2
    %v787 = vadd.f32 %v785, %v786
    %v788 = vrot.slane %v787, 1
    %v789 = vadd.f32 %v787, %v788
    %v790 = vadd.f32 %v596, %v601
    %v791 = vrot.slane %v790, 4
    %v792 = vadd.f32 %v790, %v791
    %v793 = vrot.slane %v792, 2
    %v794 = vadd.f32 %v792, %v793
    %v795 = vrot.slane %v794, 1
    %v796 = vadd.f32 %v794, %v795
    %v797 = vadd.f32 %v597, %v602
    %v798 = vrot.slane %v797, 4
    %v799 = vadd.f32 %v797, %v798
    %v800 = vrot.slane %v799, 2
    %v801 = vadd.f32 %v799, %v800
    %v802 = vrot.slane %v801, 1
    %v803 = vadd.f32 %v801, %v802
    %v804 = vadd.f32 %v598, %v603
    %v805 = vrot.slane %v804, 4
    %v806 = vadd.f32 %v804, %v805
    %v807 = vrot.slane %v806, 2
    %v808 = vadd.f32 %v806, %v807
    %v809 = vrot.slane %v808, 1
    %v810 = vadd.f32 %v808, %v809
    %v811 = vsel %vm198, %v599, 0.0
    %v812 = vsel %vm198, %v604, 0.0
    %v813 = vadd.f32 %v811, %v812
    %v814 = vrot.slane %v813, 4
    %v815 = vadd.f32 %v813, %v814
    %v816 = vrot.slane %v815, 2
    %v817 = vadd.f32 %v815, %v816
    %v818 = vrot.slane %v817, 1
    %v819 = vadd.f32 %v817, %v818
    %v820 = vadd.f32 %v605, %v610
    %v821 = vrot.slane %v820, 4
    %v822 = vadd.f32 %v820, %v821
    %v823 = vrot.slane %v822, 2
    %v824 = vadd.f32 %v822, %v823
    %v825 = vrot.slane %v824, 1
    %v826 = vadd.f32 %v824, %v825
    %v827 = vadd.f32 %v606, %v611
    %v828 = vrot.slane %v827, 4
    %v829 = vadd.f32 %v827, %v828
    %v830 = vrot.slane %v829, 2
    %v831 = vadd.f32 %v829, %v830
    %v832 = vrot.slane %v831, 1
    %v833 = vadd.f32 %v831, %v832
    %v834 = vadd.f32 %v607, %v612
    %v835 = vrot.slane %v834, 4
    %v836 = vadd.f32 %v834, %v835
    %v837 = vrot.slane %v836, 2
    %v838 = vadd.f32 %v836, %v837
    %v839 = vrot.slane %v838, 1
    %v840 = vadd.f32 %v838, %v839
    %v841 = vadd.f32 %v608, %v613
    %v842 = vrot.slane %v841, 4
    %v843 = vadd.f32 %v841, %v842
    %v844 = vrot.slane %v843, 2
    %v845 = vadd.f32 %v843, %v844
    %v846 = vrot.slane %v845, 1
    %v847 = vadd.f32 %v845, %v846
    %v848 = vsel %vm198, %v609, 0.0
    %v849 = vsel %vm198, %v614, 0.0
    %v850 = vadd.f32 %v848, %v849
    %v851 = vrot.slane %v850, 4
    %v852 = vadd.f32 %v850, %v851
    %v853 = vrot.slane %v852, 2
    %v854 = vadd.f32 %v852, %v853
    %v855 = vrot.slane %v854, 1
    %v856 = vadd.f32 %v854, %v855
    %v857 = vadd.f32 %v615, %v620
    %v858 = vrot.slane %v857, 4
    %v859 = vadd.f32 %v857, %v858
    %v860 = vrot.slane %v859, 2
    %v861 = vadd.f32 %v859, %v860
    %v862 = vrot.slane %v861, 1
    %v863 = vadd.f32 %v861, %v862
    %v864 = vadd.f32 %v616, %v621
    %v865 = vrot.slane %v864, 4
    %v866 = vadd.f32 %v864, %v865
    %v867 = vrot.slane %v866, 2
    %v868 = vadd.f32 %v866, %v867
    %v869 = vrot.slane %v868, 1
    %v870 = vadd.f32 %v868, %v869
    %v871 = vadd.f32 %v617, %v622
    %v872 = vrot.slane %v871, 4
    %v873 = vadd.f32 %v871, %v872
    %v874 = vrot.slane %v873, 2
    %v875 = vadd.f32 %v873, %v874
    %v876 = vrot.slane %v875, 1
    %v877 = vadd.f32 %v875, %v876
    %v878 = vadd.f32 %v618, %v623
    %v879 = vrot.slane %v878, 4
    %v880 = vadd.f32 %v878, %v879
    %v881 = vrot.slane %v880, 2
    %v882 = vadd.f32 %v880, %v881
    %v883 = vrot.slane %v882, 1
    %v884 = vadd.f32 %v882, %v883
    %v885 = vsel %vm198, %v619, 0.0
    %v886 = vsel %vm198, %v624, 0.0
    %v887 = vadd.f32 %v885, %v886
    %v888 = vrot.slane %v887, 4
    %v889 = vadd.f32 %v887, %v888
    %v890 = vrot.slane %v889, 2
    %v891 = vadd.f32 %v889, %v890
    %v892 = vrot.slane %v891, 1
    %v893 = vadd.f32 %v891, %v892
    %v894 = vadd.f32 %v625, %v630
    %v895 = vrot.slane %v894, 4
    %v896 = vadd.f32 %v894, %v895
    %v897 = vrot.slane %v896, 2
    %v898 = vadd.f32 %v896, %v897
    %v899 = vrot.slane %v898, 1
    %v900 = vadd.f32 %v898, %v899
    %v901 = vadd.f32 %v626, %v631
    %v902 = vrot.slane %v901, 4
    %v903 = vadd.f32 %v901, %v902
    %v904 = vrot.slane %v903, 2
    %v905 = vadd.f32 %v903, %v904
    %v906 = vrot.slane %v905, 1
    %v907 = vadd.f32 %v905, %v906
    %v908 = vadd.f32 %v627, %v632
    %v909 = vrot.slane %v908, 4
    %v910 = vadd.f32 %v908, %v909
    %v911 = vrot.slane %v910, 2
    %v912 = vadd.f32 %v910, %v911
    %v913 = vrot.slane %v912, 1
    %v914 = vadd.f32 %v912, %v913
    %v915 = vadd.f32 %v628, %v633
    %v916 = vrot.slane %v915, 4
    %v917 = vadd.f32 %v915, %v916
    %v918 = vrot.slane %v917, 2
    %v919 = vadd.f32 %v917, %v918
    %v920 = vrot.slane %v919, 1
    %v921 = vadd.f32 %v919, %v920
    %v922 = vsel %vm198, %v629, 0.0
    %v923 = vsel %vm198, %v634, 0.0
    %v924 = vadd.f32 %v922, %v923
    %v925 = vrot.slane %v924, 4
    %v926 = vadd.f32 %v924, %v925
    %v927 = vrot.slane %v926, 2
    %v928 = vadd.f32 %v926, %v927
    %v929 = vrot.slane %v928, 1
    %v930 = vadd.f32 %v928, %v929
    %v931 = vadd.f32 %v467, %v641
    %v932 = vadd.f32 %v468, %v648
    %v933 = vadd.f32 %v469, %v655
    %v934 = vadd.f32 %v470, %v662
    %v935 = vadd.f32 %v471, %v671
    %v936 = vadd.f32 %v472, %v678
    %v937 = vadd.f32 %v473, %v685
    %v938 = vadd.f32 %v474, %v692
    %v939 = vadd.f32 %v475, %v699
    %v940 = vadd.f32 %v476, %v708
    %v941 = vadd.f32 %v477, %v715
    %v942 = vadd.f32 %v478, %v722
    %v943 = vadd.f32 %v479, %v729
    %v944 = vadd.f32 %v480, %v736
    %v945 = vadd.f32 %v481, %v745
    %v946 = vadd.f32 %v482, %v752
    %v947 = vadd.f32 %v483, %v759
    %v948 = vadd.f32 %v484, %v766
    %v949 = vadd.f32 %v485, %v773
    %v950 = vadd.f32 %v486, %v782
    %v951 = vadd.f32 %v487, %v789
    %v952 = vadd.f32 %v488, %v796
    %v953 = vadd.f32 %v489, %v803
    %v954 = vadd.f32 %v490, %v810
    %v955 = vadd.f32 %v491, %v819
    %v956 = vadd.f32 %v492, %v826
    %v957 = vadd.f32 %v493, %v833
    %v958 = vadd.f32 %v494, %v840
    %v959 = vadd.f32 %v495, %v847
    %v960 = vadd.f32 %v496, %v856
    %v961 = vadd.f32 %v497, %v863
    %v962 = vadd.f32 %v498, %v870
    %v963 = vadd.f32 %v499, %v877
    %v964 = vadd.f32 %v500, %v884
    %v965 = vadd.f32 %v501, %v893
    %v966 = vadd.f32 %v502, %v900
    %v967 = vadd.f32 %v503, %v907
    %v968 = vadd.f32 %v504, %v914
    %v969 = vadd.f32 %v505, %v921
    %v970 = vadd.f32 %v506, %v930
    %v971 = vld [vmem:[%s0 + $0x50] sm:$0xff]
    %v972 = vld [vmem:[%s0 + $0x58] sm:$0xff]
    %v973 = vld [vmem:[%s0 + $0x60] sm:$0xf]
    %v974 = vld [vmem:[%s0 + $0x64] sm:$0xff]
    %v975 = vld [vmem:[%s0 + $0x6c] sm:$0xff]
    %v976 = vld [vmem:[%s0 + $0x74] sm:$0xf]
    %v977 = vld [vmem:[%s0 + $0xdc] sm:$0xff]
    %v978 = vld [vmem:[%s0 + $0xe4] sm:$0xff]
    %v979 = vld [vmem:[%s0 + $0xec] sm:$0xf]
    %v980 = vld [vmem:[%s0 + $0xf0] sm:$0xff]
    %v981 = vld [vmem:[%s0 + $0xf8] sm:$0xff]
    %v982 = vld [vmem:[%s0 + $0x100] sm:$0xf]
    %v983 = vld [vmem:[%s0 + $0x168] sm:$0xff]
    %v984 = vld [vmem:[%s0 + $0x170] sm:$0xff]
    %v985 = vld [vmem:[%s0 + $0x178] sm:$0xf]
    %v986 = vld [vmem:[%s0 + $0x17c] sm:$0xff]
    %v987 = vld [vmem:[%s0 + $0x184] sm:$0xff]
    %v988 = vld [vmem:[%s0 + $0x18c] sm:$0xf]
    %v989 = vld [vmem:[%s0 + $0x1f4] sm:$0xff]
    %v990 = vld [vmem:[%s0 + $0x1fc] sm:$0xff]
    %v991 = vld [vmem:[%s0 + $0x204] sm:$0xf]
    %v992 = vld [vmem:[%s0 + $0x208] sm:$0xff]
    %v993 = vld [vmem:[%s0 + $0x210] sm:$0xff]
    %v994 = vld [vmem:[%s0 + $0x218] sm:$0xf]
    %v995 = vld [vmem:[%s0 + $0x280] sm:$0xff]
    %v996 = vld [vmem:[%s0 + $0x288] sm:$0xff]
    %v997 = vld [vmem:[%s0 + $0x290] sm:$0xf]
    %v998 = vld [vmem:[%s0 + $0x294] sm:$0xff]
    %v999 = vld [vmem:[%s0 + $0x29c] sm:$0xff]
    %v1000 = vld [vmem:[%s0 + $0x2a4] sm:$0xf]
    %v1001 = vld [vmem:[%s0 + $0x30c] sm:$0xff]
    %v1002 = vld [vmem:[%s0 + $0x314] sm:$0xff]
    %v1003 = vld [vmem:[%s0 + $0x31c] sm:$0xf]
    %v1004 = vld [vmem:[%s0 + $0x320] sm:$0xff]
    %v1005 = vld [vmem:[%s0 + $0x328] sm:$0xff]
    %v1006 = vld [vmem:[%s0 + $0x330] sm:$0xf]
    %v1007 = vld [vmem:[%s0 + $0x398] sm:$0xff]
    %v1008 = vld [vmem:[%s0 + $0x3a0] sm:$0xff]
    %v1009 = vld [vmem:[%s0 + $0x3a8] sm:$0xf]
    %v1010 = vld [vmem:[%s0 + $0x3ac] sm:$0xff]
    %v1011 = vld [vmem:[%s0 + $0x3b4] sm:$0xff]
    %v1012 = vld [vmem:[%s0 + $0x3bc] sm:$0xf]
    %v1013 = vld [vmem:[%s0 + $0x424] sm:$0xff]
    %v1014 = vld [vmem:[%s0 + $0x42c] sm:$0xff]
    %v1015 = vld [vmem:[%s0 + $0x434] sm:$0xf]
    %v1016 = vld [vmem:[%s0 + $0x438] sm:$0xff]
    %v1017 = vld [vmem:[%s0 + $0x440] sm:$0xff]
    %v1018 = vld [vmem:[%s0 + $0x448] sm:$0xf]
    %v1019 = vunpack.c.l.bf16 %v971
    %v1020 = vunpack.c.h.bf16 %v971
    %v1021 = vunpack.c.l.bf16 %v972
    %v1022 = vunpack.c.h.bf16 %v972
    %v1023 = vunpack.c.l.bf16 %v973
    %v1024 = vunpack.c.l.bf16 %v974
    %v1025 = vunpack.c.h.bf16 %v974
    %v1026 = vunpack.c.l.bf16 %v975
    %v1027 = vunpack.c.h.bf16 %v975
    %v1028 = vunpack.c.l.bf16 %v976
    %v1029 = vunpack.c.l.bf16 %v977
    %v1030 = vunpack.c.h.bf16 %v977
    %v1031 = vunpack.c.l.bf16 %v978
    %v1032 = vunpack.c.h.bf16 %v978
    %v1033 = vunpack.c.l.bf16 %v979
    %v1034 = vunpack.c.l.bf16 %v980
    %v1035 = vunpack.c.h.bf16 %v980
    %v1036 = vunpack.c.l.bf16 %v981
    %v1037 = vunpack.c.h.bf16 %v981
    %v1038 = vunpack.c.l.bf16 %v982
    %v1039 = vunpack.c.l.bf16 %v983
    %v1040 = vunpack.c.h.bf16 %v983
    %v1041 = vunpack.c.l.bf16 %v984
    %v1042 = vunpack.c.h.bf16 %v984
    %v1043 = vunpack.c.l.bf16 %v985
    %v1044 = vunpack.c.l.bf16 %v986
    %v1045 = vunpack.c.h.bf16 %v986
    %v1046 = vunpack.c.l.bf16 %v987
    %v1047 = vunpack.c.h.bf16 %v987
    %v1048 = vunpack.c.l.bf16 %v988
    %v1049 = vunpack.c.l.bf16 %v989
    %v1050 = vunpack.c.h.bf16 %v989
    %v1051 = vunpack.c.l.bf16 %v990
    %v1052 = vunpack.c.h.bf16 %v990
    %v1053 = vunpack.c.l.bf16 %v991
    %v1054 = vunpack.c.l.bf16 %v992
    %v1055 = vunpack.c.h.bf16 %v992
    %v1056 = vunpack.c.l.bf16 %v993
    %v1057 = vunpack.c.h.bf16 %v993
    %v1058 = vunpack.c.l.bf16 %v994
    %v1059 = vunpack.c.l.bf16 %v995
    %v1060 = vunpack.c.h.bf16 %v995
    %v1061 = vunpack.c.l.bf16 %v996
    %v1062 = vunpack.c.h.bf16 %v996
    %v1063 = vunpack.c.l.bf16 %v997
    %v1064 = vunpack.c.l.bf16 %v998
    %v1065 = vunpack.c.h.bf16 %v998
    %v1066 = vunpack.c.l.bf16 %v999
    %v1067 = vunpack.c.h.bf16 %v999
    %v1068 = vunpack.c.l.bf16 %v1000
    %v1069 = vunpack.c.l.bf16 %v1001
    %v1070 = vunpack.c.h.bf16 %v1001
    %v1071 = vunpack.c.l.bf16 %v1002
    %v1072 = vunpack.c.h.bf16 %v1002
    %v1073 = vunpack.c.l.bf16 %v1003
    %v1074 = vunpack.c.l.bf16 %v1004
    %v1075 = vunpack.c.h.bf16 %v1004
    %v1076 = vunpack.c.l.bf16 %v1005
    %v1077 = vunpack.c.h.bf16 %v1005
    %v1078 = vunpack.c.l.bf16 %v1006
    %v1079 = vunpack.c.l.bf16 %v1007
    %v1080 = vunpack.c.h.bf16 %v1007
    %v1081 = vunpack.c.l.bf16 %v1008
    %v1082 = vunpack.c.h.bf16 %v1008
    %v1083 = vunpack.c.l.bf16 %v1009
    %v1084 = vunpack.c.l.bf16 %v1010
    %v1085 = vunpack.c.h.bf16 %v1010
    %v1086 = vunpack.c.l.bf16 %v1011
    %v1087 = vunpack.c.h.bf16 %v1011
    %v1088 = vunpack.c.l.bf16 %v1012
    %v1089 = vunpack.c.l.bf16 %v1013
    %v1090 = vunpack.c.h.bf16 %v1013
    %v1091 = vunpack.c.l.bf16 %v1014
    %v1092 = vunpack.c.h.bf16 %v1014
    %v1093 = vunpack.c.l.bf16 %v1015
    %v1094 = vunpack.c.l.bf16 %v1016
    %v1095 = vunpack.c.h.bf16 %v1016
    %v1096 = vunpack.c.l.bf16 %v1017
    %v1097 = vunpack.c.h.bf16 %v1017
    %v1098 = vunpack.c.l.bf16 %v1018
    %v1099 = vadd.f32 %v1019, %v1024
    %v1100 = vrot.slane %v1099, 4
    %v1101 = vadd.f32 %v1099, %v1100
    %v1102 = vrot.slane %v1101, 2
    %v1103 = vadd.f32 %v1101, %v1102
    %v1104 = vrot.slane %v1103, 1
    %v1105 = vadd.f32 %v1103, %v1104
    %v1106 = vadd.f32 %v1020, %v1025
    %v1107 = vrot.slane %v1106, 4
    %v1108 = vadd.f32 %v1106, %v1107
    %v1109 = vrot.slane %v1108, 2
    %v1110 = vadd.f32 %v1108, %v1109
    %v1111 = vrot.slane %v1110, 1
    %v1112 = vadd.f32 %v1110, %v1111
    %v1113 = vadd.f32 %v1021, %v1026
    %v1114 = vrot.slane %v1113, 4
    %v1115 = vadd.f32 %v1113, %v1114
    %v1116 = vrot.slane %v1115, 2
    %v1117 = vadd.f32 %v1115, %v1116
    %v1118 = vrot.slane %v1117, 1
    %v1119 = vadd.f32 %v1117, %v1118
    %v1120 = vadd.f32 %v1022, %v1027
    %v1121 = vrot.slane %v1120, 4
    %v1122 = vadd.f32 %v1120, %v1121
    %v1123 = vrot.slane %v1122, 2
    %v1124 = vadd.f32 %v1122, %v1123
    %v1125 = vrot.slane %v1124, 1
    %v1126 = vadd.f32 %v1124, %v1125
    %v1127 = vsel %vm198, %v1023, 0.0
    %v1128 = vsel %vm198, %v1028, 0.0
    %v1129 = vadd.f32 %v1127, %v1128
    %v1130 = vrot.slane %v1129, 4
    %v1131 = vadd.f32 %v1129, %v1130
    %v1132 = vrot.slane %v1131, 2
    %v1133 = vadd.f32 %v1131, %v1132
    %v1134 = vrot.slane %v1133, 1
    %v1135 = vadd.f32 %v1133, %v1134
    %v1136 = vadd.f32 %v1029, %v1034
    %v1137 = vrot.slane %v1136, 4
    %v1138 = vadd.f32 %v1136, %v1137
    %v1139 = vrot.slane %v1138, 2
    %v1140 = vadd.f32 %v1138, %v1139
    %v1141 = vrot.slane %v1140, 1
    %v1142 = vadd.f32 %v1140, %v1141
    %v1143 = vadd.f32 %v1030, %v1035
    %v1144 = vrot.slane %v1143, 4
    %v1145 = vadd.f32 %v1143, %v1144
    %v1146 = vrot.slane %v1145, 2
    %v1147 = vadd.f32 %v1145, %v1146
    %v1148 = vrot.slane %v1147, 1
    %v1149 = vadd.f32 %v1147, %v1148
    %v1150 = vadd.f32 %v1031, %v1036
    %v1151 = vrot.slane %v1150, 4
    %v1152 = vadd.f32 %v1150, %v1151
    %v1153 = vrot.slane %v1152, 2
    %v1154 = vadd.f32 %v1152, %v1153
    %v1155 = vrot.slane %v1154, 1
    %v1156 = vadd.f32 %v1154, %v1155
    %v1157 = vadd.f32 %v1032, %v1037
    %v1158 = vrot.slane %v1157, 4
    %v1159 = vadd.f32 %v1157, %v1158
    %v1160 = vrot.slane %v1159, 2
    %v1161 = vadd.f32 %v1159, %v1160
    %v1162 = vrot.slane %v1161, 1
    %v1163 = vadd.f32 %v1161, %v1162
    %v1164 = vsel %vm198, %v1033, 0.0
    %v1165 = vsel %vm198, %v1038, 0.0
    %v1166 = vadd.f32 %v1164, %v1165
    %v1167 = vrot.slane %v1166, 4
    %v1168 = vadd.f32 %v1166, %v1167
    %v1169 = vrot.slane %v1168, 2
    %v1170 = vadd.f32 %v1168, %v1169
    %v1171 = vrot.slane %v1170, 1
    %v1172 = vadd.f32 %v1170, %v1171
    %v1173 = vadd.f32 %v1039, %v1044
    %v1174 = vrot.slane %v1173, 4
    %v1175 = vadd.f32 %v1173, %v1174
    %v1176 = vrot.slane %v1175, 2
    %v1177 = vadd.f32 %v1175, %v1176
    %v1178 = vrot.slane %v1177, 1
    %v1179 = vadd.f32 %v1177, %v1178
    %v1180 = vadd.f32 %v1040, %v1045
    %v1181 = vrot.slane %v1180, 4
    %v1182 = vadd.f32 %v1180, %v1181
    %v1183 = vrot.slane %v1182, 2
    %v1184 = vadd.f32 %v1182, %v1183
    %v1185 = vrot.slane %v1184, 1
    %v1186 = vadd.f32 %v1184, %v1185
    %v1187 = vadd.f32 %v1041, %v1046
    %v1188 = vrot.slane %v1187, 4
    %v1189 = vadd.f32 %v1187, %v1188
    %v1190 = vrot.slane %v1189, 2
    %v1191 = vadd.f32 %v1189, %v1190
    %v1192 = vrot.slane %v1191, 1
    %v1193 = vadd.f32 %v1191, %v1192
    %v1194 = vadd.f32 %v1042, %v1047
    %v1195 = vrot.slane %v1194, 4
    %v1196 = vadd.f32 %v1194, %v1195
    %v1197 = vrot.slane %v1196, 2
    %v1198 = vadd.f32 %v1196, %v1197
    %v1199 = vrot.slane %v1198, 1
    %v1200 = vadd.f32 %v1198, %v1199
    %v1201 = vsel %vm198, %v1043, 0.0
    %v1202 = vsel %vm198, %v1048, 0.0
    %v1203 = vadd.f32 %v1201, %v1202
    %v1204 = vrot.slane %v1203, 4
    %v1205 = vadd.f32 %v1203, %v1204
    %v1206 = vrot.slane %v1205, 2
    %v1207 = vadd.f32 %v1205, %v1206
    %v1208 = vrot.slane %v1207, 1
    %v1209 = vadd.f32 %v1207, %v1208
    %v1210 = vadd.f32 %v1049, %v1054
    %v1211 = vrot.slane %v1210, 4
    %v1212 = vadd.f32 %v1210, %v1211
    %v1213 = vrot.slane %v1212, 2
    %v1214 = vadd.f32 %v1212, %v1213
    %v1215 = vrot.slane %v1214, 1
    %v1216 = vadd.f32 %v1214, %v1215
    %v1217 = vadd.f32 %v1050, %v1055
    %v1218 = vrot.slane %v1217, 4
    %v1219 = vadd.f32 %v1217, %v1218
    %v1220 = vrot.slane %v1219, 2
    %v1221 = vadd.f32 %v1219, %v1220
    %v1222 = vrot.slane %v1221, 1
    %v1223 = vadd.f32 %v1221, %v1222
    %v1224 = vadd.f32 %v1051, %v1056
    %v1225 = vrot.slane %v1224, 4
    %v1226 = vadd.f32 %v1224, %v1225
    %v1227 = vrot.slane %v1226, 2
    %v1228 = vadd.f32 %v1226, %v1227
    %v1229 = vrot.slane %v1228, 1
    %v1230 = vadd.f32 %v1228, %v1229
    %v1231 = vadd.f32 %v1052, %v1057
    %v1232 = vrot.slane %v1231, 4
    %v1233 = vadd.f32 %v1231, %v1232
    %v1234 = vrot.slane %v1233, 2
    %v1235 = vadd.f32 %v1233, %v1234
    %v1236 = vrot.slane %v1235, 1
    %v1237 = vadd.f32 %v1235, %v1236
    %v1238 = vsel %vm198, %v1053, 0.0
    %v1239 = vsel %vm198, %v1058, 0.0
    %v1240 = vadd.f32 %v1238, %v1239
    %v1241 = vrot.slane %v1240, 4
    %v1242 = vadd.f32 %v1240, %v1241
    %v1243 = vrot.slane %v1242, 2
    %v1244 = vadd.f32 %v1242, %v1243
    %v1245 = vrot.slane %v1244, 1
    %v1246 = vadd.f32 %v1244, %v1245
    %v1247 = vadd.f32 %v1059, %v1064
    %v1248 = vrot.slane %v1247, 4
    %v1249 = vadd.f32 %v1247, %v1248
    %v1250 = vrot.slane %v1249, 2
    %v1251 = vadd.f32 %v1249, %v1250
    %v1252 = vrot.slane %v1251, 1
    %v1253 = vadd.f32 %v1251, %v1252
    %v1254 = vadd.f32 %v1060, %v1065
    %v1255 = vrot.slane %v1254, 4
    %v1256 = vadd.f32 %v1254, %v1255
    %v1257 = vrot.slane %v1256, 2
    %v1258 = vadd.f32 %v1256, %v1257
    %v1259 = vrot.slane %v1258, 1
    %v1260 = vadd.f32 %v1258, %v1259
    %v1261 = vadd.f32 %v1061, %v1066
    %v1262 = vrot.slane %v1261, 4
    %v1263 = vadd.f32 %v1261, %v1262
    %v1264 = vrot.slane %v1263, 2
    %v1265 = vadd.f32 %v1263, %v1264
    %v1266 = vrot.slane %v1265, 1
    %v1267 = vadd.f32 %v1265, %v1266
    %v1268 = vadd.f32 %v1062, %v1067
    %v1269 = vrot.slane %v1268, 4
    %v1270 = vadd.f32 %v1268, %v1269
    %v1271 = vrot.slane %v1270, 2
    %v1272 = vadd.f32 %v1270, %v1271
    %v1273 = vrot.slane %v1272, 1
    %v1274 = vadd.f32 %v1272, %v1273
    %v1275 = vsel %vm198, %v1063, 0.0
    %v1276 = vsel %vm198, %v1068, 0.0
    %v1277 = vadd.f32 %v1275, %v1276
    %v1278 = vrot.slane %v1277, 4
    %v1279 = vadd.f32 %v1277, %v1278
    %v1280 = vrot.slane %v1279, 2
    %v1281 = vadd.f32 %v1279, %v1280
    %v1282 = vrot.slane %v1281, 1
    %v1283 = vadd.f32 %v1281, %v1282
    %v1284 = vadd.f32 %v1069, %v1074
    %v1285 = vrot.slane %v1284, 4
    %v1286 = vadd.f32 %v1284, %v1285
    %v1287 = vrot.slane %v1286, 2
    %v1288 = vadd.f32 %v1286, %v1287
    %v1289 = vrot.slane %v1288, 1
    %v1290 = vadd.f32 %v1288, %v1289
    %v1291 = vadd.f32 %v1070, %v1075
    %v1292 = vrot.slane %v1291, 4
    %v1293 = vadd.f32 %v1291, %v1292
    %v1294 = vrot.slane %v1293, 2
    %v1295 = vadd.f32 %v1293, %v1294
    %v1296 = vrot.slane %v1295, 1
    %v1297 = vadd.f32 %v1295, %v1296
    %v1298 = vadd.f32 %v1071, %v1076
    %v1299 = vrot.slane %v1298, 4
    %v1300 = vadd.f32 %v1298, %v1299
    %v1301 = vrot.slane %v1300, 2
    %v1302 = vadd.f32 %v1300, %v1301
    %v1303 = vrot.slane %v1302, 1
    %v1304 = vadd.f32 %v1302, %v1303
    %v1305 = vadd.f32 %v1072, %v1077
    %v1306 = vrot.slane %v1305, 4
    %v1307 = vadd.f32 %v1305, %v1306
    %v1308 = vrot.slane %v1307, 2
    %v1309 = vadd.f32 %v1307, %v1308
    %v1310 = vrot.slane %v1309, 1
    %v1311 = vadd.f32 %v1309, %v1310
    %v1312 = vsel %vm198, %v1073, 0.0
    %v1313 = vsel %vm198, %v1078, 0.0
    %v1314 = vadd.f32 %v1312, %v1313
    %v1315 = vrot.slane %v1314, 4
    %v1316 = vadd.f32 %v1314, %v1315
    %v1317 = vrot.slane %v1316, 2
    %v1318 = vadd.f32 %v1316, %v1317
    %v1319 = vrot.slane %v1318, 1
    %v1320 = vadd.f32 %v1318, %v1319
    %v1321 = vadd.f32 %v1079, %v1084
    %v1322 = vrot.slane %v1321, 4
    %v1323 = vadd.f32 %v1321, %v1322
    %v1324 = vrot.slane %v1323, 2
    %v1325 = vadd.f32 %v1323, %v1324
    %v1326 = vrot.slane %v1325, 1
    %v1327 = vadd.f32 %v1325, %v1326
    %v1328 = vadd.f32 %v1080, %v1085
    %v1329 = vrot.slane %v1328, 4
    %v1330 = vadd.f32 %v1328, %v1329
    %v1331 = vrot.slane %v1330, 2
    %v1332 = vadd.f32 %v1330, %v1331
    %v1333 = vrot.slane %v1332, 1
    %v1334 = vadd.f32 %v1332, %v1333
    %v1335 = vadd.f32 %v1081, %v1086
    %v1336 = vrot.slane %v1335, 4
    %v1337 = vadd.f32 %v1335, %v1336
    %v1338 = vrot.slane %v1337, 2
    %v1339 = vadd.f32 %v1337, %v1338
    %v1340 = vrot.slane %v1339, 1
    %v1341 = vadd.f32 %v1339, %v1340
    %v1342 = vadd.f32 %v1082, %v1087
    %v1343 = vrot.slane %v1342, 4
    %v1344 = vadd.f32 %v1342, %v1343
    %v1345 = vrot.slane %v1344, 2
    %v1346 = vadd.f32 %v1344, %v1345
    %v1347 = vrot.slane %v1346, 1
    %v1348 = vadd.f32 %v1346, %v1347
    %v1349 = vsel %vm198, %v1083, 0.0
    %v1350 = vsel %vm198, %v1088, 0.0
    %v1351 = vadd.f32 %v1349, %v1350
    %v1352 = vrot.slane %v1351, 4
    %v1353 = vadd.f32 %v1351, %v1352
    %v1354 = vrot.slane %v1353, 2
    %v1355 = vadd.f32 %v1353, %v1354
    %v1356 = vrot.slane %v1355, 1
    %v1357 = vadd.f32 %v1355, %v1356
    %v1358 = vadd.f32 %v1089, %v1094
    %v1359 = vrot.slane %v1358, 4
    %v1360 = vadd.f32 %v1358, %v1359
    %v1361 = vrot.slane %v1360, 2
    %v1362 = vadd.f32 %v1360, %v1361
    %v1363 = vrot.slane %v1362, 1
    %v1364 = vadd.f32 %v1362, %v1363
    %v1365 = vadd.f32 %v1090, %v1095
    %v1366 = vrot.slane %v1365, 4
    %v1367 = vadd.f32 %v1365, %v1366
    %v1368 = vrot.slane %v1367, 2
    %v1369 = vadd.f32 %v1367, %v1368
    %v1370 = vrot.slane %v1369, 1
    %v1371 = vadd.f32 %v1369, %v1370
    %v1372 = vadd.f32 %v1091, %v1096
    %v1373 = vrot.slane %v1372, 4
    %v1374 = vadd.f32 %v1372, %v1373
    %v1375 = vrot.slane %v1374, 2
    %v1376 = vadd.f32 %v1374, %v1375
    %v1377 = vrot.slane %v1376, 1
    %v1378 = vadd.f32 %v1376, %v1377
    %v1379 = vadd.f32 %v1092, %v1097
    %v1380 = vrot.slane %v1379, 4
    %v1381 = vadd.f32 %v1379, %v1380
    %v1382 = vrot.slane %v1381, 2
    %v1383 = vadd.f32 %v1381, %v1382
    %v1384 = vrot.slane %v1383, 1
    %v1385 = vadd.f32 %v1383, %v1384
    %v1386 = vsel %vm198, %v1093, 0.0
    %v1387 = vsel %vm198, %v1098, 0.0
    %v1388 = vadd.f32 %v1386, %v1387
    %v1389 = vrot.slane %v1388, 4
    %v1390 = vadd.f32 %v1388, %v1389
    %v1391 = vrot.slane %v1390, 2
    %v1392 = vadd.f32 %v1390, %v1391
    %v1393 = vrot.slane %v1392, 1
    %v1394 = vadd.f32 %v1392, %v1393
    %v1395 = vadd.f32 %v931, %v1105
    %v1396 = vadd.f32 %v932, %v1112
    %v1397 = vadd.f32 %v933, %v1119
    %v1398 = vadd.f32 %v934, %v1126
    %v1399 = vadd.f32 %v935, %v1135
    %v1400 = vadd.f32 %v936, %v1142
    %v1401 = vadd.f32 %v937, %v1149
    %v1402 = vadd.f32 %v938, %v1156
    %v1403 = vadd.f32 %v939, %v1163
    %v1404 = vadd.f32 %v940, %v1172
    %v1405 = vadd.f32 %v941, %v1179
    %v1406 = vadd.f32 %v942, %v1186
    %v1407 = vadd.f32 %v943, %v1193
    %v1408 = vadd.f32 %v944, %v1200
    %v1409 = vadd.f32 %v945, %v1209
    %v1410 = vadd.f32 %v946, %v1216
    %v1411 = vadd.f32 %v947, %v1223
    %v1412 = vadd.f32 %v948, %v1230
    %v1413 = vadd.f32 %v949, %v1237
    %v1414 = vadd.f32 %v950, %v1246
    %v1415 = vadd.f32 %v951, %v1253
    %v1416 = vadd.f32 %v952, %v1260
    %v1417 = vadd.f32 %v953, %v1267
    %v1418 = vadd.f32 %v954, %v1274
    %v1419 = vadd.f32 %v955, %v1283
    %v1420 = vadd.f32 %v956, %v1290
    %v1421 = vadd.f32 %v957, %v1297
    %v1422 = vadd.f32 %v958, %v1304
    %v1423 = vadd.f32 %v959, %v1311
    %v1424 = vadd.f32 %v960, %v1320
    %v1425 = vadd.f32 %v961, %v1327
    %v1426 = vadd.f32 %v962, %v1334
    %v1427 = vadd.f32 %v963, %v1341
    %v1428 = vadd.f32 %v964, %v1348
    %v1429 = vadd.f32 %v965, %v1357
    %v1430 = vadd.f32 %v966, %v1364
    %v1431 = vadd.f32 %v967, %v1371
    %v1432 = vadd.f32 %v968, %v1378
    %v1433 = vadd.f32 %v969, %v1385
    %v1434 = vadd.f32 %v970, %v1394
    %v1435 = vld [vmem:[%s0 + $0x78] sm:$0x11]
    %v1436 = vld [vmem:[%s0 + $0x80] sm:$0x11]
    %v1437 = vld [vmem:[%s0 + $0x88] sm:$0x1]
    %v1438 = vld [vmem:[%s0 + $0x104] sm:$0x11]
    %v1439 = vld [vmem:[%s0 + $0x10c] sm:$0x11]
    %v1440 = vld [vmem:[%s0 + $0x114] sm:$0x1]
    %v1441 = vld [vmem:[%s0 + $0x190] sm:$0x11]
    %v1442 = vld [vmem:[%s0 + $0x198] sm:$0x11]
    %v1443 = vld [vmem:[%s0 + $0x1a0] sm:$0x1]
    %v1444 = vld [vmem:[%s0 + $0x21c] sm:$0x11]
    %v1445 = vld [vmem:[%s0 + $0x224] sm:$0x11]
    %v1446 = vld [vmem:[%s0 + $0x22c] sm:$0x1]
    %v1447 = vld [vmem:[%s0 + $0x2a8] sm:$0x11]
    %v1448 = vld [vmem:[%s0 + $0x2b0] sm:$0x11]
    %v1449 = vld [vmem:[%s0 + $0x2b8] sm:$0x1]
    %v1450 = vld [vmem:[%s0 + $0x334] sm:$0x11]
    %v1451 = vld [vmem:[%s0 + $0x33c] sm:$0x11]
    %v1452 = vld [vmem:[%s0 + $0x344] sm:$0x1]
    %v1453 = vld [vmem:[%s0 + $0x3c0] sm:$0x11]
    %v1454 = vld [vmem:[%s0 + $0x3c8] sm:$0x11]
    %v1455 = vld [vmem:[%s0 + $0x3d0] sm:$0x1]
    %v1456 = vld [vmem:[%s0 + $0x44c] sm:$0x11]
    %v1457 = vld [vmem:[%s0 + $0x454] sm:$0x11]
    %v1458 = vld [vmem:[%s0 + $0x45c] sm:$0x1]
    %v1459 = vunpack.c.l.bf16 %v1435
    %v1460 = vunpack.c.h.bf16 %v1435
    %v1461 = vunpack.c.l.bf16 %v1436
    %v1462 = vunpack.c.h.bf16 %v1436
    %v1463 = vunpack.c.l.bf16 %v1437
    %v1464 = vunpack.c.l.bf16 %v1438
    %v1465 = vunpack.c.h.bf16 %v1438
    %v1466 = vunpack.c.l.bf16 %v1439
    %v1467 = vunpack.c.h.bf16 %v1439
    %v1468 = vunpack.c.l.bf16 %v1440
    %v1469 = vunpack.c.l.bf16 %v1441
    %v1470 = vunpack.c.h.bf16 %v1441
    %v1471 = vunpack.c.l.bf16 %v1442
    %v1472 = vunpack.c.h.bf16 %v1442
    %v1473 = vunpack.c.l.bf16 %v1443
    %v1474 = vunpack.c.l.bf16 %v1444
    %v1475 = vunpack.c.h.bf16 %v1444
    %v1476 = vunpack.c.l.bf16 %v1445
    %v1477 = vunpack.c.h.bf16 %v1445
    %v1478 = vunpack.c.l.bf16 %v1446
    %v1479 = vunpack.c.l.bf16 %v1447
    %v1480 = vunpack.c.h.bf16 %v1447
    %v1481 = vunpack.c.l.bf16 %v1448
    %v1482 = vunpack.c.h.bf16 %v1448
    %v1483 = vunpack.c.l.bf16 %v1449
    %v1484 = vunpack.c.l.bf16 %v1450
    %v1485 = vunpack.c.h.bf16 %v1450
    %v1486 = vunpack.c.l.bf16 %v1451
    %v1487 = vunpack.c.h.bf16 %v1451
    %v1488 = vunpack.c.l.bf16 %v1452
    %v1489 = vunpack.c.l.bf16 %v1453
    %v1490 = vunpack.c.h.bf16 %v1453
    %v1491 = vunpack.c.l.bf16 %v1454
    %v1492 = vunpack.c.h.bf16 %v1454
    %v1493 = vunpack.c.l.bf16 %v1455
    %v1494 = vunpack.c.l.bf16 %v1456
    %v1495 = vunpack.c.h.bf16 %v1456
    %v1496 = vunpack.c.l.bf16 %v1457
    %v1497 = vunpack.c.h.bf16 %v1457
    %v1498 = vunpack.c.l.bf16 %v1458
    %v1499 = vadd.f32 %v1459, 0.0
    %v1500 = vadd.f32 %v1460, 0.0
    %v1501 = vadd.f32 %v1461, 0.0
    %v1502 = vadd.f32 %v1462, 0.0
    %v1503 = vadd.f32 %v1463, 0.0
    %v1504 = vadd.f32 %v1464, 0.0
    %v1505 = vadd.f32 %v1465, 0.0
    %v1506 = vadd.f32 %v1466, 0.0
    %v1507 = vadd.f32 %v1467, 0.0
    %v1508 = vadd.f32 %v1468, 0.0
    %v1509 = vadd.f32 %v1469, 0.0
    %v1510 = vadd.f32 %v1470, 0.0
    %v1511 = vadd.f32 %v1471, 0.0
    %v1512 = vadd.f32 %v1472, 0.0
    %v1513 = vadd.f32 %v1473, 0.0
    %v1514 = vadd.f32 %v1474, 0.0
    %v1515 = vadd.f32 %v1475, 0.0
    %v1516 = vadd.f32 %v1476, 0.0
    %v1517 = vadd.f32 %v1477, 0.0
    %v1518 = vadd.f32 %v1478, 0.0
    %v1519 = vadd.f32 %v1479, 0.0
    %v1520 = vadd.f32 %v1480, 0.0
    %v1521 = vadd.f32 %v1481, 0.0
    %v1522 = vadd.f32 %v1482, 0.0
    %v1523 = vadd.f32 %v1483, 0.0
    %v1524 = vadd.f32 %v1484, 0.0
    %v1525 = vadd.f32 %v1485, 0.0
    %v1526 = vadd.f32 %v1486, 0.0
    %v1527 = vadd.f32 %v1487, 0.0
    %v1528 = vadd.f32 %v1488, 0.0
    %v1529 = vadd.f32 %v1489, 0.0
    %v1530 = vadd.f32 %v1490, 0.0
    %v1531 = vadd.f32 %v1491, 0.0
    %v1532 = vadd.f32 %v1492, 0.0
    %v1533 = vadd.f32 %v1493, 0.0
    %v1534 = vadd.f32 %v1494, 0.0
    %v1535 = vadd.f32 %v1495, 0.0
    %v1536 = vadd.f32 %v1496, 0.0
    %v1537 = vadd.f32 %v1497, 0.0
    %v1538 = vadd.f32 %v1498, 0.0
    %v1539 = vadd.f32 %v1395, %v1499
    %v1540 = vadd.f32 %v1396, %v1500
    %v1541 = vadd.f32 %v1397, %v1501
    %v1542 = vadd.f32 %v1398, %v1502
    %v1543 = vadd.f32 %v1399, %v1503
    %v1544 = vadd.f32 %v1400, %v1504
    %v1545 = vadd.f32 %v1401, %v1505
    %v1546 = vadd.f32 %v1402, %v1506
    %v1547 = vadd.f32 %v1403, %v1507
    %v1548 = vadd.f32 %v1404, %v1508
    %v1549 = vadd.f32 %v1405, %v1509
    %v1550 = vadd.f32 %v1406, %v1510
    %v1551 = vadd.f32 %v1407, %v1511
    %v1552 = vadd.f32 %v1408, %v1512
    %v1553 = vadd.f32 %v1409, %v1513
    %v1554 = vadd.f32 %v1410, %v1514
    %v1555 = vadd.f32 %v1411, %v1515
    %v1556 = vadd.f32 %v1412, %v1516
    %v1557 = vadd.f32 %v1413, %v1517
    %v1558 = vadd.f32 %v1414, %v1518
    %v1559 = vadd.f32 %v1415, %v1519
    %v1560 = vadd.f32 %v1416, %v1520
    %v1561 = vadd.f32 %v1417, %v1521
    %v1562 = vadd.f32 %v1418, %v1522
    %v1563 = vadd.f32 %v1419, %v1523
    %v1564 = vadd.f32 %v1420, %v1524
    %v1565 = vadd.f32 %v1421, %v1525
    %v1566 = vadd.f32 %v1422, %v1526
    %v1567 = vadd.f32 %v1423, %v1527
    %v1568 = vadd.f32 %v1424, %v1528
    %v1569 = vadd.f32 %v1425, %v1529
    %v1570 = vadd.f32 %v1426, %v1530
    %v1571 = vadd.f32 %v1427, %v1531
    %v1572 = vadd.f32 %v1428, %v1532
    %v1573 = vadd.f32 %v1429, %v1533
    %v1574 = vadd.f32 %v1430, %v1534
    %v1575 = vadd.f32 %v1431, %v1535
    %v1576 = vadd.f32 %v1432, %v1536
    %v1577 = vadd.f32 %v1433, %v1537
    %v1578 = vadd.f32 %v1434, %v1538
    %v1579 = vmul.f32 %v1539, 0.020408163
    %v1580 = vmul.f32 %v1540, 0.020408163
    %v1581 = vmul.f32 %v1541, 0.020408163
    %v1582 = vmul.f32 %v1542, 0.020408163
    %v1583 = vmul.f32 %v1543, 0.020408163
    %v1584 = vmul.f32 %v1544, 0.020408163
    %v1585 = vmul.f32 %v1545, 0.020408163
    %v1586 = vmul.f32 %v1546, 0.020408163
    %v1587 = vmul.f32 %v1547, 0.020408163
    %v1588 = vmul.f32 %v1548, 0.020408163
    %v1589 = vmul.f32 %v1549, 0.020408163
    %v1590 = vmul.f32 %v1550, 0.020408163
    %v1591 = vmul.f32 %v1551, 0.020408163
    %v1592 = vmul.f32 %v1552, 0.020408163
    %v1593 = vmul.f32 %v1553, 0.020408163
    %v1594 = vmul.f32 %v1554, 0.020408163
    %v1595 = vmul.f32 %v1555, 0.020408163
    %v1596 = vmul.f32 %v1556, 0.020408163
    %v1597 = vmul.f32 %v1557, 0.020408163
    %v1598 = vmul.f32 %v1558, 0.020408163
    %v1599 = vmul.f32 %v1559, 0.020408163
    %v1600 = vmul.f32 %v1560, 0.020408163
    %v1601 = vmul.f32 %v1561, 0.020408163
    %v1602 = vmul.f32 %v1562, 0.020408163
    %v1603 = vmul.f32 %v1563, 0.020408163
    %v1604 = vmul.f32 %v1564, 0.020408163
    %v1605 = vmul.f32 %v1565, 0.020408163
    %v1606 = vmul.f32 %v1566, 0.020408163
    %v1607 = vmul.f32 %v1567, 0.020408163
    %v1608 = vmul.f32 %v1568, 0.020408163
    %v1609 = vmul.f32 %v1569, 0.020408163
    %v1610 = vmul.f32 %v1570, 0.020408163
    %v1611 = vmul.f32 %v1571, 0.020408163
    %v1612 = vmul.f32 %v1572, 0.020408163
    %v1613 = vmul.f32 %v1573, 0.020408163
    %v1614 = vmul.f32 %v1574, 0.020408163
    %v1615 = vmul.f32 %v1575, 0.020408163
    %v1616 = vmul.f32 %v1576, 0.020408163
    %v1617 = vmul.f32 %v1577, 0.020408163
    %v1618 = vmul.f32 %v1578, 0.020408163
    %v1619 = vld [vmem:[%s1] sm:$0xff]
    %v1620 = vld [vmem:[%s1 + $0x8] sm:$0xff]
    %v1621 = vld [vmem:[%s1 + $0x10] sm:$0xf]
    %v1622 = vld [vmem:[%s1 + $0x14] sm:$0xff]
    %v1623 = vld [vmem:[%s1 + $0x1c] sm:$0xff]
    %v1624 = vld [vmem:[%s1 + $0x24] sm:$0xf]
    %v1625 = vld [vmem:[%s1 + $0x8c] sm:$0xff]
    %v1626 = vld [vmem:[%s1 + $0x94] sm:$0xff]
    %v1627 = vld [vmem:[%s1 + $0x9c] sm:$0xf]
    %v1628 = vld [vmem:[%s1 + $0xa0] sm:$0xff]
    %v1629 = vld [vmem:[%s1 + $0xa8] sm:$0xff]
    %v1630 = vld [vmem:[%s1 + $0xb0] sm:$0xf]
    %v1631 = vld [vmem:[%s1 + $0x118] sm:$0xff]
    %v1632 = vld [vmem:[%s1 + $0x120] sm:$0xff]
    %v1633 = vld [vmem:[%s1 + $0x128] sm:$0xf]
    %v1634 = vld [vmem:[%s1 + $0x12c] sm:$0xff]
    %v1635 = vld [vmem:[%s1 + $0x134] sm:$0xff]
    %v1636 = vld [vmem:[%s1 + $0x13c] sm:$0xf]
    %v1637 = vld [vmem:[%s1 + $0x1a4] sm:$0xff]
    %v1638 = vld [vmem:[%s1 + $0x1ac] sm:$0xff]
    %v1639 = vld [vmem:[%s1 + $0x1b4] sm:$0xf]
    %v1640 = vld [vmem:[%s1 + $0x1b8] sm:$0xff]
    %v1641 = vld [vmem:[%s1 + $0x1c0] sm:$0xff]
    %v1642 = vld [vmem:[%s1 + $0x1c8] sm:$0xf]
    %v1643 = vld [vmem:[%s1 + $0x230] sm:$0xff]
    %v1644 = vld [vmem:[%s1 + $0x238] sm:$0xff]
    %v1645 = vld [vmem:[%s1 + $0x240] sm:$0xf]
    %v1646 = vld [vmem:[%s1 + $0x244] sm:$0xff]
    %v1647 = vld [vmem:[%s1 + $0x24c] sm:$0xff]
    %v1648 = vld [vmem:[%s1 + $0x254] sm:$0xf]
    %v1649 = vld [vmem:[%s1 + $0x2bc] sm:$0xff]
    %v1650 = vld [vmem:[%s1 + $0x2c4] sm:$0xff]
    %v1651 = vld [vmem:[%s1 + $0x2cc] sm:$0xf]
    %v1652 = vld [vmem:[%s1 + $0x2d0] sm:$0xff]
    %v1653 = vld [vmem:[%s1 + $0x2d8] sm:$0xff]
    %v1654 = vld [vmem:[%s1 + $0x2e0] sm:$0xf]
    %v1655 = vld [vmem:[%s1 + $0x348] sm:$0xff]
    %v1656 = vld [vmem:[%s1 + $0x350] sm:$0xff]
    %v1657 = vld [vmem:[%s1 + $0x358] sm:$0xf]
    %v1658 = vld [vmem:[%s1 + $0x35c] sm:$0xff]
    %v1659 = vld [vmem:[%s1 + $0x364] sm:$0xff]
    %v1660 = vld [vmem:[%s1 + $0x36c] sm:$0xf]
    %v1661 = vld [vmem:[%s1 + $0x3d4] sm:$0xff]
    %v1662 = vld [vmem:[%s1 + $0x3dc] sm:$0xff]
    %v1663 = vld [vmem:[%s1 + $0x3e4] sm:$0xf]
    %v1664 = vld [vmem:[%s1 + $0x3e8] sm:$0xff]
    %v1665 = vld [vmem:[%s1 + $0x3f0] sm:$0xff]
    %v1666 = vld [vmem:[%s1 + $0x3f8] sm:$0xf]
    %v1667 = vunpack.c.l.bf16 %v1619
    %v1668 = vunpack.c.h.bf16 %v1619
    %v1669 = vunpack.c.l.bf16 %v1620
    %v1670 = vunpack.c.h.bf16 %v1620
    %v1671 = vunpack.c.l.bf16 %v1621
    %v1672 = vunpack.c.l.bf16 %v1622
    %v1673 = vunpack.c.h.bf16 %v1622
    %v1674 = vunpack.c.l.bf16 %v1623
    %v1675 = vunpack.c.h.bf16 %v1623
    %v1676 = vunpack.c.l.bf16 %v1624
    %v1677 = vunpack.c.l.bf16 %v1625
    %v1678 = vunpack.c.h.bf16 %v1625
    %v1679 = vunpack.c.l.bf16 %v1626
    %v1680 = vunpack.c.h.bf16 %v1626
    %v1681 = vunpack.c.l.bf16 %v1627
    %v1682 = vunpack.c.l.bf16 %v1628
    %v1683 = vunpack.c.h.bf16 %v1628
    %v1684 = vunpack.c.l.bf16 %v1629
    %v1685 = vunpack.c.h.bf16 %v1629
    %v1686 = vunpack.c.l.bf16 %v1630
    %v1687 = vunpack.c.l.bf16 %v1631
    %v1688 = vunpack.c.h.bf16 %v1631
    %v1689 = vunpack.c.l.bf16 %v1632
    %v1690 = vunpack.c.h.bf16 %v1632
    %v1691 = vunpack.c.l.bf16 %v1633
    %v1692 = vunpack.c.l.bf16 %v1634
    %v1693 = vunpack.c.h.bf16 %v1634
    %v1694 = vunpack.c.l.bf16 %v1635
    %v1695 = vunpack.c.h.bf16 %v1635
    %v1696 = vunpack.c.l.bf16 %v1636
    %v1697 = vunpack.c.l.bf16 %v1637
    %v1698 = vunpack.c.h.bf16 %v1637
    %v1699 = vunpack.c.l.bf16 %v1638
    %v1700 = vunpack.c.h.bf16 %v1638
    %v1701 = vunpack.c.l.bf16 %v1639
    %v1702 = vunpack.c.l.bf16 %v1640
    %v1703 = vunpack.c.h.bf16 %v1640
    %v1704 = vunpack.c.l.bf16 %v1641
    %v1705 = vunpack.c.h.bf16 %v1641
    %v1706 = vunpack.c.l.bf16 %v1642
    %v1707 = vunpack.c.l.bf16 %v1643
    %v1708 = vunpack.c.h.bf16 %v1643
    %v1709 = vunpack.c.l.bf16 %v1644
    %v1710 = vunpack.c.h.bf16 %v1644
    %v1711 = vunpack.c.l.bf16 %v1645
    %v1712 = vunpack.c.l.bf16 %v1646
    %v1713 = vunpack.c.h.bf16 %v1646
    %v1714 = vunpack.c.l.bf16 %v1647
    %v1715 = vunpack.c.h.bf16 %v1647
    %v1716 = vunpack.c.l.bf16 %v1648
    %v1717 = vunpack.c.l.bf16 %v1649
    %v1718 = vunpack.c.h.bf16 %v1649
    %v1719 = vunpack.c.l.bf16 %v1650
    %v1720 = vunpack.c.h.bf16 %v1650
    %v1721 = vunpack.c.l.bf16 %v1651
    %v1722 = vunpack.c.l.bf16 %v1652
    %v1723 = vunpack.c.h.bf16 %v1652
    %v1724 = vunpack.c.l.bf16 %v1653
    %v1725 = vunpack.c.h.bf16 %v1653
    %v1726 = vunpack.c.l.bf16 %v1654
    %v1727 = vunpack.c.l.bf16 %v1655
    %v1728 = vunpack.c.h.bf16 %v1655
    %v1729 = vunpack.c.l.bf16 %v1656
    %v1730 = vunpack.c.h.bf16 %v1656
    %v1731 = vunpack.c.l.bf16 %v1657
    %v1732 = vunpack.c.l.bf16 %v1658
    %v1733 = vunpack.c.h.bf16 %v1658
    %v1734 = vunpack.c.l.bf16 %v1659
    %v1735 = vunpack.c.h.bf16 %v1659
    %v1736 = vunpack.c.l.bf16 %v1660
    %v1737 = vunpack.c.l.bf16 %v1661
    %v1738 = vunpack.c.h.bf16 %v1661
    %v1739 = vunpack.c.l.bf16 %v1662
    %v1740 = vunpack.c.h.bf16 %v1662
    %v1741 = vunpack.c.l.bf16 %v1663
    %v1742 = vunpack.c.l.bf16 %v1664
    %v1743 = vunpack.c.h.bf16 %v1664
    %v1744 = vunpack.c.l.bf16 %v1665
    %v1745 = vunpack.c.h.bf16 %v1665
    %v1746 = vunpack.c.l.bf16 %v1666
    %v1747 = vadd.f32 %v1667, %v1672
    %v1748 = vrot.slane %v1747, 4
    %v1749 = vadd.f32 %v1747, %v1748
    %v1750 = vrot.slane %v1749, 2
    %v1751 = vadd.f32 %v1749, %v1750
    %v1752 = vrot.slane %v1751, 1
    %v1753 = vadd.f32 %v1751, %v1752
    %v1754 = vadd.f32 %v1668, %v1673
    %v1755 = vrot.slane %v1754, 4
    %v1756 = vadd.f32 %v1754, %v1755
    %v1757 = vrot.slane %v1756, 2
    %v1758 = vadd.f32 %v1756, %v1757
    %v1759 = vrot.slane %v1758, 1
    %v1760 = vadd.f32 %v1758, %v1759
    %v1761 = vadd.f32 %v1669, %v1674
    %v1762 = vrot.slane %v1761, 4
    %v1763 = vadd.f32 %v1761, %v1762
    %v1764 = vrot.slane %v1763, 2
    %v1765 = vadd.f32 %v1763, %v1764
    %v1766 = vrot.slane %v1765, 1
    %v1767 = vadd.f32 %v1765, %v1766
    %v1768 = vadd.f32 %v1670, %v1675
    %v1769 = vrot.slane %v1768, 4
    %v1770 = vadd.f32 %v1768, %v1769
    %v1771 = vrot.slane %v1770, 2
    %v1772 = vadd.f32 %v1770, %v1771
    %v1773 = vrot.slane %v1772, 1
    %v1774 = vadd.f32 %v1772, %v1773
    %v1775 = vsel %vm198, %v1671, 0.0
    %v1776 = vsel %vm198, %v1676, 0.0
    %v1777 = vadd.f32 %v1775, %v1776
    %v1778 = vrot.slane %v1777, 4
    %v1779 = vadd.f32 %v1777, %v1778
    %v1780 = vrot.slane %v1779, 2
    %v1781 = vadd.f32 %v1779, %v1780
    %v1782 = vrot.slane %v1781, 1
    %v1783 = vadd.f32 %v1781, %v1782
    %v1784 = vadd.f32 %v1677, %v1682
    %v1785 = vrot.slane %v1784, 4
    %v1786 = vadd.f32 %v1784, %v1785
    %v1787 = vrot.slane %v1786, 2
    %v1788 = vadd.f32 %v1786, %v1787
    %v1789 = vrot.slane %v1788, 1
    %v1790 = vadd.f32 %v1788, %v1789
    %v1791 = vadd.f32 %v1678, %v1683
    %v1792 = vrot.slane %v1791, 4
    %v1793 = vadd.f32 %v1791, %v1792
    %v1794 = vrot.slane %v1793, 2
    %v1795 = vadd.f32 %v1793, %v1794
    %v1796 = vrot.slane %v1795, 1
    %v1797 = vadd.f32 %v1795, %v1796
    %v1798 = vadd.f32 %v1679, %v1684
    %v1799 = vrot.slane %v1798, 4
    %v1800 = vadd.f32 %v1798, %v1799
    %v1801 = vrot.slane %v1800, 2
    %v1802 = vadd.f32 %v1800, %v1801
    %v1803 = vrot.slane %v1802, 1
    %v1804 = vadd.f32 %v1802, %v1803
    %v1805 = vadd.f32 %v1680, %v1685
    %v1806 = vrot.slane %v1805, 4
    %v1807 = vadd.f32 %v1805, %v1806
    %v1808 = vrot.slane %v1807, 2
    %v1809 = vadd.f32 %v1807, %v1808
    %v1810 = vrot.slane %v1809, 1
    %v1811 = vadd.f32 %v1809, %v1810
    %v1812 = vsel %vm198, %v1681, 0.0
    %v1813 = vsel %vm198, %v1686, 0.0
    %v1814 = vadd.f32 %v1812, %v1813
    %v1815 = vrot.slane %v1814, 4
    %v1816 = vadd.f32 %v1814, %v1815
    %v1817 = vrot.slane %v1816, 2
    %v1818 = vadd.f32 %v1816, %v1817
    %v1819 = vrot.slane %v1818, 1
    %v1820 = vadd.f32 %v1818, %v1819
    %v1821 = vadd.f32 %v1687, %v1692
    %v1822 = vrot.slane %v1821, 4
    %v1823 = vadd.f32 %v1821, %v1822
    %v1824 = vrot.slane %v1823, 2
    %v1825 = vadd.f32 %v1823, %v1824
    %v1826 = vrot.slane %v1825, 1
    %v1827 = vadd.f32 %v1825, %v1826
    %v1828 = vadd.f32 %v1688, %v1693
    %v1829 = vrot.slane %v1828, 4
    %v1830 = vadd.f32 %v1828, %v1829
    %v1831 = vrot.slane %v1830, 2
    %v1832 = vadd.f32 %v1830, %v1831
    %v1833 = vrot.slane %v1832, 1
    %v1834 = vadd.f32 %v1832, %v1833
    %v1835 = vadd.f32 %v1689, %v1694
    %v1836 = vrot.slane %v1835, 4
    %v1837 = vadd.f32 %v1835, %v1836
    %v1838 = vrot.slane %v1837, 2
    %v1839 = vadd.f32 %v1837, %v1838
    %v1840 = vrot.slane %v1839, 1
    %v1841 = vadd.f32 %v1839, %v1840
    %v1842 = vadd.f32 %v1690, %v1695
    %v1843 = vrot.slane %v1842, 4
    %v1844 = vadd.f32 %v1842, %v1843
    %v1845 = vrot.slane %v1844, 2
    %v1846 = vadd.f32 %v1844, %v1845
    %v1847 = vrot.slane %v1846, 1
    %v1848 = vadd.f32 %v1846, %v1847
    %v1849 = vsel %vm198, %v1691, 0.0
    %v1850 = vsel %vm198, %v1696, 0.0
    %v1851 = vadd.f32 %v1849, %v1850
    %v1852 = vrot.slane %v1851, 4
    %v1853 = vadd.f32 %v1851, %v1852
    %v1854 = vrot.slane %v1853, 2
    %v1855 = vadd.f32 %v1853, %v1854
    %v1856 = vrot.slane %v1855, 1
    %v1857 = vadd.f32 %v1855, %v1856
    %v1858 = vadd.f32 %v1697, %v1702
    %v1859 = vrot.slane %v1858, 4
    %v1860 = vadd.f32 %v1858, %v1859
    %v1861 = vrot.slane %v1860, 2
    %v1862 = vadd.f32 %v1860, %v1861
    %v1863 = vrot.slane %v1862, 1
    %v1864 = vadd.f32 %v1862, %v1863
    %v1865 = vadd.f32 %v1698, %v1703
    %v1866 = vrot.slane %v1865, 4
    %v1867 = vadd.f32 %v1865, %v1866
    %v1868 = vrot.slane %v1867, 2
    %v1869 = vadd.f32 %v1867, %v1868
    %v1870 = vrot.slane %v1869, 1
    %v1871 = vadd.f32 %v1869, %v1870
    %v1872 = vadd.f32 %v1699, %v1704
    %v1873 = vrot.slane %v1872, 4
    %v1874 = vadd.f32 %v1872, %v1873
    %v1875 = vrot.slane %v1874, 2
    %v1876 = vadd.f32 %v1874, %v1875
    %v1877 = vrot.slane %v1876, 1
    %v1878 = vadd.f32 %v1876, %v1877
    %v1879 = vadd.f32 %v1700, %v1705
    %v1880 = vrot.slane %v1879, 4
    %v1881 = vadd.f32 %v1879, %v1880
    %v1882 = vrot.slane %v1881, 2
    %v1883 = vadd.f32 %v1881, %v1882
    %v1884 = vrot.slane %v1883, 1
    %v1885 = vadd.f32 %v1883, %v1884
    %v1886 = vsel %vm198, %v1701, 0.0
    %v1887 = vsel %vm198, %v1706, 0.0
    %v1888 = vadd.f32 %v1886, %v1887
    %v1889 = vrot.slane %v1888, 4
    %v1890 = vadd.f32 %v1888, %v1889
    %v1891 = vrot.slane %v1890, 2
    %v1892 = vadd.f32 %v1890, %v1891
    %v1893 = vrot.slane %v1892, 1
    %v1894 = vadd.f32 %v1892, %v1893
    %v1895 = vadd.f32 %v1707, %v1712
    %v1896 = vrot.slane %v1895, 4
    %v1897 = vadd.f32 %v1895, %v1896
    %v1898 = vrot.slane %v1897, 2
    %v1899 = vadd.f32 %v1897, %v1898
    %v1900 = vrot.slane %v1899, 1
    %v1901 = vadd.f32 %v1899, %v1900
    %v1902 = vadd.f32 %v1708, %v1713
    %v1903 = vrot.slane %v1902, 4
    %v1904 = vadd.f32 %v1902, %v1903
    %v1905 = vrot.slane %v1904, 2
    %v1906 = vadd.f32 %v1904, %v1905
    %v1907 = vrot.slane %v1906, 1
    %v1908 = vadd.f32 %v1906, %v1907
    %v1909 = vadd.f32 %v1709, %v1714
    %v1910 = vrot.slane %v1909, 4
    %v1911 = vadd.f32 %v1909, %v1910
    %v1912 = vrot.slane %v1911, 2
    %v1913 = vadd.f32 %v1911, %v1912
    %v1914 = vrot.slane %v1913, 1
    %v1915 = vadd.f32 %v1913, %v1914
    %v1916 = vadd.f32 %v1710, %v1715
    %v1917 = vrot.slane %v1916, 4
    %v1918 = vadd.f32 %v1916, %v1917
    %v1919 = vrot.slane %v1918, 2
    %v1920 = vadd.f32 %v1918, %v1919
    %v1921 = vrot.slane %v1920, 1
    %v1922 = vadd.f32 %v1920, %v1921
    %v1923 = vsel %vm198, %v1711, 0.0
    %v1924 = vsel %vm198, %v1716, 0.0
    %v1925 = vadd.f32 %v1923, %v1924
    %v1926 = vrot.slane %v1925, 4
    %v1927 = vadd.f32 %v1925, %v1926
    %v1928 = vrot.slane %v1927, 2
    %v1929 = vadd.f32 %v1927, %v1928
    %v1930 = vrot.slane %v1929, 1
    %v1931 = vadd.f32 %v1929, %v1930
    %v1932 = vadd.f32 %v1717, %v1722
    %v1933 = vrot.slane %v1932, 4
    %v1934 = vadd.f32 %v1932, %v1933
    %v1935 = vrot.slane %v1934, 2
    %v1936 = vadd.f32 %v1934, %v1935
    %v1937 = vrot.slane %v1936, 1
    %v1938 = vadd.f32 %v1936, %v1937
    %v1939 = vadd.f32 %v1718, %v1723
    %v1940 = vrot.slane %v1939, 4
    %v1941 = vadd.f32 %v1939, %v1940
    %v1942 = vrot.slane %v1941, 2
    %v1943 = vadd.f32 %v1941, %v1942
    %v1944 = vrot.slane %v1943, 1
    %v1945 = vadd.f32 %v1943, %v1944
    %v1946 = vadd.f32 %v1719, %v1724
    %v1947 = vrot.slane %v1946, 4
    %v1948 = vadd.f32 %v1946, %v1947
    %v1949 = vrot.slane %v1948, 2
    %v1950 = vadd.f32 %v1948, %v1949
    %v1951 = vrot.slane %v1950, 1
    %v1952 = vadd.f32 %v1950, %v1951
    %v1953 = vadd.f32 %v1720, %v1725
    %v1954 = vrot.slane %v1953, 4
    %v1955 = vadd.f32 %v1953, %v1954
    %v1956 = vrot.slane %v1955, 2
    %v1957 = vadd.f32 %v1955, %v1956
    %v1958 = vrot.slane %v1957, 1
    %v1959 = vadd.f32 %v1957, %v1958
    %v1960 = vsel %vm198, %v1721, 0.0
    %v1961 = vsel %vm198, %v1726, 0.0
    %v1962 = vadd.f32 %v1960, %v1961
    %v1963 = vrot.slane %v1962, 4
    %v1964 = vadd.f32 %v1962, %v1963
    %v1965 = vrot.slane %v1964, 2
    %v1966 = vadd.f32 %v1964, %v1965
    %v1967 = vrot.slane %v1966, 1
    %v1968 = vadd.f32 %v1966, %v1967
    %v1969 = vadd.f32 %v1727, %v1732
    %v1970 = vrot.slane %v1969, 4
    %v1971 = vadd.f32 %v1969, %v1970
    %v1972 = vrot.slane %v1971, 2
    %v1973 = vadd.f32 %v1971, %v1972
    %v1974 = vrot.slane %v1973, 1
    %v1975 = vadd.f32 %v1973, %v1974
    %v1976 = vadd.f32 %v1728, %v1733
    %v1977 = vrot.slane %v1976, 4
    %v1978 = vadd.f32 %v1976, %v1977
    %v1979 = vrot.slane %v1978, 2
    %v1980 = vadd.f32 %v1978, %v1979
    %v1981 = vrot.slane %v1980, 1
    %v1982 = vadd.f32 %v1980, %v1981
    %v1983 = vadd.f32 %v1729, %v1734
    %v1984 = vrot.slane %v1983, 4
    %v1985 = vadd.f32 %v1983, %v1984
    %v1986 = vrot.slane %v1985, 2
    %v1987 = vadd.f32 %v1985, %v1986
    %v1988 = vrot.slane %v1987, 1
    %v1989 = vadd.f32 %v1987, %v1988
    %v1990 = vadd.f32 %v1730, %v1735
    %v1991 = vrot.slane %v1990, 4
    %v1992 = vadd.f32 %v1990, %v1991
    %v1993 = vrot.slane %v1992, 2
    %v1994 = vadd.f32 %v1992, %v1993
    %v1995 = vrot.slane %v1994, 1
    %v1996 = vadd.f32 %v1994, %v1995
    %v1997 = vsel %vm198, %v1731, 0.0
    %v1998 = vsel %vm198, %v1736, 0.0
    %v1999 = vadd.f32 %v1997, %v1998
    %v2000 = vrot.slane %v1999, 4
    %v2001 = vadd.f32 %v1999, %v2000
    %v2002 = vrot.slane %v2001, 2
    %v2003 = vadd.f32 %v2001, %v2002
    %v2004 = vrot.slane %v2003, 1
    %v2005 = vadd.f32 %v2003, %v2004
    %v2006 = vadd.f32 %v1737, %v1742
    %v2007 = vrot.slane %v2006, 4
    %v2008 = vadd.f32 %v2006, %v2007
    %v2009 = vrot.slane %v2008, 2
    %v2010 = vadd.f32 %v2008, %v2009
    %v2011 = vrot.slane %v2010, 1
    %v2012 = vadd.f32 %v2010, %v2011
    %v2013 = vadd.f32 %v1738, %v1743
    %v2014 = vrot.slane %v2013, 4
    %v2015 = vadd.f32 %v2013, %v2014
    %v2016 = vrot.slane %v2015, 2
    %v2017 = vadd.f32 %v2015, %v2016
    %v2018 = vrot.slane %v2017, 1
    %v2019 = vadd.f32 %v2017, %v2018
    %v2020 = vadd.f32 %v1739, %v1744
    %v2021 = vrot.slane %v2020, 4
    %v2022 = vadd.f32 %v2020, %v2021
    %v2023 = vrot.slane %v2022, 2
    %v2024 = vadd.f32 %v2022, %v2023
    %v2025 = vrot.slane %v2024, 1
    %v2026 = vadd.f32 %v2024, %v2025
    %v2027 = vadd.f32 %v1740, %v1745
    %v2028 = vrot.slane %v2027, 4
    %v2029 = vadd.f32 %v2027, %v2028
    %v2030 = vrot.slane %v2029, 2
    %v2031 = vadd.f32 %v2029, %v2030
    %v2032 = vrot.slane %v2031, 1
    %v2033 = vadd.f32 %v2031, %v2032
    %v2034 = vsel %vm198, %v1741, 0.0
    %v2035 = vsel %vm198, %v1746, 0.0
    %v2036 = vadd.f32 %v2034, %v2035
    %v2037 = vrot.slane %v2036, 4
    %v2038 = vadd.f32 %v2036, %v2037
    %v2039 = vrot.slane %v2038, 2
    %v2040 = vadd.f32 %v2038, %v2039
    %v2041 = vrot.slane %v2040, 1
    %v2042 = vadd.f32 %v2040, %v2041
    %v2043 = vadd.f32 %v1753, 0.0
    %v2044 = vadd.f32 %v1760, 0.0
    %v2045 = vadd.f32 %v1767, 0.0
    %v2046 = vadd.f32 %v1774, 0.0
    %v2047 = vadd.f32 %v1783, 0.0
    %v2048 = vadd.f32 %v1790, 0.0
    %v2049 = vadd.f32 %v1797, 0.0
    %v2050 = vadd.f32 %v1804, 0.0
    %v2051 = vadd.f32 %v1811, 0.0
    %v2052 = vadd.f32 %v1820, 0.0
    %v2053 = vadd.f32 %v1827, 0.0
    %v2054 = vadd.f32 %v1834, 0.0
    %v2055 = vadd.f32 %v1841, 0.0
    %v2056 = vadd.f32 %v1848, 0.0
    %v2057 = vadd.f32 %v1857, 0.0
    %v2058 = vadd.f32 %v1864, 0.0
    %v2059 = vadd.f32 %v1871, 0.0
    %v2060 = vadd.f32 %v1878, 0.0
    %v2061 = vadd.f32 %v1885, 0.0
    %v2062 = vadd.f32 %v1894, 0.0
    %v2063 = vadd.f32 %v1901, 0.0
    %v2064 = vadd.f32 %v1908, 0.0
    %v2065 = vadd.f32 %v1915, 0.0
    %v2066 = vadd.f32 %v1922, 0.0
    %v2067 = vadd.f32 %v1931, 0.0
    %v2068 = vadd.f32 %v1938, 0.0
    %v2069 = vadd.f32 %v1945, 0.0
    %v2070 = vadd.f32 %v1952, 0.0
    %v2071 = vadd.f32 %v1959, 0.0
    %v2072 = vadd.f32 %v1968, 0.0
    %v2073 = vadd.f32 %v1975, 0.0
    %v2074 = vadd.f32 %v1982, 0.0
    %v2075 = vadd.f32 %v1989, 0.0
    %v2076 = vadd.f32 %v1996, 0.0
    %v2077 = vadd.f32 %v2005, 0.0
    %v2078 = vadd.f32 %v2012, 0.0
    %v2079 = vadd.f32 %v2019, 0.0
    %v2080 = vadd.f32 %v2026, 0.0
    %v2081 = vadd.f32 %v2033, 0.0
    %v2082 = vadd.f32 %v2042, 0.0
    %v2083 = vld [vmem:[%s1 + $0x28] sm:$0xff]
    %v2084 = vld [vmem:[%s1 + $0x30] sm:$0xff]
    %v2085 = vld [vmem:[%s1 + $0x38] sm:$0xf]
    %v2086 = vld [vmem:[%s1 + $0x3c] sm:$0xff]
    %v2087 = vld [vmem:[%s1 + $0x44] sm:$0xff]
    %v2088 = vld [vmem:[%s1 + $0x4c] sm:$0xf]
    %v2089 = vld [vmem:[%s1 + $0xb4] sm:$0xff]
    %v2090 = vld [vmem:[%s1 + $0xbc] sm:$0xff]
    %v2091 = vld [vmem:[%s1 + $0xc4] sm:$0xf]
    %v2092 = vld [vmem:[%s1 + $0xc8] sm:$0xff]
    %v2093 = vld [vmem:[%s1 + $0xd0] sm:$0xff]
    %v2094 = vld [vmem:[%s1 + $0xd8] sm:$0xf]
    %v2095 = vld [vmem:[%s1 + $0x140] sm:$0xff]
    %v2096 = vld [vmem:[%s1 + $0x148] sm:$0xff]
    %v2097 = vld [vmem:[%s1 + $0x150] sm:$0xf]
    %v2098 = vld [vmem:[%s1 + $0x154] sm:$0xff]
    %v2099 = vld [vmem:[%s1 + $0x15c] sm:$0xff]
    %v2100 = vld [vmem:[%s1 + $0x164] sm:$0xf]
    %v2101 = vld [vmem:[%s1 + $0x1cc] sm:$0xff]
    %v2102 = vld [vmem:[%s1 + $0x1d4] sm:$0xff]
    %v2103 = vld [vmem:[%s1 + $0x1dc] sm:$0xf]
    %v2104 = vld [vmem:[%s1 + $0x1e0] sm:$0xff]
    %v2105 = vld [vmem:[%s1 + $0x1e8] sm:$0xff]
    %v2106 = vld [vmem:[%s1 + $0x1f0] sm:$0xf]
    %v2107 = vld [vmem:[%s1 + $0x258] sm:$0xff]
    %v2108 = vld [vmem:[%s1 + $0x260] sm:$0xff]
    %v2109 = vld [vmem:[%s1 + $0x268] sm:$0xf]
    %v2110 = vld [vmem:[%s1 + $0x26c] sm:$0xff]
    %v2111 = vld [vmem:[%s1 + $0x274] sm:$0xff]
    %v2112 = vld [vmem:[%s1 + $0x27c] sm:$0xf]
    %v2113 = vld [vmem:[%s1 + $0x2e4] sm:$0xff]
    %v2114 = vld [vmem:[%s1 + $0x2ec] sm:$0xff]
    %v2115 = vld [vmem:[%s1 + $0x2f4] sm:$0xf]
    %v2116 = vld [vmem:[%s1 + $0x2f8] sm:$0xff]
    %v2117 = vld [vmem:[%s1 + $0x300] sm:$0xff]
    %v2118 = vld [vmem:[%s1 + $0x308] sm:$0xf]
    %v2119 = vld [vmem:[%s1 + $0x370] sm:$0xff]
    %v2120 = vld [vmem:[%s1 + $0x378] sm:$0xff]
    %v2121 = vld [vmem:[%s1 + $0x380] sm:$0xf]
    %v2122 = vld [vmem:[%s1 + $0x384] sm:$0xff]
    %v2123 = vld [vmem:[%s1 + $0x38c] sm:$0xff]
    %v2124 = vld [vmem:[%s1 + $0x394] sm:$0xf]
    %v2125 = vld [vmem:[%s1 + $0x3fc] sm:$0xff]
    %v2126 = vld [vmem:[%s1 + $0x404] sm:$0xff]
    %v2127 = vld [vmem:[%s1 + $0x40c] sm:$0xf]
    %v2128 = vld [vmem:[%s1 + $0x410] sm:$0xff]
    %v2129 = vld [vmem:[%s1 + $0x418] sm:$0xff]
    %v2130 = vld [vmem:[%s1 + $0x420] sm:$0xf]
    %v2131 = vunpack.c.l.bf16 %v2083
    %v2132 = vunpack.c.h.bf16 %v2083
    %v2133 = vunpack.c.l.bf16 %v2084
    %v2134 = vunpack.c.h.bf16 %v2084
    %v2135 = vunpack.c.l.bf16 %v2085
    %v2136 = vunpack.c.l.bf16 %v2086
    %v2137 = vunpack.c.h.bf16 %v2086
    %v2138 = vunpack.c.l.bf16 %v2087
    %v2139 = vunpack.c.h.bf16 %v2087
    %v2140 = vunpack.c.l.bf16 %v2088
    %v2141 = vunpack.c.l.bf16 %v2089
    %v2142 = vunpack.c.h.bf16 %v2089
    %v2143 = vunpack.c.l.bf16 %v2090
    %v2144 = vunpack.c.h.bf16 %v2090
    %v2145 = vunpack.c.l.bf16 %v2091
    %v2146 = vunpack.c.l.bf16 %v2092
    %v2147 = vunpack.c.h.bf16 %v2092
    %v2148 = vunpack.c.l.bf16 %v2093
    %v2149 = vunpack.c.h.bf16 %v2093
    %v2150 = vunpack.c.l.bf16 %v2094
    %v2151 = vunpack.c.l.bf16 %v2095
    %v2152 = vunpack.c.h.bf16 %v2095
    %v2153 = vunpack.c.l.bf16 %v2096
    %v2154 = vunpack.c.h.bf16 %v2096
    %v2155 = vunpack.c.l.bf16 %v2097
    %v2156 = vunpack.c.l.bf16 %v2098
    %v2157 = vunpack.c.h.bf16 %v2098
    %v2158 = vunpack.c.l.bf16 %v2099
    %v2159 = vunpack.c.h.bf16 %v2099
    %v2160 = vunpack.c.l.bf16 %v2100
    %v2161 = vunpack.c.l.bf16 %v2101
    %v2162 = vunpack.c.h.bf16 %v2101
    %v2163 = vunpack.c.l.bf16 %v2102
    %v2164 = vunpack.c.h.bf16 %v2102
    %v2165 = vunpack.c.l.bf16 %v2103
    %v2166 = vunpack.c.l.bf16 %v2104
    %v2167 = vunpack.c.h.bf16 %v2104
    %v2168 = vunpack.c.l.bf16 %v2105
    %v2169 = vunpack.c.h.bf16 %v2105
    %v2170 = vunpack.c.l.bf16 %v2106
    %v2171 = vunpack.c.l.bf16 %v2107
    %v2172 = vunpack.c.h.bf16 %v2107
    %v2173 = vunpack.c.l.bf16 %v2108
    %v2174 = vunpack.c.h.bf16 %v2108
    %v2175 = vunpack.c.l.bf16 %v2109
    %v2176 = vunpack.c.l.bf16 %v2110
    %v2177 = vunpack.c.h.bf16 %v2110
    %v2178 = vunpack.c.l.bf16 %v2111
    %v2179 = vunpack.c.h.bf16 %v2111
    %v2180 = vunpack.c.l.bf16 %v2112
    %v2181 = vunpack.c.l.bf16 %v2113
    %v2182 = vunpack.c.h.bf16 %v2113
    %v2183 = vunpack.c.l.bf16 %v2114
    %v2184 = vunpack.c.h.bf16 %v2114
    %v2185 = vunpack.c.l.bf16 %v2115
    %v2186 = vunpack.c.l.bf16 %v2116
    %v2187 = vunpack.c.h.bf16 %v2116
    %v2188 = vunpack.c.l.bf16 %v2117
    %v2189 = vunpack.c.h.bf16 %v2117
    %v2190 = vunpack.c.l.bf16 %v2118
    %v2191 = vunpack.c.l.bf16 %v2119
    %v2192 = vunpack.c.h.bf16 %v2119
    %v2193 = vunpack.c.l.bf16 %v2120
    %v2194 = vunpack.c.h.bf16 %v2120
    %v2195 = vunpack.c.l.bf16 %v2121
    %v2196 = vunpack.c.l.bf16 %v2122
    %v2197 = vunpack.c.h.bf16 %v2122
    %v2198 = vunpack.c.l.bf16 %v2123
    %v2199 = vunpack.c.h.bf16 %v2123
    %v2200 = vunpack.c.l.bf16 %v2124
    %v2201 = vunpack.c.l.bf16 %v2125
    %v2202 = vunpack.c.h.bf16 %v2125
    %v2203 = vunpack.c.l.bf16 %v2126
    %v2204 = vunpack.c.h.bf16 %v2126
    %v2205 = vunpack.c.l.bf16 %v2127
    %v2206 = vunpack.c.l.bf16 %v2128
    %v2207 = vunpack.c.h.bf16 %v2128
    %v2208 = vunpack.c.l.bf16 %v2129
    %v2209 = vunpack.c.h.bf16 %v2129
    %v2210 = vunpack.c.l.bf16 %v2130
    %v2211 = vadd.f32 %v2131, %v2136
    %v2212 = vrot.slane %v2211, 4
    %v2213 = vadd.f32 %v2211, %v2212
    %v2214 = vrot.slane %v2213, 2
    %v2215 = vadd.f32 %v2213, %v2214
    %v2216 = vrot.slane %v2215, 1
    %v2217 = vadd.f32 %v2215, %v2216
    %v2218 = vadd.f32 %v2132, %v2137
    %v2219 = vrot.slane %v2218, 4
    %v2220 = vadd.f32 %v2218, %v2219
    %v2221 = vrot.slane %v2220, 2
    %v2222 = vadd.f32 %v2220, %v2221
    %v2223 = vrot.slane %v2222, 1
    %v2224 = vadd.f32 %v2222, %v2223
    %v2225 = vadd.f32 %v2133, %v2138
    %v2226 = vrot.slane %v2225, 4
    %v2227 = vadd.f32 %v2225, %v2226
    %v2228 = vrot.slane %v2227, 2
    %v2229 = vadd.f32 %v2227, %v2228
    %v2230 = vrot.slane %v2229, 1
    %v2231 = vadd.f32 %v2229, %v2230
    %v2232 = vadd.f32 %v2134, %v2139
    %v2233 = vrot.slane %v2232, 4
    %v2234 = vadd.f32 %v2232, %v2233
    %v2235 = vrot.slane %v2234, 2
    %v2236 = vadd.f32 %v2234, %v2235
    %v2237 = vrot.slane %v2236, 1
    %v2238 = vadd.f32 %v2236, %v2237
    %v2239 = vsel %vm198, %v2135, 0.0
    %v2240 = vsel %vm198, %v2140, 0.0
    %v2241 = vadd.f32 %v2239, %v2240
    %v2242 = vrot.slane %v2241, 4
    %v2243 = vadd.f32 %v2241, %v2242
    %v2244 = vrot.slane %v2243, 2
    %v2245 = vadd.f32 %v2243, %v2244
    %v2246 = vrot.slane %v2245, 1
    %v2247 = vadd.f32 %v2245, %v2246
    %v2248 = vadd.f32 %v2141, %v2146
    %v2249 = vrot.slane %v2248, 4
    %v2250 = vadd.f32 %v2248, %v2249
    %v2251 = vrot.slane %v2250, 2
    %v2252 = vadd.f32 %v2250, %v2251
    %v2253 = vrot.slane %v2252, 1
    %v2254 = vadd.f32 %v2252, %v2253
    %v2255 = vadd.f32 %v2142, %v2147
    %v2256 = vrot.slane %v2255, 4
    %v2257 = vadd.f32 %v2255, %v2256
    %v2258 = vrot.slane %v2257, 2
    %v2259 = vadd.f32 %v2257, %v2258
    %v2260 = vrot.slane %v2259, 1
    %v2261 = vadd.f32 %v2259, %v2260
    %v2262 = vadd.f32 %v2143, %v2148
    %v2263 = vrot.slane %v2262, 4
    %v2264 = vadd.f32 %v2262, %v2263
    %v2265 = vrot.slane %v2264, 2
    %v2266 = vadd.f32 %v2264, %v2265
    %v2267 = vrot.slane %v2266, 1
    %v2268 = vadd.f32 %v2266, %v2267
    %v2269 = vadd.f32 %v2144, %v2149
    %v2270 = vrot.slane %v2269, 4
    %v2271 = vadd.f32 %v2269, %v2270
    %v2272 = vrot.slane %v2271, 2
    %v2273 = vadd.f32 %v2271, %v2272
    %v2274 = vrot.slane %v2273, 1
    %v2275 = vadd.f32 %v2273, %v2274
    %v2276 = vsel %vm198, %v2145, 0.0
    %v2277 = vsel %vm198, %v2150, 0.0
    %v2278 = vadd.f32 %v2276, %v2277
    %v2279 = vrot.slane %v2278, 4
    %v2280 = vadd.f32 %v2278, %v2279
    %v2281 = vrot.slane %v2280, 2
    %v2282 = vadd.f32 %v2280, %v2281
    %v2283 = vrot.slane %v2282, 1
    %v2284 = vadd.f32 %v2282, %v2283
    %v2285 = vadd.f32 %v2151, %v2156
    %v2286 = vrot.slane %v2285, 4
    %v2287 = vadd.f32 %v2285, %v2286
    %v2288 = vrot.slane %v2287, 2
    %v2289 = vadd.f32 %v2287, %v2288
    %v2290 = vrot.slane %v2289, 1
    %v2291 = vadd.f32 %v2289, %v2290
    %v2292 = vadd.f32 %v2152, %v2157
    %v2293 = vrot.slane %v2292, 4
    %v2294 = vadd.f32 %v2292, %v2293
    %v2295 = vrot.slane %v2294, 2
    %v2296 = vadd.f32 %v2294, %v2295
    %v2297 = vrot.slane %v2296, 1
    %v2298 = vadd.f32 %v2296, %v2297
    %v2299 = vadd.f32 %v2153, %v2158
    %v2300 = vrot.slane %v2299, 4
    %v2301 = vadd.f32 %v2299, %v2300
    %v2302 = vrot.slane %v2301, 2
    %v2303 = vadd.f32 %v2301, %v2302
    %v2304 = vrot.slane %v2303, 1
    %v2305 = vadd.f32 %v2303, %v2304
    %v2306 = vadd.f32 %v2154, %v2159
    %v2307 = vrot.slane %v2306, 4
    %v2308 = vadd.f32 %v2306, %v2307
    %v2309 = vrot.slane %v2308, 2
    %v2310 = vadd.f32 %v2308, %v2309
    %v2311 = vrot.slane %v2310, 1
    %v2312 = vadd.f32 %v2310, %v2311
    %v2313 = vsel %vm198, %v2155, 0.0
    %v2314 = vsel %vm198, %v2160, 0.0
    %v2315 = vadd.f32 %v2313, %v2314
    %v2316 = vrot.slane %v2315, 4
    %v2317 = vadd.f32 %v2315, %v2316
    %v2318 = vrot.slane %v2317, 2
    %v2319 = vadd.f32 %v2317, %v2318
    %v2320 = vrot.slane %v2319, 1
    %v2321 = vadd.f32 %v2319, %v2320
    %v2322 = vadd.f32 %v2161, %v2166
    %v2323 = vrot.slane %v2322, 4
    %v2324 = vadd.f32 %v2322, %v2323
    %v2325 = vrot.slane %v2324, 2
    %v2326 = vadd.f32 %v2324, %v2325
    %v2327 = vrot.slane %v2326, 1
    %v2328 = vadd.f32 %v2326, %v2327
    %v2329 = vadd.f32 %v2162, %v2167
    %v2330 = vrot.slane %v2329, 4
    %v2331 = vadd.f32 %v2329, %v2330
    %v2332 = vrot.slane %v2331, 2
    %v2333 = vadd.f32 %v2331, %v2332
    %v2334 = vrot.slane %v2333, 1
    %v2335 = vadd.f32 %v2333, %v2334
    %v2336 = vadd.f32 %v2163, %v2168
    %v2337 = vrot.slane %v2336, 4
    %v2338 = vadd.f32 %v2336, %v2337
    %v2339 = vrot.slane %v2338, 2
    %v2340 = vadd.f32 %v2338, %v2339
    %v2341 = vrot.slane %v2340, 1
    %v2342 = vadd.f32 %v2340, %v2341
    %v2343 = vadd.f32 %v2164, %v2169
    %v2344 = vrot.slane %v2343, 4
    %v2345 = vadd.f32 %v2343, %v2344
    %v2346 = vrot.slane %v2345, 2
    %v2347 = vadd.f32 %v2345, %v2346
    %v2348 = vrot.slane %v2347, 1
    %v2349 = vadd.f32 %v2347, %v2348
    %v2350 = vsel %vm198, %v2165, 0.0
    %v2351 = vsel %vm198, %v2170, 0.0
    %v2352 = vadd.f32 %v2350, %v2351
    %v2353 = vrot.slane %v2352, 4
    %v2354 = vadd.f32 %v2352, %v2353
    %v2355 = vrot.slane %v2354, 2
    %v2356 = vadd.f32 %v2354, %v2355
    %v2357 = vrot.slane %v2356, 1
    %v2358 = vadd.f32 %v2356, %v2357
    %v2359 = vadd.f32 %v2171, %v2176
    %v2360 = vrot.slane %v2359, 4
    %v2361 = vadd.f32 %v2359, %v2360
    %v2362 = vrot.slane %v2361, 2
    %v2363 = vadd.f32 %v2361, %v2362
    %v2364 = vrot.slane %v2363, 1
    %v2365 = vadd.f32 %v2363, %v2364
    %v2366 = vadd.f32 %v2172, %v2177
    %v2367 = vrot.slane %v2366, 4
    %v2368 = vadd.f32 %v2366, %v2367
    %v2369 = vrot.slane %v2368, 2
    %v2370 = vadd.f32 %v2368, %v2369
    %v2371 = vrot.slane %v2370, 1
    %v2372 = vadd.f32 %v2370, %v2371
    %v2373 = vadd.f32 %v2173, %v2178
    %v2374 = vrot.slane %v2373, 4
    %v2375 = vadd.f32 %v2373, %v2374
    %v2376 = vrot.slane %v2375, 2
    %v2377 = vadd.f32 %v2375, %v2376
    %v2378 = vrot.slane %v2377, 1
    %v2379 = vadd.f32 %v2377, %v2378
    %v2380 = vadd.f32 %v2174, %v2179
    %v2381 = vrot.slane %v2380, 4
    %v2382 = vadd.f32 %v2380, %v2381
    %v2383 = vrot.slane %v2382, 2
    %v2384 = vadd.f32 %v2382, %v2383
    %v2385 = vrot.slane %v2384, 1
    %v2386 = vadd.f32 %v2384, %v2385
    %v2387 = vsel %vm198, %v2175, 0.0
    %v2388 = vsel %vm198, %v2180, 0.0
    %v2389 = vadd.f32 %v2387, %v2388
    %v2390 = vrot.slane %v2389, 4
    %v2391 = vadd.f32 %v2389, %v2390
    %v2392 = vrot.slane %v2391, 2
    %v2393 = vadd.f32 %v2391, %v2392
    %v2394 = vrot.slane %v2393, 1
    %v2395 = vadd.f32 %v2393, %v2394
    %v2396 = vadd.f32 %v2181, %v2186
    %v2397 = vrot.slane %v2396, 4
    %v2398 = vadd.f32 %v2396, %v2397
    %v2399 = vrot.slane %v2398, 2
    %v2400 = vadd.f32 %v2398, %v2399
    %v2401 = vrot.slane %v2400, 1
    %v2402 = vadd.f32 %v2400, %v2401
    %v2403 = vadd.f32 %v2182, %v2187
    %v2404 = vrot.slane %v2403, 4
    %v2405 = vadd.f32 %v2403, %v2404
    %v2406 = vrot.slane %v2405, 2
    %v2407 = vadd.f32 %v2405, %v2406
    %v2408 = vrot.slane %v2407, 1
    %v2409 = vadd.f32 %v2407, %v2408
    %v2410 = vadd.f32 %v2183, %v2188
    %v2411 = vrot.slane %v2410, 4
    %v2412 = vadd.f32 %v2410, %v2411
    %v2413 = vrot.slane %v2412, 2
    %v2414 = vadd.f32 %v2412, %v2413
    %v2415 = vrot.slane %v2414, 1
    %v2416 = vadd.f32 %v2414, %v2415
    %v2417 = vadd.f32 %v2184, %v2189
    %v2418 = vrot.slane %v2417, 4
    %v2419 = vadd.f32 %v2417, %v2418
    %v2420 = vrot.slane %v2419, 2
    %v2421 = vadd.f32 %v2419, %v2420
    %v2422 = vrot.slane %v2421, 1
    %v2423 = vadd.f32 %v2421, %v2422
    %v2424 = vsel %vm198, %v2185, 0.0
    %v2425 = vsel %vm198, %v2190, 0.0
    %v2426 = vadd.f32 %v2424, %v2425
    %v2427 = vrot.slane %v2426, 4
    %v2428 = vadd.f32 %v2426, %v2427
    %v2429 = vrot.slane %v2428, 2
    %v2430 = vadd.f32 %v2428, %v2429
    %v2431 = vrot.slane %v2430, 1
    %v2432 = vadd.f32 %v2430, %v2431
    %v2433 = vadd.f32 %v2191, %v2196
    %v2434 = vrot.slane %v2433, 4
    %v2435 = vadd.f32 %v2433, %v2434
    %v2436 = vrot.slane %v2435, 2
    %v2437 = vadd.f32 %v2435, %v2436
    %v2438 = vrot.slane %v2437, 1
    %v2439 = vadd.f32 %v2437, %v2438
    %v2440 = vadd.f32 %v2192, %v2197
    %v2441 = vrot.slane %v2440, 4
    %v2442 = vadd.f32 %v2440, %v2441
    %v2443 = vrot.slane %v2442, 2
    %v2444 = vadd.f32 %v2442, %v2443
    %v2445 = vrot.slane %v2444, 1
    %v2446 = vadd.f32 %v2444, %v2445
    %v2447 = vadd.f32 %v2193, %v2198
    %v2448 = vrot.slane %v2447, 4
    %v2449 = vadd.f32 %v2447, %v2448
    %v2450 = vrot.slane %v2449, 2
    %v2451 = vadd.f32 %v2449, %v2450
    %v2452 = vrot.slane %v2451, 1
    %v2453 = vadd.f32 %v2451, %v2452
    %v2454 = vadd.f32 %v2194, %v2199
    %v2455 = vrot.slane %v2454, 4
    %v2456 = vadd.f32 %v2454, %v2455
    %v2457 = vrot.slane %v2456, 2
    %v2458 = vadd.f32 %v2456, %v2457
    %v2459 = vrot.slane %v2458, 1
    %v2460 = vadd.f32 %v2458, %v2459
    %v2461 = vsel %vm198, %v2195, 0.0
    %v2462 = vsel %vm198, %v2200, 0.0
    %v2463 = vadd.f32 %v2461, %v2462
    %v2464 = vrot.slane %v2463, 4
    %v2465 = vadd.f32 %v2463, %v2464
    %v2466 = vrot.slane %v2465, 2
    %v2467 = vadd.f32 %v2465, %v2466
    %v2468 = vrot.slane %v2467, 1
    %v2469 = vadd.f32 %v2467, %v2468
    %v2470 = vadd.f32 %v2201, %v2206
    %v2471 = vrot.slane %v2470, 4
    %v2472 = vadd.f32 %v2470, %v2471
    %v2473 = vrot.slane %v2472, 2
    %v2474 = vadd.f32 %v2472, %v2473
    %v2475 = vrot.slane %v2474, 1
    %v2476 = vadd.f32 %v2474, %v2475
    %v2477 = vadd.f32 %v2202, %v2207
    %v2478 = vrot.slane %v2477, 4
    %v2479 = vadd.f32 %v2477, %v2478
    %v2480 = vrot.slane %v2479, 2
    %v2481 = vadd.f32 %v2479, %v2480
    %v2482 = vrot.slane %v2481, 1
    %v2483 = vadd.f32 %v2481, %v2482
    %v2484 = vadd.f32 %v2203, %v2208
    %v2485 = vrot.slane %v2484, 4
    %v2486 = vadd.f32 %v2484, %v2485
    %v2487 = vrot.slane %v2486, 2
    %v2488 = vadd.f32 %v2486, %v2487
    %v2489 = vrot.slane %v2488, 1
    %v2490 = vadd.f32 %v2488, %v2489
    %v2491 = vadd.f32 %v2204, %v2209
    %v2492 = vrot.slane %v2491, 4
    %v2493 = vadd.f32 %v2491, %v2492
    %v2494 = vrot.slane %v2493, 2
    %v2495 = vadd.f32 %v2493, %v2494
    %v2496 = vrot.slane %v2495, 1
    %v2497 = vadd.f32 %v2495, %v2496
    %v2498 = vsel %vm198, %v2205, 0.0
    %v2499 = vsel %vm198, %v2210, 0.0
    %v2500 = vadd.f32 %v2498, %v2499
    %v2501 = vrot.slane %v2500, 4
    %v2502 = vadd.f32 %v2500, %v2501
    %v2503 = vrot.slane %v2502, 2
    %v2504 = vadd.f32 %v2502, %v2503
    %v2505 = vrot.slane %v2504, 1
    %v2506 = vadd.f32 %v2504, %v2505
    %v2507 = vadd.f32 %v2043, %v2217
    %v2508 = vadd.f32 %v2044, %v2224
    %v2509 = vadd.f32 %v2045, %v2231
    %v2510 = vadd.f32 %v2046, %v2238
    %v2511 = vadd.f32 %v2047, %v2247
    %v2512 = vadd.f32 %v2048, %v2254
    %v2513 = vadd.f32 %v2049, %v2261
    %v2514 = vadd.f32 %v2050, %v2268
    %v2515 = vadd.f32 %v2051, %v2275
    %v2516 = vadd.f32 %v2052, %v2284
    %v2517 = vadd.f32 %v2053, %v2291
    %v2518 = vadd.f32 %v2054, %v2298
    %v2519 = vadd.f32 %v2055, %v2305
    %v2520 = vadd.f32 %v2056, %v2312
    %v2521 = vadd.f32 %v2057, %v2321
    %v2522 = vadd.f32 %v2058, %v2328
    %v2523 = vadd.f32 %v2059, %v2335
    %v2524 = vadd.f32 %v2060, %v2342
    %v2525 = vadd.f32 %v2061, %v2349
    %v2526 = vadd.f32 %v2062, %v2358
    %v2527 = vadd.f32 %v2063, %v2365
    %v2528 = vadd.f32 %v2064, %v2372
    %v2529 = vadd.f32 %v2065, %v2379
    %v2530 = vadd.f32 %v2066, %v2386
    %v2531 = vadd.f32 %v2067, %v2395
    %v2532 = vadd.f32 %v2068, %v2402
    %v2533 = vadd.f32 %v2069, %v2409
    %v2534 = vadd.f32 %v2070, %v2416
    %v2535 = vadd.f32 %v2071, %v2423
    %v2536 = vadd.f32 %v2072, %v2432
    %v2537 = vadd.f32 %v2073, %v2439
    %v2538 = vadd.f32 %v2074, %v2446
    %v2539 = vadd.f32 %v2075, %v2453
    %v2540 = vadd.f32 %v2076, %v2460
    %v2541 = vadd.f32 %v2077, %v2469
    %v2542 = vadd.f32 %v2078, %v2476
    %v2543 = vadd.f32 %v2079, %v2483
    %v2544 = vadd.f32 %v2080, %v2490
    %v2545 = vadd.f32 %v2081, %v2497
    %v2546 = vadd.f32 %v2082, %v2506
    %v2547 = vld [vmem:[%s1 + $0x50] sm:$0xff]
    %v2548 = vld [vmem:[%s1 + $0x58] sm:$0xff]
    %v2549 = vld [vmem:[%s1 + $0x60] sm:$0xf]
    %v2550 = vld [vmem:[%s1 + $0x64] sm:$0xff]
    %v2551 = vld [vmem:[%s1 + $0x6c] sm:$0xff]
    %v2552 = vld [vmem:[%s1 + $0x74] sm:$0xf]
    %v2553 = vld [vmem:[%s1 + $0xdc] sm:$0xff]
    %v2554 = vld [vmem:[%s1 + $0xe4] sm:$0xff]
    %v2555 = vld [vmem:[%s1 + $0xec] sm:$0xf]
    %v2556 = vld [vmem:[%s1 + $0xf0] sm:$0xff]
    %v2557 = vld [vmem:[%s1 + $0xf8] sm:$0xff]
    %v2558 = vld [vmem:[%s1 + $0x100] sm:$0xf]
    %v2559 = vld [vmem:[%s1 + $0x168] sm:$0xff]
    %v2560 = vld [vmem:[%s1 + $0x170] sm:$0xff]
    %v2561 = vld [vmem:[%s1 + $0x178] sm:$0xf]
    %v2562 = vld [vmem:[%s1 + $0x17c] sm:$0xff]
    %v2563 = vld [vmem:[%s1 + $0x184] sm:$0xff]
    %v2564 = vld [vmem:[%s1 + $0x18c] sm:$0xf]
    %v2565 = vld [vmem:[%s1 + $0x1f4] sm:$0xff]
    %v2566 = vld [vmem:[%s1 + $0x1fc] sm:$0xff]
    %v2567 = vld [vmem:[%s1 + $0x204] sm:$0xf]
    %v2568 = vld [vmem:[%s1 + $0x208] sm:$0xff]
    %v2569 = vld [vmem:[%s1 + $0x210] sm:$0xff]
    %v2570 = vld [vmem:[%s1 + $0x218] sm:$0xf]
    %v2571 = vld [vmem:[%s1 + $0x280] sm:$0xff]
    %v2572 = vld [vmem:[%s1 + $0x288] sm:$0xff]
    %v2573 = vld [vmem:[%s1 + $0x290] sm:$0xf]
    %v2574 = vld [vmem:[%s1 + $0x294] sm:$0xff]
    %v2575 = vld [vmem:[%s1 + $0x29c] sm:$0xff]
    %v2576 = vld [vmem:[%s1 + $0x2a4] sm:$0xf]
    %v2577 = vld [vmem:[%s1 + $0x30c] sm:$0xff]
    %v2578 = vld [vmem:[%s1 + $0x314] sm:$0xff]
    %v2579 = vld [vmem:[%s1 + $0x31c] sm:$0xf]
    %v2580 = vld [vmem:[%s1 + $0x320] sm:$0xff]
    %v2581 = vld [vmem:[%s1 + $0x328] sm:$0xff]
    %v2582 = vld [vmem:[%s1 + $0x330] sm:$0xf]
    %v2583 = vld [vmem:[%s1 + $0x398] sm:$0xff]
    %v2584 = vld [vmem:[%s1 + $0x3a0] sm:$0xff]
    %v2585 = vld [vmem:[%s1 + $0x3a8] sm:$0xf]
    %v2586 = vld [vmem:[%s1 + $0x3ac] sm:$0xff]
    %v2587 = vld [vmem:[%s1 + $0x3b4] sm:$0xff]
    %v2588 = vld [vmem:[%s1 + $0x3bc] sm:$0xf]
    %v2589 = vld [vmem:[%s1 + $0x424] sm:$0xff]
    %v2590 = vld [vmem:[%s1 + $0x42c] sm:$0xff]
    %v2591 = vld [vmem:[%s1 + $0x434] sm:$0xf]
    %v2592 = vld [vmem:[%s1 + $0x438] sm:$0xff]
    %v2593 = vld [vmem:[%s1 + $0x440] sm:$0xff]
    %v2594 = vld [vmem:[%s1 + $0x448] sm:$0xf]
    %v2595 = vunpack.c.l.bf16 %v2547
    %v2596 = vunpack.c.h.bf16 %v2547
    %v2597 = vunpack.c.l.bf16 %v2548
    %v2598 = vunpack.c.h.bf16 %v2548
    %v2599 = vunpack.c.l.bf16 %v2549
    %v2600 = vunpack.c.l.bf16 %v2550
    %v2601 = vunpack.c.h.bf16 %v2550
    %v2602 = vunpack.c.l.bf16 %v2551
    %v2603 = vunpack.c.h.bf16 %v2551
    %v2604 = vunpack.c.l.bf16 %v2552
    %v2605 = vunpack.c.l.bf16 %v2553
    %v2606 = vunpack.c.h.bf16 %v2553
    %v2607 = vunpack.c.l.bf16 %v2554
    %v2608 = vunpack.c.h.bf16 %v2554
    %v2609 = vunpack.c.l.bf16 %v2555
    %v2610 = vunpack.c.l.bf16 %v2556
    %v2611 = vunpack.c.h.bf16 %v2556
    %v2612 = vunpack.c.l.bf16 %v2557
    %v2613 = vunpack.c.h.bf16 %v2557
    %v2614 = vunpack.c.l.bf16 %v2558
    %v2615 = vunpack.c.l.bf16 %v2559
    %v2616 = vunpack.c.h.bf16 %v2559
    %v2617 = vunpack.c.l.bf16 %v2560
    %v2618 = vunpack.c.h.bf16 %v2560
    %v2619 = vunpack.c.l.bf16 %v2561
    %v2620 = vunpack.c.l.bf16 %v2562
    %v2621 = vunpack.c.h.bf16 %v2562
    %v2622 = vunpack.c.l.bf16 %v2563
    %v2623 = vunpack.c.h.bf16 %v2563
    %v2624 = vunpack.c.l.bf16 %v2564
    %v2625 = vunpack.c.l.bf16 %v2565
    %v2626 = vunpack.c.h.bf16 %v2565
    %v2627 = vunpack.c.l.bf16 %v2566
    %v2628 = vunpack.c.h.bf16 %v2566
    %v2629 = vunpack.c.l.bf16 %v2567
    %v2630 = vunpack.c.l.bf16 %v2568
    %v2631 = vunpack.c.h.bf16 %v2568
    %v2632 = vunpack.c.l.bf16 %v2569
    %v2633 = vunpack.c.h.bf16 %v2569
    %v2634 = vunpack.c.l.bf16 %v2570
    %v2635 = vunpack.c.l.bf16 %v2571
    %v2636 = vunpack.c.h.bf16 %v2571
    %v2637 = vunpack.c.l.bf16 %v2572
    %v2638 = vunpack.c.h.bf16 %v2572
    %v2639 = vunpack.c.l.bf16 %v2573
    %v2640 = vunpack.c.l.bf16 %v2574
    %v2641 = vunpack.c.h.bf16 %v2574
    %v2642 = vunpack.c.l.bf16 %v2575
    %v2643 = vunpack.c.h.bf16 %v2575
    %v2644 = vunpack.c.l.bf16 %v2576
    %v2645 = vunpack.c.l.bf16 %v2577
    %v2646 = vunpack.c.h.bf16 %v2577
    %v2647 = vunpack.c.l.bf16 %v2578
    %v2648 = vunpack.c.h.bf16 %v2578
    %v2649 = vunpack.c.l.bf16 %v2579
    %v2650 = vunpack.c.l.bf16 %v2580
    %v2651 = vunpack.c.h.bf16 %v2580
    %v2652 = vunpack.c.l.bf16 %v2581
    %v2653 = vunpack.c.h.bf16 %v2581
    %v2654 = vunpack.c.l.bf16 %v2582
    %v2655 = vunpack.c.l.bf16 %v2583
    %v2656 = vunpack.c.h.bf16 %v2583
    %v2657 = vunpack.c.l.bf16 %v2584
    %v2658 = vunpack.c.h.bf16 %v2584
    %v2659 = vunpack.c.l.bf16 %v2585
    %v2660 = vunpack.c.l.bf16 %v2586
    %v2661 = vunpack.c.h.bf16 %v2586
    %v2662 = vunpack.c.l.bf16 %v2587
    %v2663 = vunpack.c.h.bf16 %v2587
    %v2664 = vunpack.c.l.bf16 %v2588
    %v2665 = vunpack.c.l.bf16 %v2589
    %v2666 = vunpack.c.h.bf16 %v2589
    %v2667 = vunpack.c.l.bf16 %v2590
    %v2668 = vunpack.c.h.bf16 %v2590
    %v2669 = vunpack.c.l.bf16 %v2591
    %v2670 = vunpack.c.l.bf16 %v2592
    %v2671 = vunpack.c.h.bf16 %v2592
    %v2672 = vunpack.c.l.bf16 %v2593
    %v2673 = vunpack.c.h.bf16 %v2593
    %v2674 = vunpack.c.l.bf16 %v2594
    %v2675 = vadd.f32 %v2595, %v2600
    %v2676 = vrot.slane %v2675, 4
    %v2677 = vadd.f32 %v2675, %v2676
    %v2678 = vrot.slane %v2677, 2
    %v2679 = vadd.f32 %v2677, %v2678
    %v2680 = vrot.slane %v2679, 1
    %v2681 = vadd.f32 %v2679, %v2680
    %v2682 = vadd.f32 %v2596, %v2601
    %v2683 = vrot.slane %v2682, 4
    %v2684 = vadd.f32 %v2682, %v2683
    %v2685 = vrot.slane %v2684, 2
    %v2686 = vadd.f32 %v2684, %v2685
    %v2687 = vrot.slane %v2686, 1
    %v2688 = vadd.f32 %v2686, %v2687
    %v2689 = vadd.f32 %v2597, %v2602
    %v2690 = vrot.slane %v2689, 4
    %v2691 = vadd.f32 %v2689, %v2690
    %v2692 = vrot.slane %v2691, 2
    %v2693 = vadd.f32 %v2691, %v2692
    %v2694 = vrot.slane %v2693, 1
    %v2695 = vadd.f32 %v2693, %v2694
    %v2696 = vadd.f32 %v2598, %v2603
    %v2697 = vrot.slane %v2696, 4
    %v2698 = vadd.f32 %v2696, %v2697
    %v2699 = vrot.slane %v2698, 2
    %v2700 = vadd.f32 %v2698, %v2699
    %v2701 = vrot.slane %v2700, 1
    %v2702 = vadd.f32 %v2700, %v2701
    %v2703 = vsel %vm198, %v2599, 0.0
    %v2704 = vsel %vm198, %v2604, 0.0
    %v2705 = vadd.f32 %v2703, %v2704
    %v2706 = vrot.slane %v2705, 4
    %v2707 = vadd.f32 %v2705, %v2706
    %v2708 = vrot.slane %v2707, 2
    %v2709 = vadd.f32 %v2707, %v2708
    %v2710 = vrot.slane %v2709, 1
    %v2711 = vadd.f32 %v2709, %v2710
    %v2712 = vadd.f32 %v2605, %v2610
    %v2713 = vrot.slane %v2712, 4
    %v2714 = vadd.f32 %v2712, %v2713
    %v2715 = vrot.slane %v2714, 2
    %v2716 = vadd.f32 %v2714, %v2715
    %v2717 = vrot.slane %v2716, 1
    %v2718 = vadd.f32 %v2716, %v2717
    %v2719 = vadd.f32 %v2606, %v2611
    %v2720 = vrot.slane %v2719, 4
    %v2721 = vadd.f32 %v2719, %v2720
    %v2722 = vrot.slane %v2721, 2
    %v2723 = vadd.f32 %v2721, %v2722
    %v2724 = vrot.slane %v2723, 1
    %v2725 = vadd.f32 %v2723, %v2724
    %v2726 = vadd.f32 %v2607, %v2612
    %v2727 = vrot.slane %v2726, 4
    %v2728 = vadd.f32 %v2726, %v2727
    %v2729 = vrot.slane %v2728, 2
    %v2730 = vadd.f32 %v2728, %v2729
    %v2731 = vrot.slane %v2730, 1
    %v2732 = vadd.f32 %v2730, %v2731
    %v2733 = vadd.f32 %v2608, %v2613
    %v2734 = vrot.slane %v2733, 4
    %v2735 = vadd.f32 %v2733, %v2734
    %v2736 = vrot.slane %v2735, 2
    %v2737 = vadd.f32 %v2735, %v2736
    %v2738 = vrot.slane %v2737, 1
    %v2739 = vadd.f32 %v2737, %v2738
    %v2740 = vsel %vm198, %v2609, 0.0
    %v2741 = vsel %vm198, %v2614, 0.0
    %v2742 = vadd.f32 %v2740, %v2741
    %v2743 = vrot.slane %v2742, 4
    %v2744 = vadd.f32 %v2742, %v2743
    %v2745 = vrot.slane %v2744, 2
    %v2746 = vadd.f32 %v2744, %v2745
    %v2747 = vrot.slane %v2746, 1
    %v2748 = vadd.f32 %v2746, %v2747
    %v2749 = vadd.f32 %v2615, %v2620
    %v2750 = vrot.slane %v2749, 4
    %v2751 = vadd.f32 %v2749, %v2750
    %v2752 = vrot.slane %v2751, 2
    %v2753 = vadd.f32 %v2751, %v2752
    %v2754 = vrot.slane %v2753, 1
    %v2755 = vadd.f32 %v2753, %v2754
    %v2756 = vadd.f32 %v2616, %v2621
    %v2757 = vrot.slane %v2756, 4
    %v2758 = vadd.f32 %v2756, %v2757
    %v2759 = vrot.slane %v2758, 2
    %v2760 = vadd.f32 %v2758, %v2759
    %v2761 = vrot.slane %v2760, 1
    %v2762 = vadd.f32 %v2760, %v2761
    %v2763 = vadd.f32 %v2617, %v2622
    %v2764 = vrot.slane %v2763, 4
    %v2765 = vadd.f32 %v2763, %v2764
    %v2766 = vrot.slane %v2765, 2
    %v2767 = vadd.f32 %v2765, %v2766
    %v2768 = vrot.slane %v2767, 1
    %v2769 = vadd.f32 %v2767, %v2768
    %v2770 = vadd.f32 %v2618, %v2623
    %v2771 = vrot.slane %v2770, 4
    %v2772 = vadd.f32 %v2770, %v2771
    %v2773 = vrot.slane %v2772, 2
    %v2774 = vadd.f32 %v2772, %v2773
    %v2775 = vrot.slane %v2774, 1
    %v2776 = vadd.f32 %v2774, %v2775
    %v2777 = vsel %vm198, %v2619, 0.0
    %v2778 = vsel %vm198, %v2624, 0.0
    %v2779 = vadd.f32 %v2777, %v2778
    %v2780 = vrot.slane %v2779, 4
    %v2781 = vadd.f32 %v2779, %v2780
    %v2782 = vrot.slane %v2781, 2
    %v2783 = vadd.f32 %v2781, %v2782
    %v2784 = vrot.slane %v2783, 1
    %v2785 = vadd.f32 %v2783, %v2784
    %v2786 = vadd.f32 %v2625, %v2630
    %v2787 = vrot.slane %v2786, 4
    %v2788 = vadd.f32 %v2786, %v2787
    %v2789 = vrot.slane %v2788, 2
    %v2790 = vadd.f32 %v2788, %v2789
    %v2791 = vrot.slane %v2790, 1
    %v2792 = vadd.f32 %v2790, %v2791
    %v2793 = vadd.f32 %v2626, %v2631
    %v2794 = vrot.slane %v2793, 4
    %v2795 = vadd.f32 %v2793, %v2794
    %v2796 = vrot.slane %v2795, 2
    %v2797 = vadd.f32 %v2795, %v2796
    %v2798 = vrot.slane %v2797, 1
    %v2799 = vadd.f32 %v2797, %v2798
    %v2800 = vadd.f32 %v2627, %v2632
    %v2801 = vrot.slane %v2800, 4
    %v2802 = vadd.f32 %v2800, %v2801
    %v2803 = vrot.slane %v2802, 2
    %v2804 = vadd.f32 %v2802, %v2803
    %v2805 = vrot.slane %v2804, 1
    %v2806 = vadd.f32 %v2804, %v2805
    %v2807 = vadd.f32 %v2628, %v2633
    %v2808 = vrot.slane %v2807, 4
    %v2809 = vadd.f32 %v2807, %v2808
    %v2810 = vrot.slane %v2809, 2
    %v2811 = vadd.f32 %v2809, %v2810
    %v2812 = vrot.slane %v2811, 1
    %v2813 = vadd.f32 %v2811, %v2812
    %v2814 = vsel %vm198, %v2629, 0.0
    %v2815 = vsel %vm198, %v2634, 0.0
    %v2816 = vadd.f32 %v2814, %v2815
    %v2817 = vrot.slane %v2816, 4
    %v2818 = vadd.f32 %v2816, %v2817
    %v2819 = vrot.slane %v2818, 2
    %v2820 = vadd.f32 %v2818, %v2819
    %v2821 = vrot.slane %v2820, 1
    %v2822 = vadd.f32 %v2820, %v2821
    %v2823 = vadd.f32 %v2635, %v2640
    %v2824 = vrot.slane %v2823, 4
    %v2825 = vadd.f32 %v2823, %v2824
    %v2826 = vrot.slane %v2825, 2
    %v2827 = vadd.f32 %v2825, %v2826
    %v2828 = vrot.slane %v2827, 1
    %v2829 = vadd.f32 %v2827, %v2828
    %v2830 = vadd.f32 %v2636, %v2641
    %v2831 = vrot.slane %v2830, 4
    %v2832 = vadd.f32 %v2830, %v2831
    %v2833 = vrot.slane %v2832, 2
    %v2834 = vadd.f32 %v2832, %v2833
    %v2835 = vrot.slane %v2834, 1
    %v2836 = vadd.f32 %v2834, %v2835
    %v2837 = vadd.f32 %v2637, %v2642
    %v2838 = vrot.slane %v2837, 4
    %v2839 = vadd.f32 %v2837, %v2838
    %v2840 = vrot.slane %v2839, 2
    %v2841 = vadd.f32 %v2839, %v2840
    %v2842 = vrot.slane %v2841, 1
    %v2843 = vadd.f32 %v2841, %v2842
    %v2844 = vadd.f32 %v2638, %v2643
    %v2845 = vrot.slane %v2844, 4
    %v2846 = vadd.f32 %v2844, %v2845
    %v2847 = vrot.slane %v2846, 2
    %v2848 = vadd.f32 %v2846, %v2847
    %v2849 = vrot.slane %v2848, 1
    %v2850 = vadd.f32 %v2848, %v2849
    %v2851 = vsel %vm198, %v2639, 0.0
    %v2852 = vsel %vm198, %v2644, 0.0
    %v2853 = vadd.f32 %v2851, %v2852
    %v2854 = vrot.slane %v2853, 4
    %v2855 = vadd.f32 %v2853, %v2854
    %v2856 = vrot.slane %v2855, 2
    %v2857 = vadd.f32 %v2855, %v2856
    %v2858 = vrot.slane %v2857, 1
    %v2859 = vadd.f32 %v2857, %v2858
    %v2860 = vadd.f32 %v2645, %v2650
    %v2861 = vrot.slane %v2860, 4
    %v2862 = vadd.f32 %v2860, %v2861
    %v2863 = vrot.slane %v2862, 2
    %v2864 = vadd.f32 %v2862, %v2863
    %v2865 = vrot.slane %v2864, 1
    %v2866 = vadd.f32 %v2864, %v2865
    %v2867 = vadd.f32 %v2646, %v2651
    %v2868 = vrot.slane %v2867, 4
    %v2869 = vadd.f32 %v2867, %v2868
    %v2870 = vrot.slane %v2869, 2
    %v2871 = vadd.f32 %v2869, %v2870
    %v2872 = vrot.slane %v2871, 1
    %v2873 = vadd.f32 %v2871, %v2872
    %v2874 = vadd.f32 %v2647, %v2652
    %v2875 = vrot.slane %v2874, 4
    %v2876 = vadd.f32 %v2874, %v2875
    %v2877 = vrot.slane %v2876, 2
    %v2878 = vadd.f32 %v2876, %v2877
    %v2879 = vrot.slane %v2878, 1
    %v2880 = vadd.f32 %v2878, %v2879
    %v2881 = vadd.f32 %v2648, %v2653
    %v2882 = vrot.slane %v2881, 4
    %v2883 = vadd.f32 %v2881, %v2882
    %v2884 = vrot.slane %v2883, 2
    %v2885 = vadd.f32 %v2883, %v2884
    %v2886 = vrot.slane %v2885, 1
    %v2887 = vadd.f32 %v2885, %v2886
    %v2888 = vsel %vm198, %v2649, 0.0
    %v2889 = vsel %vm198, %v2654, 0.0
    %v2890 = vadd.f32 %v2888, %v2889
    %v2891 = vrot.slane %v2890, 4
    %v2892 = vadd.f32 %v2890, %v2891
    %v2893 = vrot.slane %v2892, 2
    %v2894 = vadd.f32 %v2892, %v2893
    %v2895 = vrot.slane %v2894, 1
    %v2896 = vadd.f32 %v2894, %v2895
    %v2897 = vadd.f32 %v2655, %v2660
    %v2898 = vrot.slane %v2897, 4
    %v2899 = vadd.f32 %v2897, %v2898
    %v2900 = vrot.slane %v2899, 2
    %v2901 = vadd.f32 %v2899, %v2900
    %v2902 = vrot.slane %v2901, 1
    %v2903 = vadd.f32 %v2901, %v2902
    %v2904 = vadd.f32 %v2656, %v2661
    %v2905 = vrot.slane %v2904, 4
    %v2906 = vadd.f32 %v2904, %v2905
    %v2907 = vrot.slane %v2906, 2
    %v2908 = vadd.f32 %v2906, %v2907
    %v2909 = vrot.slane %v2908, 1
    %v2910 = vadd.f32 %v2908, %v2909
    %v2911 = vadd.f32 %v2657, %v2662
    %v2912 = vrot.slane %v2911, 4
    %v2913 = vadd.f32 %v2911, %v2912
    %v2914 = vrot.slane %v2913, 2
    %v2915 = vadd.f32 %v2913, %v2914
    %v2916 = vrot.slane %v2915, 1
    %v2917 = vadd.f32 %v2915, %v2916
    %v2918 = vadd.f32 %v2658, %v2663
    %v2919 = vrot.slane %v2918, 4
    %v2920 = vadd.f32 %v2918, %v2919
    %v2921 = vrot.slane %v2920, 2
    %v2922 = vadd.f32 %v2920, %v2921
    %v2923 = vrot.slane %v2922, 1
    %v2924 = vadd.f32 %v2922, %v2923
    %v2925 = vsel %vm198, %v2659, 0.0
    %v2926 = vsel %vm198, %v2664, 0.0
    %v2927 = vadd.f32 %v2925, %v2926
    %v2928 = vrot.slane %v2927, 4
    %v2929 = vadd.f32 %v2927, %v2928
    %v2930 = vrot.slane %v2929, 2
    %v2931 = vadd.f32 %v2929, %v2930
    %v2932 = vrot.slane %v2931, 1
    %v2933 = vadd.f32 %v2931, %v2932
    %v2934 = vadd.f32 %v2665, %v2670
    %v2935 = vrot.slane %v2934, 4
    %v2936 = vadd.f32 %v2934, %v2935
    %v2937 = vrot.slane %v2936, 2
    %v2938 = vadd.f32 %v2936, %v2937
    %v2939 = vrot.slane %v2938, 1
    %v2940 = vadd.f32 %v2938, %v2939
    %v2941 = vadd.f32 %v2666, %v2671
    %v2942 = vrot.slane %v2941, 4
    %v2943 = vadd.f32 %v2941, %v2942
    %v2944 = vrot.slane %v2943, 2
    %v2945 = vadd.f32 %v2943, %v2944
    %v2946 = vrot.slane %v2945, 1
    %v2947 = vadd.f32 %v2945, %v2946
    %v2948 = vadd.f32 %v2667, %v2672
    %v2949 = vrot.slane %v2948, 4
    %v2950 = vadd.f32 %v2948, %v2949
    %v2951 = vrot.slane %v2950, 2
    %v2952 = vadd.f32 %v2950, %v2951
    %v2953 = vrot.slane %v2952, 1
    %v2954 = vadd.f32 %v2952, %v2953
    %v2955 = vadd.f32 %v2668, %v2673
    %v2956 = vrot.slane %v2955, 4
    %v2957 = vadd.f32 %v2955, %v2956
    %v2958 = vrot.slane %v2957, 2
    %v2959 = vadd.f32 %v2957, %v2958
    %v2960 = vrot.slane %v2959, 1
    %v2961 = vadd.f32 %v2959, %v2960
    %v2962 = vsel %vm198, %v2669, 0.0
    %v2963 = vsel %vm198, %v2674, 0.0
    %v2964 = vadd.f32 %v2962, %v2963
    %v2965 = vrot.slane %v2964, 4
    %v2966 = vadd.f32 %v2964, %v2965
    %v2967 = vrot.slane %v2966, 2
    %v2968 = vadd.f32 %v2966, %v2967
    %v2969 = vrot.slane %v2968, 1
    %v2970 = vadd.f32 %v2968, %v2969
    %v2971 = vadd.f32 %v2507, %v2681
    %v2972 = vadd.f32 %v2508, %v2688
    %v2973 = vadd.f32 %v2509, %v2695
    %v2974 = vadd.f32 %v2510, %v2702
    %v2975 = vadd.f32 %v2511, %v2711
    %v2976 = vadd.f32 %v2512, %v2718
    %v2977 = vadd.f32 %v2513, %v2725
    %v2978 = vadd.f32 %v2514, %v2732
    %v2979 = vadd.f32 %v2515, %v2739
    %v2980 = vadd.f32 %v2516, %v2748
    %v2981 = vadd.f32 %v2517, %v2755
    %v2982 = vadd.f32 %v2518, %v2762
    %v2983 = vadd.f32 %v2519, %v2769
    %v2984 = vadd.f32 %v2520, %v2776
    %v2985 = vadd.f32 %v2521, %v2785
    %v2986 = vadd.f32 %v2522, %v2792
    %v2987 = vadd.f32 %v2523, %v2799
    %v2988 = vadd.f32 %v2524, %v2806
    %v2989 = vadd.f32 %v2525, %v2813
    %v2990 = vadd.f32 %v2526, %v2822
    %v2991 = vadd.f32 %v2527, %v2829
    %v2992 = vadd.f32 %v2528, %v2836
    %v2993 = vadd.f32 %v2529, %v2843
    %v2994 = vadd.f32 %v2530, %v2850
    %v2995 = vadd.f32 %v2531, %v2859
    %v2996 = vadd.f32 %v2532, %v2866
    %v2997 = vadd.f32 %v2533, %v2873
    %v2998 = vadd.f32 %v2534, %v2880
    %v2999 = vadd.f32 %v2535, %v2887
    %v3000 = vadd.f32 %v2536, %v2896
    %v3001 = vadd.f32 %v2537, %v2903
    %v3002 = vadd.f32 %v2538, %v2910
    %v3003 = vadd.f32 %v2539, %v2917
    %v3004 = vadd.f32 %v2540, %v2924
    %v3005 = vadd.f32 %v2541, %v2933
    %v3006 = vadd.f32 %v2542, %v2940
    %v3007 = vadd.f32 %v2543, %v2947
    %v3008 = vadd.f32 %v2544, %v2954
    %v3009 = vadd.f32 %v2545, %v2961
    %v3010 = vadd.f32 %v2546, %v2970
    %v3011 = vld [vmem:[%s1 + $0x78] sm:$0x11]
    %v3012 = vld [vmem:[%s1 + $0x80] sm:$0x11]
    %v3013 = vld [vmem:[%s1 + $0x88] sm:$0x1]
    %v3014 = vld [vmem:[%s1 + $0x104] sm:$0x11]
    %v3015 = vld [vmem:[%s1 + $0x10c] sm:$0x11]
    %v3016 = vld [vmem:[%s1 + $0x114] sm:$0x1]
    %v3017 = vld [vmem:[%s1 + $0x190] sm:$0x11]
    %v3018 = vld [vmem:[%s1 + $0x198] sm:$0x11]
    %v3019 = vld [vmem:[%s1 + $0x1a0] sm:$0x1]
    %v3020 = vld [vmem:[%s1 + $0x21c] sm:$0x11]
    %v3021 = vld [vmem:[%s1 + $0x224] sm:$0x11]
    %v3022 = vld [vmem:[%s1 + $0x22c] sm:$0x1]
    %v3023 = vld [vmem:[%s1 + $0x2a8] sm:$0x11]
    %v3024 = vld [vmem:[%s1 + $0x2b0] sm:$0x11]
    %v3025 = vld [vmem:[%s1 + $0x2b8] sm:$0x1]
    %v3026 = vld [vmem:[%s1 + $0x334] sm:$0x11]
    %v3027 = vld [vmem:[%s1 + $0x33c] sm:$0x11]
    %v3028 = vld [vmem:[%s1 + $0x344] sm:$0x1]
    %v3029 = vld [vmem:[%s1 + $0x3c0] sm:$0x11]
    %v3030 = vld [vmem:[%s1 + $0x3c8] sm:$0x11]
    %v3031 = vld [vmem:[%s1 + $0x3d0] sm:$0x1]
    %v3032 = vld [vmem:[%s1 + $0x44c] sm:$0x11]
    %v3033 = vld [vmem:[%s1 + $0x454] sm:$0x11]
    %v3034 = vld [vmem:[%s1 + $0x45c] sm:$0x1]
    %v3035 = vunpack.c.l.bf16 %v3011
    %v3036 = vunpack.c.h.bf16 %v3011
    %v3037 = vunpack.c.l.bf16 %v3012
    %v3038 = vunpack.c.h.bf16 %v3012
    %v3039 = vunpack.c.l.bf16 %v3013
    %v3040 = vunpack.c.l.bf16 %v3014
    %v3041 = vunpack.c.h.bf16 %v3014
    %v3042 = vunpack.c.l.bf16 %v3015
    %v3043 = vunpack.c.h.bf16 %v3015
    %v3044 = vunpack.c.l.bf16 %v3016
    %v3045 = vunpack.c.l.bf16 %v3017
    %v3046 = vunpack.c.h.bf16 %v3017
    %v3047 = vunpack.c.l.bf16 %v3018
    %v3048 = vunpack.c.h.bf16 %v3018
    %v3049 = vunpack.c.l.bf16 %v3019
    %v3050 = vunpack.c.l.bf16 %v3020
    %v3051 = vunpack.c.h.bf16 %v3020
    %v3052 = vunpack.c.l.bf16 %v3021
    %v3053 = vunpack.c.h.bf16 %v3021
    %v3054 = vunpack.c.l.bf16 %v3022
    %v3055 = vunpack.c.l.bf16 %v3023
    %v3056 = vunpack.c.h.bf16 %v3023
    %v3057 = vunpack.c.l.bf16 %v3024
    %v3058 = vunpack.c.h.bf16 %v3024
    %v3059 = vunpack.c.l.bf16 %v3025
    %v3060 = vunpack.c.l.bf16 %v3026
    %v3061 = vunpack.c.h.bf16 %v3026
    %v3062 = vunpack.c.l.bf16 %v3027
    %v3063 = vunpack.c.h.bf16 %v3027
    %v3064 = vunpack.c.l.bf16 %v3028
    %v3065 = vunpack.c.l.bf16 %v3029
    %v3066 = vunpack.c.h.bf16 %v3029
    %v3067 = vunpack.c.l.bf16 %v3030
    %v3068 = vunpack.c.h.bf16 %v3030
    %v3069 = vunpack.c.l.bf16 %v3031
    %v3070 = vunpack.c.l.bf16 %v3032
    %v3071 = vunpack.c.h.bf16 %v3032
    %v3072 = vunpack.c.l.bf16 %v3033
    %v3073 = vunpack.c.h.bf16 %v3033
    %v3074 = vunpack.c.l.bf16 %v3034
    %v3075 = vadd.f32 %v3035, 0.0
    %v3076 = vadd.f32 %v3036, 0.0
    %v3077 = vadd.f32 %v3037, 0.0
    %v3078 = vadd.f32 %v3038, 0.0
    %v3079 = vadd.f32 %v3039, 0.0
    %v3080 = vadd.f32 %v3040, 0.0
    %v3081 = vadd.f32 %v3041, 0.0
    %v3082 = vadd.f32 %v3042, 0.0
    %v3083 = vadd.f32 %v3043, 0.0
    %v3084 = vadd.f32 %v3044, 0.0
    %v3085 = vadd.f32 %v3045, 0.0
    %v3086 = vadd.f32 %v3046, 0.0
    %v3087 = vadd.f32 %v3047, 0.0
    %v3088 = vadd.f32 %v3048, 0.0
    %v3089 = vadd.f32 %v3049, 0.0
    %v3090 = vadd.f32 %v3050, 0.0
    %v3091 = vadd.f32 %v3051, 0.0
    %v3092 = vadd.f32 %v3052, 0.0
    %v3093 = vadd.f32 %v3053, 0.0
    %v3094 = vadd.f32 %v3054, 0.0
    %v3095 = vadd.f32 %v3055, 0.0
    %v3096 = vadd.f32 %v3056, 0.0
    %v3097 = vadd.f32 %v3057, 0.0
    %v3098 = vadd.f32 %v3058, 0.0
    %v3099 = vadd.f32 %v3059, 0.0
    %v3100 = vadd.f32 %v3060, 0.0
    %v3101 = vadd.f32 %v3061, 0.0
    %v3102 = vadd.f32 %v3062, 0.0
    %v3103 = vadd.f32 %v3063, 0.0
    %v3104 = vadd.f32 %v3064, 0.0
    %v3105 = vadd.f32 %v3065, 0.0
    %v3106 = vadd.f32 %v3066, 0.0
    %v3107 = vadd.f32 %v3067, 0.0
    %v3108 = vadd.f32 %v3068, 0.0
    %v3109 = vadd.f32 %v3069, 0.0
    %v3110 = vadd.f32 %v3070, 0.0
    %v3111 = vadd.f32 %v3071, 0.0
    %v3112 = vadd.f32 %v3072, 0.0
    %v3113 = vadd.f32 %v3073, 0.0
    %v3114 = vadd.f32 %v3074, 0.0
    %v3115 = vadd.f32 %v2971, %v3075
    %v3116 = vadd.f32 %v2972, %v3076
    %v3117 = vadd.f32 %v2973, %v3077
    %v3118 = vadd.f32 %v2974, %v3078
    %v3119 = vadd.f32 %v2975, %v3079
    %v3120 = vadd.f32 %v2976, %v3080
    %v3121 = vadd.f32 %v2977, %v3081
    %v3122 = vadd.f32 %v2978, %v3082
    %v3123 = vadd.f32 %v2979, %v3083
    %v3124 = vadd.f32 %v2980, %v3084
    %v3125 = vadd.f32 %v2981, %v3085
    %v3126 = vadd.f32 %v2982, %v3086
    %v3127 = vadd.f32 %v2983, %v3087
    %v3128 = vadd.f32 %v2984, %v3088
    %v3129 = vadd.f32 %v2985, %v3089
    %v3130 = vadd.f32 %v2986, %v3090
    %v3131 = vadd.f32 %v2987, %v3091
    %v3132 = vadd.f32 %v2988, %v3092
    %v3133 = vadd.f32 %v2989, %v3093
    %v3134 = vadd.f32 %v2990, %v3094
    %v3135 = vadd.f32 %v2991, %v3095
    %v3136 = vadd.f32 %v2992, %v3096
    %v3137 = vadd.f32 %v2993, %v3097
    %v3138 = vadd.f32 %v2994, %v3098
    %v3139 = vadd.f32 %v2995, %v3099
    %v3140 = vadd.f32 %v2996, %v3100
    %v3141 = vadd.f32 %v2997, %v3101
    %v3142 = vadd.f32 %v2998, %v3102
    %v3143 = vadd.f32 %v2999, %v3103
    %v3144 = vadd.f32 %v3000, %v3104
    %v3145 = vadd.f32 %v3001, %v3105
    %v3146 = vadd.f32 %v3002, %v3106
    %v3147 = vadd.f32 %v3003, %v3107
    %v3148 = vadd.f32 %v3004, %v3108
    %v3149 = vadd.f32 %v3005, %v3109
    %v3150 = vadd.f32 %v3006, %v3110
    %v3151 = vadd.f32 %v3007, %v3111
    %v3152 = vadd.f32 %v3008, %v3112
    %v3153 = vadd.f32 %v3009, %v3113
    %v3154 = vadd.f32 %v3010, %v3114
    %v3155 = vmul.f32 %v3115, 0.020408163
    %v3156 = vmul.f32 %v3116, 0.020408163
    %v3157 = vmul.f32 %v3117, 0.020408163
    %v3158 = vmul.f32 %v3118, 0.020408163
    %v3159 = vmul.f32 %v3119, 0.020408163
    %v3160 = vmul.f32 %v3120, 0.020408163
    %v3161 = vmul.f32 %v3121, 0.020408163
    %v3162 = vmul.f32 %v3122, 0.020408163
    %v3163 = vmul.f32 %v3123, 0.020408163
    %v3164 = vmul.f32 %v3124, 0.020408163
    %v3165 = vmul.f32 %v3125, 0.020408163
    %v3166 = vmul.f32 %v3126, 0.020408163
    %v3167 = vmul.f32 %v3127, 0.020408163
    %v3168 = vmul.f32 %v3128, 0.020408163
    %v3169 = vmul.f32 %v3129, 0.020408163
    %v3170 = vmul.f32 %v3130, 0.020408163
    %v3171 = vmul.f32 %v3131, 0.020408163
    %v3172 = vmul.f32 %v3132, 0.020408163
    %v3173 = vmul.f32 %v3133, 0.020408163
    %v3174 = vmul.f32 %v3134, 0.020408163
    %v3175 = vmul.f32 %v3135, 0.020408163
    %v3176 = vmul.f32 %v3136, 0.020408163
    %v3177 = vmul.f32 %v3137, 0.020408163
    %v3178 = vmul.f32 %v3138, 0.020408163
    %v3179 = vmul.f32 %v3139, 0.020408163
    %v3180 = vmul.f32 %v3140, 0.020408163
    %v3181 = vmul.f32 %v3141, 0.020408163
    %v3182 = vmul.f32 %v3142, 0.020408163
    %v3183 = vmul.f32 %v3143, 0.020408163
    %v3184 = vmul.f32 %v3144, 0.020408163
    %v3185 = vmul.f32 %v3145, 0.020408163
    %v3186 = vmul.f32 %v3146, 0.020408163
    %v3187 = vmul.f32 %v3147, 0.020408163
    %v3188 = vmul.f32 %v3148, 0.020408163
    %v3189 = vmul.f32 %v3149, 0.020408163
    %v3190 = vmul.f32 %v3150, 0.020408163
    %v3191 = vmul.f32 %v3151, 0.020408163
    %v3192 = vmul.f32 %v3152, 0.020408163
    %v3193 = vmul.f32 %v3153, 0.020408163
    %v3194 = vmul.f32 %v3154, 0.020408163
    %v3195 = vpack.c.bf16 %v1579, %v1579
    %v3196 = vpack.c.bf16 %v1580, %v1580
    %v3197 = vpack.c.bf16 %v1581, %v1581
    %v3198 = vpack.c.bf16 %v1582, %v1582
    %v3199 = vpack.c.bf16 %v1583, %v1583
    %v3200 = vpack.c.bf16 %v1584, %v1584
    %v3201 = vpack.c.bf16 %v1585, %v1585
    %v3202 = vpack.c.bf16 %v1586, %v1586
    %v3203 = vpack.c.bf16 %v1587, %v1587
    %v3204 = vpack.c.bf16 %v1588, %v1588
    %v3205 = vpack.c.bf16 %v1589, %v1589
    %v3206 = vpack.c.bf16 %v1590, %v1590
    %v3207 = vpack.c.bf16 %v1591, %v1591
    %v3208 = vpack.c.bf16 %v1592, %v1592
    %v3209 = vpack.c.bf16 %v1593, %v1593
    %v3210 = vpack.c.bf16 %v1594, %v1594
    %v3211 = vpack.c.bf16 %v1595, %v1595
    %v3212 = vpack.c.bf16 %v1596, %v1596
    %v3213 = vpack.c.bf16 %v1597, %v1597
    %v3214 = vpack.c.bf16 %v1598, %v1598
    %v3215 = vpack.c.bf16 %v1599, %v1599
    %v3216 = vpack.c.bf16 %v1600, %v1600
    %v3217 = vpack.c.bf16 %v1601, %v1601
    %v3218 = vpack.c.bf16 %v1602, %v1602
    %v3219 = vpack.c.bf16 %v1603, %v1603
    %v3220 = vpack.c.bf16 %v1604, %v1604
    %v3221 = vpack.c.bf16 %v1605, %v1605
    %v3222 = vpack.c.bf16 %v1606, %v1606
    %v3223 = vpack.c.bf16 %v1607, %v1607
    %v3224 = vpack.c.bf16 %v1608, %v1608
    %v3225 = vpack.c.bf16 %v1609, %v1609
    %v3226 = vpack.c.bf16 %v1610, %v1610
    %v3227 = vpack.c.bf16 %v1611, %v1611
    %v3228 = vpack.c.bf16 %v1612, %v1612
    %v3229 = vpack.c.bf16 %v1613, %v1613
    %v3230 = vpack.c.bf16 %v1614, %v1614
    %v3231 = vpack.c.bf16 %v1615, %v1615
    %v3232 = vpack.c.bf16 %v1616, %v1616
    %v3233 = vpack.c.bf16 %v1617, %v1617
    %v3234 = vpack.c.bf16 %v1618, %v1618
    %v3235 = vld [vmem:[%s3] sm:$0xf]
    %v3236 = vld [vmem:[%s3 + $0x4] sm:$0xf]
    %v3237 = vld [vmem:[%s3 + $0x8] sm:$0xf]
    %v3238 = vld [vmem:[%s3 + $0xc] sm:$0xf]
    %v3239 = vld [vmem:[%s3 + $0x10] sm:$0xf]
    %v3240 = vld [vmem:[%s3 + $0x14] sm:$0xf]
    %v3241 = vld [vmem:[%s3 + $0x18] sm:$0xf]
    %v3242 = vld [vmem:[%s3 + $0x1c] sm:$0xf]
    %v3243 = vld [vmem:[%s3 + $0x20] sm:$0xf]
    %v3244 = vld [vmem:[%s3 + $0x24] sm:$0xf]
    %v3245 = vld [vmem:[%s3 + $0x28] sm:$0xf]
    %v3246 = vld [vmem:[%s3 + $0x2c] sm:$0xf]
    %v3247 = vld [vmem:[%s3 + $0x30] sm:$0xf]
    %v3248 = vld [vmem:[%s3 + $0x34] sm:$0xf]
    %v3249 = vld [vmem:[%s3 + $0x38] sm:$0xf]
    %v3250 = vld [vmem:[%s3 + $0x3c] sm:$0xf]
    %v3251 = vld [vmem:[%s3 + $0x40] sm:$0xf]
    %v3252 = vld [vmem:[%s3 + $0x44] sm:$0xf]
    %v3253 = vld [vmem:[%s3 + $0x48] sm:$0xf]
    %v3254 = vld [vmem:[%s3 + $0x4c] sm:$0xf]
    %v3255 = vld [vmem:[%s3 + $0x50] sm:$0xf]
    %v3256 = vld [vmem:[%s3 + $0x54] sm:$0xf]
    %v3257 = vld [vmem:[%s3 + $0x58] sm:$0xf]
    %v3258 = vld [vmem:[%s3 + $0x5c] sm:$0xf]
    %v3259 = vld [vmem:[%s3 + $0x60] sm:$0xf]
    %v3260 = vld [vmem:[%s3 + $0x64] sm:$0xf]
    %v3261 = vld [vmem:[%s3 + $0x68] sm:$0xf]
    %v3262 = vld [vmem:[%s3 + $0x6c] sm:$0xf]
    %v3263 = vld [vmem:[%s3 + $0x70] sm:$0xf]
    %v3264 = vld [vmem:[%s3 + $0x74] sm:$0xf]
    %v3265 = vld [vmem:[%s3 + $0x78] sm:$0xf]
    %v3266 = vld [vmem:[%s3 + $0x7c] sm:$0xf]
    %v3267 = vld [vmem:[%s3 + $0x80] sm:$0xf]
    %v3268 = vld [vmem:[%s3 + $0x84] sm:$0xf]
    %v3269 = vld [vmem:[%s3 + $0x88] sm:$0xf]
    %v3270 = vld [vmem:[%s3 + $0x8c] sm:$0xf]
    %v3271 = vld [vmem:[%s3 + $0x90] sm:$0xf]
    %v3272 = vld [vmem:[%s3 + $0x94] sm:$0xf]
    %v3273 = vld [vmem:[%s3 + $0x98] sm:$0xf]
    %v3274 = vld [vmem:[%s3 + $0x9c] sm:$0xf]
    %v3275 = vld [vmem:[%s3 + $0xa0] sm:$0xf]
    %v3276 = vld [vmem:[%s3 + $0xa4] sm:$0xf]
    %v3277 = vld [vmem:[%s3 + $0xa8] sm:$0xf]
    %v3278 = vld [vmem:[%s3 + $0xac] sm:$0xf]
    %v3279 = vld [vmem:[%s3 + $0xb0] sm:$0xf]
    %v3280 = vld [vmem:[%s3 + $0xb4] sm:$0xf]
    %v3281 = vld [vmem:[%s3 + $0xb8] sm:$0xf]
    %v3282 = vld [vmem:[%s3 + $0xbc] sm:$0xf]
    %v3283 = vld [vmem:[%s3 + $0xc0] sm:$0xf]
    %v3284 = vld [vmem:[%s3 + $0xc4] sm:$0xf]
    %v3285 = vld [vmem:[%s3 + $0xc8] sm:$0xf]
    %v3286 = vld [vmem:[%s3 + $0xcc] sm:$0xf]
    %v3287 = vld [vmem:[%s3 + $0xd0] sm:$0xf]
    %v3288 = vld [vmem:[%s3 + $0xd4] sm:$0xf]
    %v3289 = vld [vmem:[%s3 + $0xd8] sm:$0xf]
    %v3290 = vld [vmem:[%s3 + $0xdc] sm:$0xf]
    %v3291 = vld [vmem:[%s3 + $0xe0] sm:$0xf]
    %v3292 = vld [vmem:[%s3 + $0xe4] sm:$0xf]
    %v3293 = vld [vmem:[%s3 + $0xe8] sm:$0xf]
    %v3294 = vld [vmem:[%s3 + $0xec] sm:$0xf]
    %v3295 = vld [vmem:[%s3 + $0xf0] sm:$0xf]
    %v3296 = vld [vmem:[%s3 + $0xf4] sm:$0xf]
    %v3297 = vld [vmem:[%s3 + $0xf8] sm:$0xf]
    %v3298 = vld [vmem:[%s3 + $0xfc] sm:$0xf]
    %v3299 = vld [vmem:[%s3 + $0x100] sm:$0xf]
    %v3300 = vld [vmem:[%s3 + $0x104] sm:$0xf]
    %v3301 = vld [vmem:[%s3 + $0x108] sm:$0xf]
    %v3302 = vld [vmem:[%s3 + $0x10c] sm:$0xf]
    %v3303 = vld [vmem:[%s3 + $0x110] sm:$0xf]
    %v3304 = vld [vmem:[%s3 + $0x114] sm:$0xf]
    %v3305 = vld [vmem:[%s3 + $0x118] sm:$0xf]
    %v3306 = vld [vmem:[%s3 + $0x11c] sm:$0xf]
    %v3307 = vpack.c.bf16 %v3155, %v3155
    %v3308 = vpack.c.bf16 %v3156, %v3156
    %v3309 = vpack.c.bf16 %v3157, %v3157
    %v3310 = vpack.c.bf16 %v3158, %v3158
    %v3311 = vpack.c.bf16 %v3159, %v3159
    %v3312 = vpack.c.bf16 %v3160, %v3160
    %v3313 = vpack.c.bf16 %v3161, %v3161
    %v3314 = vpack.c.bf16 %v3162, %v3162
    %v3315 = vpack.c.bf16 %v3163, %v3163
    %v3316 = vpack.c.bf16 %v3164, %v3164
    %v3317 = vpack.c.bf16 %v3165, %v3165
    %v3318 = vpack.c.bf16 %v3166, %v3166
    %v3319 = vpack.c.bf16 %v3167, %v3167
    %v3320 = vpack.c.bf16 %v3168, %v3168
    %v3321 = vpack.c.bf16 %v3169, %v3169
    %v3322 = vpack.c.bf16 %v3170, %v3170
    %v3323 = vpack.c.bf16 %v3171, %v3171
    %v3324 = vpack.c.bf16 %v3172, %v3172
    %v3325 = vpack.c.bf16 %v3173, %v3173
    %v3326 = vpack.c.bf16 %v3174, %v3174
    %v3327 = vpack.c.bf16 %v3175, %v3175
    %v3328 = vpack.c.bf16 %v3176, %v3176
    %v3329 = vpack.c.bf16 %v3177, %v3177
    %v3330 = vpack.c.bf16 %v3178, %v3178
    %v3331 = vpack.c.bf16 %v3179, %v3179
    %v3332 = vpack.c.bf16 %v3180, %v3180
    %v3333 = vpack.c.bf16 %v3181, %v3181
    %v3334 = vpack.c.bf16 %v3182, %v3182
    %v3335 = vpack.c.bf16 %v3183, %v3183
    %v3336 = vpack.c.bf16 %v3184, %v3184
    %v3337 = vpack.c.bf16 %v3185, %v3185
    %v3338 = vpack.c.bf16 %v3186, %v3186
    %v3339 = vpack.c.bf16 %v3187, %v3187
    %v3340 = vpack.c.bf16 %v3188, %v3188
    %v3341 = vpack.c.bf16 %v3189, %v3189
    %v3342 = vpack.c.bf16 %v3190, %v3190
    %v3343 = vpack.c.bf16 %v3191, %v3191
    %v3344 = vpack.c.bf16 %v3192, %v3192
    %v3345 = vpack.c.bf16 %v3193, %v3193
    %v3346 = vpack.c.bf16 %v3194, %v3194
    %v3347 = vld [vmem:[%s4] sm:$0xf]
    %v3348 = vld [vmem:[%s4 + $0x4] sm:$0xf]
    %v3349 = vld [vmem:[%s4 + $0x8] sm:$0xf]
    %v3350 = vld [vmem:[%s4 + $0xc] sm:$0xf]
    %v3351 = vld [vmem:[%s4 + $0x10] sm:$0xf]
    %v3352 = vld [vmem:[%s4 + $0x14] sm:$0xf]
    %v3353 = vld [vmem:[%s4 + $0x18] sm:$0xf]
    %v3354 = vld [vmem:[%s4 + $0x1c] sm:$0xf]
    %v3355 = vld [vmem:[%s4 + $0x20] sm:$0xf]
    %v3356 = vld [vmem:[%s4 + $0x24] sm:$0xf]
    %v3357 = vld [vmem:[%s4 + $0x28] sm:$0xf]
    %v3358 = vld [vmem:[%s4 + $0x2c] sm:$0xf]
    %v3359 = vld [vmem:[%s4 + $0x30] sm:$0xf]
    %v3360 = vld [vmem:[%s4 + $0x34] sm:$0xf]
    %v3361 = vld [vmem:[%s4 + $0x38] sm:$0xf]
    %v3362 = vld [vmem:[%s4 + $0x3c] sm:$0xf]
    %v3363 = vld [vmem:[%s4 + $0x40] sm:$0xf]
    %v3364 = vld [vmem:[%s4 + $0x44] sm:$0xf]
    %v3365 = vld [vmem:[%s4 + $0x48] sm:$0xf]
    %v3366 = vld [vmem:[%s4 + $0x4c] sm:$0xf]
    %v3367 = vld [vmem:[%s4 + $0x50] sm:$0xf]
    %v3368 = vld [vmem:[%s4 + $0x54] sm:$0xf]
    %v3369 = vld [vmem:[%s4 + $0x58] sm:$0xf]
    %v3370 = vld [vmem:[%s4 + $0x5c] sm:$0xf]
    %v3371 = vld [vmem:[%s4 + $0x60] sm:$0xf]
    %v3372 = vld [vmem:[%s4 + $0x64] sm:$0xf]
    %v3373 = vld [vmem:[%s4 + $0x68] sm:$0xf]
    %v3374 = vld [vmem:[%s4 + $0x6c] sm:$0xf]
    %v3375 = vld [vmem:[%s4 + $0x70] sm:$0xf]
    %v3376 = vld [vmem:[%s4 + $0x74] sm:$0xf]
    %v3377 = vld [vmem:[%s4 + $0x78] sm:$0xf]
    %v3378 = vld [vmem:[%s4 + $0x7c] sm:$0xf]
    %v3379 = vld [vmem:[%s4 + $0x80] sm:$0xf]
    %v3380 = vld [vmem:[%s4 + $0x84] sm:$0xf]
    %v3381 = vld [vmem:[%s4 + $0x88] sm:$0xf]
    %v3382 = vld [vmem:[%s4 + $0x8c] sm:$0xf]
    %v3383 = vld [vmem:[%s4 + $0x90] sm:$0xf]
    %v3384 = vld [vmem:[%s4 + $0x94] sm:$0xf]
    %v3385 = vld [vmem:[%s4 + $0x98] sm:$0xf]
    %v3386 = vld [vmem:[%s4 + $0x9c] sm:$0xf]
    %v3387 = vld [vmem:[%s4 + $0xa0] sm:$0xf]
    %v3388 = vld [vmem:[%s4 + $0xa4] sm:$0xf]
    %v3389 = vld [vmem:[%s4 + $0xa8] sm:$0xf]
    %v3390 = vld [vmem:[%s4 + $0xac] sm:$0xf]
    %v3391 = vld [vmem:[%s4 + $0xb0] sm:$0xf]
    %v3392 = vld [vmem:[%s4 + $0xb4] sm:$0xf]
    %v3393 = vld [vmem:[%s4 + $0xb8] sm:$0xf]
    %v3394 = vld [vmem:[%s4 + $0xbc] sm:$0xf]
    %v3395 = vld [vmem:[%s4 + $0xc0] sm:$0xf]
    %v3396 = vld [vmem:[%s4 + $0xc4] sm:$0xf]
    %v3397 = vld [vmem:[%s4 + $0xc8] sm:$0xf]
    %v3398 = vld [vmem:[%s4 + $0xcc] sm:$0xf]
    %v3399 = vld [vmem:[%s4 + $0xd0] sm:$0xf]
    %v3400 = vld [vmem:[%s4 + $0xd4] sm:$0xf]
    %v3401 = vld [vmem:[%s4 + $0xd8] sm:$0xf]
    %v3402 = vld [vmem:[%s4 + $0xdc] sm:$0xf]
    %v3403 = vld [vmem:[%s4 + $0xe0] sm:$0xf]
    %v3404 = vld [vmem:[%s4 + $0xe4] sm:$0xf]
    %v3405 = vld [vmem:[%s4 + $0xe8] sm:$0xf]
    %v3406 = vld [vmem:[%s4 + $0xec] sm:$0xf]
    %v3407 = vld [vmem:[%s4 + $0xf0] sm:$0xf]
    %v3408 = vld [vmem:[%s4 + $0xf4] sm:$0xf]
    %v3409 = vld [vmem:[%s4 + $0xf8] sm:$0xf]
    %v3410 = vld [vmem:[%s4 + $0xfc] sm:$0xf]
    %v3411 = vld [vmem:[%s4 + $0x100] sm:$0xf]
    %v3412 = vld [vmem:[%s4 + $0x104] sm:$0xf]
    %v3413 = vld [vmem:[%s4 + $0x108] sm:$0xf]
    %v3414 = vld [vmem:[%s4 + $0x10c] sm:$0xf]
    %v3415 = vld [vmem:[%s4 + $0x110] sm:$0xf]
    %v3416 = vld [vmem:[%s4 + $0x114] sm:$0xf]
    %v3417 = vld [vmem:[%s4 + $0x118] sm:$0xf]
    %v3418 = vld [vmem:[%s4 + $0x11c] sm:$0xf]
    %v3459 = vunpack.c.l.b16 %v3307
    %v3460 = vunpack.c.l.b16 %v3308
    %v3461 = vunpack.c.l.b16 %v3309
    %v3462 = vunpack.c.l.b16 %v3310
    %v3463 = vunpack.c.l.b16 %v3311
    %v3464 = vunpack.c.l.b16 %v3312
    %v3465 = vunpack.c.l.b16 %v3313
    %v3466 = vunpack.c.l.b16 %v3314
    %v3467 = vunpack.c.l.b16 %v3315
    %v3468 = vunpack.c.l.b16 %v3316
    %v3469 = vunpack.c.l.b16 %v3317
    %v3470 = vunpack.c.l.b16 %v3318
    %v3471 = vunpack.c.l.b16 %v3319
    %v3472 = vunpack.c.l.b16 %v3320
    %v3473 = vunpack.c.l.b16 %v3321
    %v3474 = vunpack.c.l.b16 %v3322
    %v3475 = vunpack.c.l.b16 %v3323
    %v3476 = vunpack.c.l.b16 %v3324
    %v3477 = vunpack.c.l.b16 %v3325
    %v3478 = vunpack.c.l.b16 %v3326
    %v3479 = vunpack.c.l.b16 %v3327
    %v3480 = vunpack.c.l.b16 %v3328
    %v3481 = vunpack.c.l.b16 %v3329
    %v3482 = vunpack.c.l.b16 %v3330
    %v3483 = vunpack.c.l.b16 %v3331
    %v3484 = vunpack.c.l.b16 %v3332
    %v3485 = vunpack.c.l.b16 %v3333
    %v3486 = vunpack.c.l.b16 %v3334
    %v3487 = vunpack.c.l.b16 %v3335
    %v3488 = vunpack.c.l.b16 %v3336
    %v3489 = vunpack.c.l.b16 %v3337
    %v3490 = vunpack.c.l.b16 %v3338
    %v3491 = vunpack.c.l.b16 %v3339
    %v3492 = vunpack.c.l.b16 %v3340
    %v3493 = vunpack.c.l.b16 %v3341
    %v3494 = vunpack.c.l.b16 %v3342
    %v3495 = vunpack.c.l.b16 %v3343
    %v3496 = vunpack.c.l.b16 %v3344
    %v3497 = vunpack.c.l.b16 %v3345
    %v3498 = vunpack.c.l.b16 %v3346
    %v3499 = vrot.slane %v3464, 7
    %vm3500 = vcmask 1041409
    %v3501 = vsel %vm3500, %v3499, %v3459
    %v3502 = vrot.slane %v3469, 6
    %vm3503 = vcmask 1042434
    %v3504 = vsel %vm3503, %v3502, %v3501
    %v3505 = vrot.slane %v3474, 5
    %vm3506 = vcmask 1043459
    %v3507 = vsel %vm3506, %v3505, %v3504
    %v3508 = vrot.slane %v3479, 4
    %vm3509 = vcmask 1044484
    %v3510 = vsel %vm3509, %v3508, %v3507
    %v3511 = vrot.slane %v3484, 3
    %vm3512 = vcmask 1045509
    %v3513 = vsel %vm3512, %v3511, %v3510
    %v3514 = vrot.slane %v3489, 2
    %vm3515 = vcmask 1046534
    %v3516 = vsel %vm3515, %v3514, %v3513
    %v3517 = vrot.slane %v3494, 1
    %vm3518 = vcmask 1047559
    %v3519 = vsel %vm3518, %v3517, %v3516
    %v3520 = vrot.slane %v3465, 7
    %v3521 = vsel %vm3500, %v3520, %v3460
    %v3522 = vrot.slane %v3470, 6
    %v3523 = vsel %vm3503, %v3522, %v3521
    %v3524 = vrot.slane %v3475, 5
    %v3525 = vsel %vm3506, %v3524, %v3523
    %v3526 = vrot.slane %v3480, 4
    %v3527 = vsel %vm3509, %v3526, %v3525
    %v3528 = vrot.slane %v3485, 3
    %v3529 = vsel %vm3512, %v3528, %v3527
    %v3530 = vrot.slane %v3490, 2
    %v3531 = vsel %vm3515, %v3530, %v3529
    %v3532 = vrot.slane %v3495, 1
    %v3533 = vsel %vm3518, %v3532, %v3531
    %v3534 = vrot.slane %v3466, 7
    %v3535 = vsel %vm3500, %v3534, %v3461
    %v3536 = vrot.slane %v3471, 6
    %v3537 = vsel %vm3503, %v3536, %v3535
    %v3538 = vrot.slane %v3476, 5
    %v3539 = vsel %vm3506, %v3538, %v3537
    %v3540 = vrot.slane %v3481, 4
    %v3541 = vsel %vm3509, %v3540, %v3539
    %v3542 = vrot.slane %v3486, 3
    %v3543 = vsel %vm3512, %v3542, %v3541
    %v3544 = vrot.slane %v3491, 2
    %v3545 = vsel %vm3515, %v3544, %v3543
    %v3546 = vrot.slane %v3496, 1
    %v3547 = vsel %vm3518, %v3546, %v3545
    %v3548 = vrot.slane %v3467, 7
    %v3549 = vsel %vm3500, %v3548, %v3462
    %v3550 = vrot.slane %v3472, 6
    %v3551 = vsel %vm3503, %v3550, %v3549
    %v3552 = vrot.slane %v3477, 5
    %v3553 = vsel %vm3506, %v3552, %v3551
    %v3554 = vrot.slane %v3482, 4
    %v3555 = vsel %vm3509, %v3554, %v3553
    %v3556 = vrot.slane %v3487, 3
    %v3557 = vsel %vm3512, %v3556, %v3555
    %v3558 = vrot.slane %v3492, 2
    %v3559 = vsel %vm3515, %v3558, %v3557
    %v3560 = vrot.slane %v3497, 1
    %v3561 = vsel %vm3518, %v3560, %v3559
    %v3562 = vrot.slane %v3468, 7
    %v3563 = vsel %vm3500, %v3562, %v3463
    %v3564 = vrot.slane %v3473, 6
    %v3565 = vsel %vm3503, %v3564, %v3563
    %v3566 = vrot.slane %v3478, 5
    %v3567 = vsel %vm3506, %v3566, %v3565
    %v3568 = vrot.slane %v3483, 4
    %v3569 = vsel %vm3509, %v3568, %v3567
    %v3570 = vrot.slane %v3488, 3
    %v3571 = vsel %vm3512, %v3570, %v3569
    %v3572 = vrot.slane %v3493, 2
    %v3573 = vsel %vm3515, %v3572, %v3571
    %v3574 = vrot.slane %v3498, 1
    %v3575 = vsel %vm3518, %v3574, %v3573
    %v3576 = vpack.c.b16 %v3519, %v3519
    %v3577 = vpack.c.b16 %v3533, %v3533
    %v3578 = vpack.c.b16 %v3547, %v3547
    %v3579 = vpack.c.b16 %v3561, %v3561
    %v3580 = vpack.c.b16 %v3575, %v3575
    %v3657 = vunpack.c.l.b16 %v3347
    %v3658 = vunpack.c.l.b16 %v3348
    %v3659 = vunpack.c.l.b16 %v3349
    %v3660 = vunpack.c.l.b16 %v3350
    %v3661 = vunpack.c.l.b16 %v3351
    %v3662 = vunpack.c.l.b16 %v3352
    %v3663 = vunpack.c.l.b16 %v3353
    %v3664 = vunpack.c.l.b16 %v3354
    %v3665 = vunpack.c.l.b16 %v3355
    %v3666 = vunpack.c.l.b16 %v3356
    %v3667 = vunpack.c.l.b16 %v3357
    %v3668 = vunpack.c.l.b16 %v3358
    %v3669 = vunpack.c.l.b16 %v3359
    %v3670 = vunpack.c.l.b16 %v3360
    %v3671 = vunpack.c.l.b16 %v3361
    %v3672 = vunpack.c.l.b16 %v3362
    %v3673 = vunpack.c.l.b16 %v3363
    %v3674 = vunpack.c.l.b16 %v3364
    %v3675 = vunpack.c.l.b16 %v3365
    %v3676 = vunpack.c.l.b16 %v3366
    %v3677 = vunpack.c.l.b16 %v3367
    %v3678 = vunpack.c.l.b16 %v3368
    %v3679 = vunpack.c.l.b16 %v3369
    %v3680 = vunpack.c.l.b16 %v3370
    %v3681 = vunpack.c.l.b16 %v3371
    %v3682 = vunpack.c.l.b16 %v3372
    %v3683 = vunpack.c.l.b16 %v3373
    %v3684 = vunpack.c.l.b16 %v3374
    %v3685 = vunpack.c.l.b16 %v3375
    %v3686 = vunpack.c.l.b16 %v3376
    %v3687 = vunpack.c.l.b16 %v3377
    %v3688 = vunpack.c.l.b16 %v3378
    %v3689 = vunpack.c.l.b16 %v3379
    %v3690 = vunpack.c.l.b16 %v3380
    %v3691 = vunpack.c.l.b16 %v3381
    %v3692 = vunpack.c.l.b16 %v3382
    %v3693 = vunpack.c.l.b16 %v3383
    %v3694 = vunpack.c.l.b16 %v3384
    %v3695 = vunpack.c.l.b16 %v3385
    %v3696 = vunpack.c.l.b16 %v3386
    %v3697 = vunpack.c.l.b16 %v3387
    %v3698 = vunpack.c.l.b16 %v3388
    %v3699 = vunpack.c.l.b16 %v3389
    %v3700 = vunpack.c.l.b16 %v3390
    %v3701 = vunpack.c.l.b16 %v3391
    %v3702 = vunpack.c.l.b16 %v3392
    %v3703 = vunpack.c.l.b16 %v3393
    %v3704 = vunpack.c.l.b16 %v3394
    %v3705 = vunpack.c.l.b16 %v3395
    %v3706 = vunpack.c.l.b16 %v3396
    %v3707 = vunpack.c.l.b16 %v3397
    %v3708 = vunpack.c.l.b16 %v3398
    %v3709 = vunpack.c.l.b16 %v3399
    %v3710 = vunpack.c.l.b16 %v3400
    %v3711 = vunpack.c.l.b16 %v3401
    %v3712 = vunpack.c.l.b16 %v3402
    %v3713 = vunpack.c.l.b16 %v3403
    %v3714 = vunpack.c.l.b16 %v3404
    %v3715 = vunpack.c.l.b16 %v3405
    %v3716 = vunpack.c.l.b16 %v3406
    %v3717 = vunpack.c.l.b16 %v3407
    %v3718 = vunpack.c.l.b16 %v3408
    %v3719 = vunpack.c.l.b16 %v3409
    %v3720 = vunpack.c.l.b16 %v3410
    %v3721 = vunpack.c.l.b16 %v3411
    %v3722 = vunpack.c.l.b16 %v3412
    %v3723 = vunpack.c.l.b16 %v3413
    %v3724 = vunpack.c.l.b16 %v3414
    %v3725 = vunpack.c.l.b16 %v3415
    %v3726 = vunpack.c.l.b16 %v3416
    %v3727 = vunpack.c.l.b16 %v3417
    %v3728 = vunpack.c.l.b16 %v3418
    %v3729 = vpack.c.b16 %v3658, %v3657
    %v3730 = vpack.c.b16 %v3660, %v3659
    %v3731 = vpack.c.b16 %v3662, %v3661
    %v3732 = vpack.c.b16 %v3664, %v3663
    %v3733 = vpack.c.b16 %v3666, %v3665
    %v3734 = vpack.c.b16 %v3668, %v3667
    %v3735 = vpack.c.b16 %v3670, %v3669
    %v3736 = vpack.c.b16 %v3672, %v3671
    %v3737 = vpack.c.b16 %v3674, %v3673
    %v3738 = vpack.c.b16 %v3676, %v3675
    %v3739 = vpack.c.b16 %v3678, %v3677
    %v3740 = vpack.c.b16 %v3680, %v3679
    %v3741 = vpack.c.b16 %v3682, %v3681
    %v3742 = vpack.c.b16 %v3684, %v3683
    %v3743 = vpack.c.b16 %v3686, %v3685
    %v3744 = vpack.c.b16 %v3688, %v3687
    %v3745 = vpack.c.b16 %v3690, %v3689
    %v3746 = vpack.c.b16 %v3692, %v3691
    %v3747 = vpack.c.b16 %v3694, %v3693
    %v3748 = vpack.c.b16 %v3696, %v3695
    %v3749 = vpack.c.b16 %v3698, %v3697
    %v3750 = vpack.c.b16 %v3700, %v3699
    %v3751 = vpack.c.b16 %v3702, %v3701
    %v3752 = vpack.c.b16 %v3704, %v3703
    %v3753 = vpack.c.b16 %v3706, %v3705
    %v3754 = vpack.c.b16 %v3708, %v3707
    %v3755 = vpack.c.b16 %v3710, %v3709
    %v3756 = vpack.c.b16 %v3712, %v3711
    %v3757 = vpack.c.b16 %v3714, %v3713
    %v3758 = vpack.c.b16 %v3716, %v3715
    %v3759 = vpack.c.b16 %v3718, %v3717
    %v3760 = vpack.c.b16 %v3720, %v3719
    %v3761 = vpack.c.b16 %v3722, %v3721
    %v3762 = vpack.c.b16 %v3724, %v3723
    %v3763 = vpack.c.b16 %v3726, %v3725
    %v3764 = vpack.c.b16 %v3728, %v3727
    %v3802 = vsel %vm198, %v3580, 0
    %3804 = vmatpush.bf16.msra.mxu0 %v3736
    %3805 = vmatpush.bf16.msra.mxu0 %v3735
    %3806 = vmatpush.bf16.msra.mxu0 %v3734
    %3807 = vmatpush.bf16.msra.mxu0 %v3733
    %3808 = vmatpush.bf16.msra.mxu0 %v3732
    %3809 = vmatpush.bf16.msra.mxu0 %v3731
    %3810 = vmatpush.bf16.msra.mxu0 %v3730
    %3811 = vmatpush.bf16.msra.mxu0 %v3729
    %3812 = vmatmul.bf16.gmra.mxu0 %v3576
    %v3813 = vpop.f32.mrf.mxu0
    %v3814 = vadd.f32 0.0, %v3813
    %v3815 = vpop.f32.mrf.mxu0
    %3816 = vdwg.mxu0
    %3817 = vmatpush.bf16.msra.mxu0 %v3744
    %3818 = vmatpush.bf16.msra.mxu0 %v3743
    %3819 = vmatpush.bf16.msra.mxu0 %v3742
    %3820 = vmatpush.bf16.msra.mxu0 %v3741
    %3821 = vmatpush.bf16.msra.mxu0 %v3740
    %3822 = vmatpush.bf16.msra.mxu0 %v3739
    %3823 = vmatpush.bf16.msra.mxu0 %v3738
    %3824 = vmatpush.bf16.msra.mxu0 %v3737
    %3825 = vmatmul.bf16.gmra.mxu0 %v3577
    %v3826 = vpop.f32.mrf.mxu0
    %v3827 = vadd.f32 %v3814, %v3826
    %v3828 = vpop.f32.mrf.mxu0
    %3829 = vdwg.mxu0
    %3830 = vmatpush.bf16.msra.mxu0 %v3752
    %3831 = vmatpush.bf16.msra.mxu0 %v3751
    %3832 = vmatpush.bf16.msra.mxu0 %v3750
    %3833 = vmatpush.bf16.msra.mxu0 %v3749
    %3834 = vmatpush.bf16.msra.mxu0 %v3748
    %3835 = vmatpush.bf16.msra.mxu0 %v3747
    %3836 = vmatpush.bf16.msra.mxu0 %v3746
    %3837 = vmatpush.bf16.msra.mxu0 %v3745
    %3838 = vmatmul.bf16.gmra.mxu0 %v3578
    %v3839 = vpop.f32.mrf.mxu0
    %v3840 = vadd.f32 %v3827, %v3839
    %v3841 = vpop.f32.mrf.mxu0
    %3842 = vdwg.mxu0
    %3843 = vmatpush.bf16.msra.mxu0 %v3760
    %3844 = vmatpush.bf16.msra.mxu0 %v3759
    %3845 = vmatpush.bf16.msra.mxu0 %v3758
    %3846 = vmatpush.bf16.msra.mxu0 %v3757
    %3847 = vmatpush.bf16.msra.mxu0 %v3756
    %3848 = vmatpush.bf16.msra.mxu0 %v3755
    %3849 = vmatpush.bf16.msra.mxu0 %v3754
    %3850 = vmatpush.bf16.msra.mxu0 %v3753
    %3851 = vmatmul.bf16.gmra.mxu0 %v3579
    %v3852 = vpop.f32.mrf.mxu0
    %v3853 = vadd.f32 %v3840, %v3852
    %v3854 = vpop.f32.mrf.mxu0
    %3855 = vdwg.mxu0
    %3856 = vmatpush.bf16.msra.mxu0 0
    %3857 = vmatpush.bf16.msra.mxu0 0
    %3858 = vmatpush.bf16.msra.mxu0 0
    %3859 = vmatpush.bf16.msra.mxu0 0
    %3860 = vmatpush.bf16.msra.mxu0 %v3764
    %3861 = vmatpush.bf16.msra.mxu0 %v3763
    %3862 = vmatpush.bf16.msra.mxu0 %v3762
    %3863 = vmatpush.bf16.msra.mxu0 %v3761
    %3864 = vmatmul.bf16.gmra.mxu0 %v3802
    %v3865 = vpop.f32.mrf.mxu0
    %v3866 = vadd.f32 %v3853, %v3865
    %v3867 = vpop.f32.mrf.mxu0
    %3868 = vdwg.mxu0
    %v3909 = vunpack.c.l.b16 %v3195
    %v3910 = vunpack.c.l.b16 %v3196
    %v3911 = vunpack.c.l.b16 %v3197
    %v3912 = vunpack.c.l.b16 %v3198
    %v3913 = vunpack.c.l.b16 %v3199
    %v3914 = vunpack.c.l.b16 %v3200
    %v3915 = vunpack.c.l.b16 %v3201
    %v3916 = vunpack.c.l.b16 %v3202
    %v3917 = vunpack.c.l.b16 %v3203
    %v3918 = vunpack.c.l.b16 %v3204
    %v3919 = vunpack.c.l.b16 %v3205
    %v3920 = vunpack.c.l.b16 %v3206
    %v3921 = vunpack.c.l.b16 %v3207
    %v3922 = vunpack.c.l.b16 %v3208
    %v3923 = vunpack.c.l.b16 %v3209
    %v3924 = vunpack.c.l.b16 %v3210
    %v3925 = vunpack.c.l.b16 %v3211
    %v3926 = vunpack.c.l.b16 %v3212
    %v3927 = vunpack.c.l.b16 %v3213
    %v3928 = vunpack.c.l.b16 %v3214
    %v3929 = vunpack.c.l.b16 %v3215
    %v3930 = vunpack.c.l.b16 %v3216
    %v3931 = vunpack.c.l.b16 %v3217
    %v3932 = vunpack.c.l.b16 %v3218
    %v3933 = vunpack.c.l.b16 %v3219
    %v3934 = vunpack.c.l.b16 %v3220
    %v3935 = vunpack.c.l.b16 %v3221
    %v3936 = vunpack.c.l.b16 %v3222
    %v3937 = vunpack.c.l.b16 %v3223
    %v3938 = vunpack.c.l.b16 %v3224
    %v3939 = vunpack.c.l.b16 %v3225
    %v3940 = vunpack.c.l.b16 %v3226
    %v3941 = vunpack.c.l.b16 %v3227
    %v3942 = vunpack.c.l.b16 %v3228
    %v3943 = vunpack.c.l.b16 %v3229
    %v3944 = vunpack.c.l.b16 %v3230
    %v3945 = vunpack.c.l.b16 %v3231
    %v3946 = vunpack.c.l.b16 %v3232
    %v3947 = vunpack.c.l.b16 %v3233
    %v3948 = vunpack.c.l.b16 %v3234
    %v3949 = vrot.slane %v3914, 7
    %v3950 = vsel %vm3500, %v3949, %v3909
    %v3951 = vrot.slane %v3919, 6
    %v3952 = vsel %vm3503, %v3951, %v3950
    %v3953 = vrot.slane %v3924, 5
    %v3954 = vsel %vm3506, %v3953, %v3952
    %v3955 = vrot.slane %v3929, 4
    %v3956 = vsel %vm3509, %v3955, %v3954
    %v3957 = vrot.slane %v3934, 3
    %v3958 = vsel %vm3512, %v3957, %v3956
    %v3959 = vrot.slane %v3939, 2
    %v3960 = vsel %vm3515, %v3959, %v3958
    %v3961 = vrot.slane %v3944, 1
    %v3962 = vsel %vm3518, %v3961, %v3960
    %v3963 = vrot.slane %v3915, 7
    %v3964 = vsel %vm3500, %v3963, %v3910
    %v3965 = vrot.slane %v3920, 6
    %v3966 = vsel %vm3503, %v3965, %v3964
    %v3967 = vrot.slane %v3925, 5
    %v3968 = vsel %vm3506, %v3967, %v3966
    %v3969 = vrot.slane %v3930, 4
    %v3970 = vsel %vm3509, %v3969, %v3968
    %v3971 = vrot.slane %v3935, 3
    %v3972 = vsel %vm3512, %v3971, %v3970
    %v3973 = vrot.slane %v3940, 2
    %v3974 = vsel %vm3515, %v3973, %v3972
    %v3975 = vrot.slane %v3945, 1
    %v3976 = vsel %vm3518, %v3975, %v3974
    %v3977 = vrot.slane %v3916, 7
    %v3978 = vsel %vm3500, %v3977, %v3911
    %v3979 = vrot.slane %v3921, 6
    %v3980 = vsel %vm3503, %v3979, %v3978
    %v3981 = vrot.slane %v3926, 5
    %v3982 = vsel %vm3506, %v3981, %v3980
    %v3983 = vrot.slane %v3931, 4
    %v3984 = vsel %vm3509, %v3983, %v3982
    %v3985 = vrot.slane %v3936, 3
    %v3986 = vsel %vm3512, %v3985, %v3984
    %v3987 = vrot.slane %v3941, 2
    %v3988 = vsel %vm3515, %v3987, %v3986
    %v3989 = vrot.slane %v3946, 1
    %v3990 = vsel %vm3518, %v3989, %v3988
    %v3991 = vrot.slane %v3917, 7
    %v3992 = vsel %vm3500, %v3991, %v3912
    %v3993 = vrot.slane %v3922, 6
    %v3994 = vsel %vm3503, %v3993, %v3992
    %v3995 = vrot.slane %v3927, 5
    %v3996 = vsel %vm3506, %v3995, %v3994
    %v3997 = vrot.slane %v3932, 4
    %v3998 = vsel %vm3509, %v3997, %v3996
    %v3999 = vrot.slane %v3937, 3
    %v4000 = vsel %vm3512, %v3999, %v3998
    %v4001 = vrot.slane %v3942, 2
    %v4002 = vsel %vm3515, %v4001, %v4000
    %v4003 = vrot.slane %v3947, 1
    %v4004 = vsel %vm3518, %v4003, %v4002
    %v4005 = vrot.slane %v3918, 7
    %v4006 = vsel %vm3500, %v4005, %v3913
    %v4007 = vrot.slane %v3923, 6
    %v4008 = vsel %vm3503, %v4007, %v4006
    %v4009 = vrot.slane %v3928, 5
    %v4010 = vsel %vm3506, %v4009, %v4008
    %v4011 = vrot.slane %v3933, 4
    %v4012 = vsel %vm3509, %v4011, %v4010
    %v4013 = vrot.slane %v3938, 3
    %v4014 = vsel %vm3512, %v4013, %v4012
    %v4015 = vrot.slane %v3943, 2
    %v4016 = vsel %vm3515, %v4015, %v4014
    %v4017 = vrot.slane %v3948, 1
    %v4018 = vsel %vm3518, %v4017, %v4016
    %v4019 = vpack.c.b16 %v3962, %v3962
    %v4020 = vpack.c.b16 %v3976, %v3976
    %v4021 = vpack.c.b16 %v3990, %v3990
    %v4022 = vpack.c.b16 %v4004, %v4004
    %v4023 = vpack.c.b16 %v4018, %v4018
    %v4100 = vunpack.c.l.b16 %v3235
    %v4101 = vunpack.c.l.b16 %v3236
    %v4102 = vunpack.c.l.b16 %v3237
    %v4103 = vunpack.c.l.b16 %v3238
    %v4104 = vunpack.c.l.b16 %v3239
    %v4105 = vunpack.c.l.b16 %v3240
    %v4106 = vunpack.c.l.b16 %v3241
    %v4107 = vunpack.c.l.b16 %v3242
    %v4108 = vunpack.c.l.b16 %v3243
    %v4109 = vunpack.c.l.b16 %v3244
    %v4110 = vunpack.c.l.b16 %v3245
    %v4111 = vunpack.c.l.b16 %v3246
    %v4112 = vunpack.c.l.b16 %v3247
    %v4113 = vunpack.c.l.b16 %v3248
    %v4114 = vunpack.c.l.b16 %v3249
    %v4115 = vunpack.c.l.b16 %v3250
    %v4116 = vunpack.c.l.b16 %v3251
    %v4117 = vunpack.c.l.b16 %v3252
    %v4118 = vunpack.c.l.b16 %v3253
    %v4119 = vunpack.c.l.b16 %v3254
    %v4120 = vunpack.c.l.b16 %v3255
    %v4121 = vunpack.c.l.b16 %v3256
    %v4122 = vunpack.c.l.b16 %v3257
    %v4123 = vunpack.c.l.b16 %v3258
    %v4124 = vunpack.c.l.b16 %v3259
    %v4125 = vunpack.c.l.b16 %v3260
    %v4126 = vunpack.c.l.b16 %v3261
    %v4127 = vunpack.c.l.b16 %v3262
    %v4128 = vunpack.c.l.b16 %v3263
    %v4129 = vunpack.c.l.b16 %v3264
    %v4130 = vunpack.c.l.b16 %v3265
    %v4131 = vunpack.c.l.b16 %v3266
    %v4132 = vunpack.c.l.b16 %v3267
    %v4133 = vunpack.c.l.b16 %v3268
    %v4134 = vunpack.c.l.b16 %v3269
    %v4135 = vunpack.c.l.b16 %v3270
    %v4136 = vunpack.c.l.b16 %v3271
    %v4137 = vunpack.c.l.b16 %v3272
    %v4138 = vunpack.c.l.b16 %v3273
    %v4139 = vunpack.c.l.b16 %v3274
    %v4140 = vunpack.c.l.b16 %v3275
    %v4141 = vunpack.c.l.b16 %v3276
    %v4142 = vunpack.c.l.b16 %v3277
    %v4143 = vunpack.c.l.b16 %v3278
    %v4144 = vunpack.c.l.b16 %v3279
    %v4145 = vunpack.c.l.b16 %v3280
    %v4146 = vunpack.c.l.b16 %v3281
    %v4147 = vunpack.c.l.b16 %v3282
    %v4148 = vunpack.c.l.b16 %v3283
    %v4149 = vunpack.c.l.b16 %v3284
    %v4150 = vunpack.c.l.b16 %v3285
    %v4151 = vunpack.c.l.b16 %v3286
    %v4152 = vunpack.c.l.b16 %v3287
    %v4153 = vunpack.c.l.b16 %v3288
    %v4154 = vunpack.c.l.b16 %v3289
    %v4155 = vunpack.c.l.b16 %v3290
    %v4156 = vunpack.c.l.b16 %v3291
    %v4157 = vunpack.c.l.b16 %v3292
    %v4158 = vunpack.c.l.b16 %v3293
    %v4159 = vunpack.c.l.b16 %v3294
    %v4160 = vunpack.c.l.b16 %v3295
    %v4161 = vunpack.c.l.b16 %v3296
    %v4162 = vunpack.c.l.b16 %v3297
    %v4163 = vunpack.c.l.b16 %v3298
    %v4164 = vunpack.c.l.b16 %v3299
    %v4165 = vunpack.c.l.b16 %v3300
    %v4166 = vunpack.c.l.b16 %v3301
    %v4167 = vunpack.c.l.b16 %v3302
    %v4168 = vunpack.c.l.b16 %v3303
    %v4169 = vunpack.c.l.b16 %v3304
    %v4170 = vunpack.c.l.b16 %v3305
    %v4171 = vunpack.c.l.b16 %v3306
    %v4172 = vpack.c.b16 %v4101, %v4100
    %v4173 = vpack.c.b16 %v4103, %v4102
    %v4174 = vpack.c.b16 %v4105, %v4104
    %v4175 = vpack.c.b16 %v4107, %v4106
    %v4176 = vpack.c.b16 %v4109, %v4108
    %v4177 = vpack.c.b16 %v4111, %v4110
    %v4178 = vpack.c.b16 %v4113, %v4112
    %v4179 = vpack.c.b16 %v4115, %v4114
    %v4180 = vpack.c.b16 %v4117, %v4116
    %v4181 = vpack.c.b16 %v4119, %v4118
    %v4182 = vpack.c.b16 %v4121, %v4120
    %v4183 = vpack.c.b16 %v4123, %v4122
    %v4184 = vpack.c.b16 %v4125, %v4124
    %v4185 = vpack.c.b16 %v4127, %v4126
    %v4186 = vpack.c.b16 %v4129, %v4128
    %v4187 = vpack.c.b16 %v4131, %v4130
    %v4188 = vpack.c.b16 %v4133, %v4132
    %v4189 = vpack.c.b16 %v4135, %v4134
    %v4190 = vpack.c.b16 %v4137, %v4136
    %v4191 = vpack.c.b16 %v4139, %v4138
    %v4192 = vpack.c.b16 %v4141, %v4140
    %v4193 = vpack.c.b16 %v4143, %v4142
    %v4194 = vpack.c.b16 %v4145, %v4144
    %v4195 = vpack.c.b16 %v4147, %v4146
    %v4196 = vpack.c.b16 %v4149, %v4148
    %v4197 = vpack.c.b16 %v4151, %v4150
    %v4198 = vpack.c.b16 %v4153, %v4152
    %v4199 = vpack.c.b16 %v4155, %v4154
    %v4200 = vpack.c.b16 %v4157, %v4156
    %v4201 = vpack.c.b16 %v4159, %v4158
    %v4202 = vpack.c.b16 %v4161, %v4160
    %v4203 = vpack.c.b16 %v4163, %v4162
    %v4204 = vpack.c.b16 %v4165, %v4164
    %v4205 = vpack.c.b16 %v4167, %v4166
    %v4206 = vpack.c.b16 %v4169, %v4168
    %v4207 = vpack.c.b16 %v4171, %v4170
    %v4245 = vsel %vm198, %v4023, 0
    %4247 = vmatpush.bf16.msra.mxu0 %v4179
    %4248 = vmatpush.bf16.msra.mxu0 %v4178
    %4249 = vmatpush.bf16.msra.mxu0 %v4177
    %4250 = vmatpush.bf16.msra.mxu0 %v4176
    %4251 = vmatpush.bf16.msra.mxu0 %v4175
    %4252 = vmatpush.bf16.msra.mxu0 %v4174
    %4253 = vmatpush.bf16.msra.mxu0 %v4173
    %4254 = vmatpush.bf16.msra.mxu0 %v4172
    %4255 = vmatmul.bf16.gmra.mxu0 %v4019
    %v4256 = vpop.f32.mrf.mxu0
    %v4257 = vadd.f32 %v3866, %v4256
    %v4258 = vpop.f32.mrf.mxu0
    %4259 = vdwg.mxu0
    %4260 = vmatpush.bf16.msra.mxu0 %v4187
    %4261 = vmatpush.bf16.msra.mxu0 %v4186
    %4262 = vmatpush.bf16.msra.mxu0 %v4185
    %4263 = vmatpush.bf16.msra.mxu0 %v4184
    %4264 = vmatpush.bf16.msra.mxu0 %v4183
    %4265 = vmatpush.bf16.msra.mxu0 %v4182
    %4266 = vmatpush.bf16.msra.mxu0 %v4181
    %4267 = vmatpush.bf16.msra.mxu0 %v4180
    %4268 = vmatmul.bf16.gmra.mxu0 %v4020
    %v4269 = vpop.f32.mrf.mxu0
    %v4270 = vadd.f32 %v4257, %v4269
    %v4271 = vpop.f32.mrf.mxu0
    %4272 = vdwg.mxu0
    %4273 = vmatpush.bf16.msra.mxu0 %v4195
    %4274 = vmatpush.bf16.msra.mxu0 %v4194
    %4275 = vmatpush.bf16.msra.mxu0 %v4193
    %4276 = vmatpush.bf16.msra.mxu0 %v4192
    %4277 = vmatpush.bf16.msra.mxu0 %v4191
    %4278 = vmatpush.bf16.msra.mxu0 %v4190
    %4279 = vmatpush.bf16.msra.mxu0 %v4189
    %4280 = vmatpush.bf16.msra.mxu0 %v4188
    %4281 = vmatmul.bf16.gmra.mxu0 %v4021
    %v4282 = vpop.f32.mrf.mxu0
    %v4283 = vadd.f32 %v4270, %v4282
    %v4284 = vpop.f32.mrf.mxu0
    %4285 = vdwg.mxu0
    %4286 = vmatpush.bf16.msra.mxu0 %v4203
    %4287 = vmatpush.bf16.msra.mxu0 %v4202
    %4288 = vmatpush.bf16.msra.mxu0 %v4201
    %4289 = vmatpush.bf16.msra.mxu0 %v4200
    %4290 = vmatpush.bf16.msra.mxu0 %v4199
    %4291 = vmatpush.bf16.msra.mxu0 %v4198
    %4292 = vmatpush.bf16.msra.mxu0 %v4197
    %4293 = vmatpush.bf16.msra.mxu0 %v4196
    %4294 = vmatmul.bf16.gmra.mxu0 %v4022
    %v4295 = vpop.f32.mrf.mxu0
    %v4296 = vadd.f32 %v4283, %v4295
    %v4297 = vpop.f32.mrf.mxu0
    %4298 = vdwg.mxu0
    %4299 = vmatpush.bf16.msra.mxu0 0
    %4300 = vmatpush.bf16.msra.mxu0 0
    %4301 = vmatpush.bf16.msra.mxu0 0
    %4302 = vmatpush.bf16.msra.mxu0 0
    %4303 = vmatpush.bf16.msra.mxu0 %v4207
    %4304 = vmatpush.bf16.msra.mxu0 %v4206
    %4305 = vmatpush.bf16.msra.mxu0 %v4205
    %4306 = vmatpush.bf16.msra.mxu0 %v4204
    %4307 = vmatmul.bf16.gmra.mxu0 %v4245
    %v4308 = vpop.f32.mrf.mxu0
    %v4309 = vadd.f32 %v4296, %v4308
    %v4310 = vpop.f32.mrf.mxu0
    %4311 = vdwg.mxu0
    %v4312 = vld [vmem:[%s5] sm:$0x1]
    %v4314 = vperm.slane %v4312, 0
    %v4316 = vadd.f32 %v4309, %v4314
    %v4317 = vmax.f32 %v4316, 0.0
    %v4318 = vld [vmem:[%s2] sm:$0xff]
    %v4319 = vld [vmem:[%s6] sm:$0xff]
    %v4320 = vld [vmem:[%s6 + $0x8] sm:$0xff]
    %v4321 = vld [vmem:[%s6 + $0x10] sm:$0xff]
    %v4322 = vld [vmem:[%s6 + $0x18] sm:$0xff]
    %v4323 = vld [vmem:[%s6 + $0x20] sm:$0xff]
    %v4324 = vld [vmem:[%s6 + $0x28] sm:$0xff]
    %v4325 = vld [vmem:[%s6 + $0x30] sm:$0xff]
    %v4326 = vld [vmem:[%s6 + $0x38] sm:$0xff]
    %v4327 = vld [vmem:[%s6 + $0x40] sm:$0xff]
    %v4328 = vld [vmem:[%s6 + $0x48] sm:$0xff]
    %v4329 = vld [vmem:[%s6 + $0x50] sm:$0xff]
    %v4330 = vld [vmem:[%s6 + $0x58] sm:$0xff]
    %v4331 = vld [vmem:[%s6 + $0x60] sm:$0xff]
    %v4332 = vld [vmem:[%s6 + $0x68] sm:$0xff]
    %v4333 = vld [vmem:[%s6 + $0x70] sm:$0xff]
    %v4334 = vld [vmem:[%s6 + $0x78] sm:$0xff]
    %v4335 = vld [vmem:[%s8] sm:$0x1]
    %v4337 = vperm.slane %v4335, 0
    %4339 = vmatpush.msra.mxu0 %v4334
    %4340 = vmatpush.msra.mxu0 %v4333
    %4341 = vmatpush.msra.mxu0 %v4332
    %4342 = vmatpush.msra.mxu0 %v4331
    %4343 = vmatpush.msra.mxu0 %v4330
    %4344 = vmatpush.msra.mxu0 %v4329
    %4345 = vmatpush.msra.mxu0 %v4328
    %4346 = vmatpush.msra.mxu0 %v4327
    %4347 = vmatpush.msra.mxu0 %v4326
    %4348 = vmatpush.msra.mxu0 %v4325
    %4349 = vmatpush.msra.mxu0 %v4324
    %4350 = vmatpush.msra.mxu0 %v4323
    %4351 = vmatpush.msra.mxu0 %v4322
    %4352 = vmatpush.msra.mxu0 %v4321
    %4353 = vmatpush.msra.mxu0 %v4320
    %4354 = vmatpush.msra.mxu0 %v4319
    %4355 = vmatmul.f32.gmra.mxu0 %v4317
    %v4356 = vpop.f32.mrf.mxu0
    %v4357 = vadd.f32 %v4337, %v4356
    %4358 = vdwg.mxu0
    %v4359 = vld [vmem:[%s7] sm:$0x3f]
    %4361 = vset.pattern.permute.xlu0 0
    %4362 = vperm.xlu0 %4361, %v4318
    %v4363 = vpop.permute.xlu0 %4362
    %v4365 = vperm.slane %v4359, 0
    %v4366 = vmul.f32 %v4363, %v4365
    %v4367 = vadd.f32 %v4357, %v4366
    %4368 = vset.pattern.permute.xlu0 1
    %4369 = vperm.xlu0 %4368, %v4318
    %v4370 = vpop.permute.xlu0 %4369
    %v4372 = vperm.slane %v4359, 1
    %v4373 = vmul.f32 %v4370, %v4372
    %v4374 = vadd.f32 %v4367, %v4373
    %4375 = vset.pattern.permute.xlu0 2
    %4376 = vperm.xlu0 %4375, %v4318
    %v4377 = vpop.permute.xlu0 %4376
    %v4379 = vperm.slane %v4359, 2
    %v4380 = vmul.f32 %v4377, %v4379
    %v4381 = vadd.f32 %v4374, %v4380
    %4382 = vset.pattern.permute.xlu0 3
    %4383 = vperm.xlu0 %4382, %v4318
    %v4384 = vpop.permute.xlu0 %4383
    %v4386 = vperm.slane %v4359, 3
    %v4387 = vmul.f32 %v4384, %v4386
    %v4388 = vadd.f32 %v4381, %v4387
    %4389 = vset.pattern.permute.xlu0 4
    %4390 = vperm.xlu0 %4389, %v4318
    %v4391 = vpop.permute.xlu0 %4390
    %v4393 = vperm.slane %v4359, 4
    %v4394 = vmul.f32 %v4391, %v4393
    %v4395 = vadd.f32 %v4388, %v4394
    %4396 = vset.pattern.permute.xlu0 5
    %4397 = vperm.xlu0 %4396, %v4318
    %v4398 = vpop.permute.xlu0 %4397
    %v4400 = vperm.slane %v4359, 5
    %v4401 = vmul.f32 %v4398, %v4400
    %v4402 = vadd.f32 %v4395, %v4401
    %v4403 = vmax.f32 %v4402, 0.0
    %v4404 = vld [vmem:[%s9] sm:$0x1]
    %v4406 = vperm.slane %v4404, 0
    %v4408 = vmul.f32 %v4403, %v4406
    %vm4409 = vcmask 64512
    %v4410 = vsel %vm4409, %v4408, 0.0
    %4411 = vadd.xlane.f32.xlu0 %v4410
    %v4412 = vpop.xlane.xlu0 %4411
    %4413 = vrot.lane.b32.xlu0 %v4406, 120
    %v4414 = vpop.permute.xlu0 %4413
    %v4416 = vmul.f32 %v4318, %v4414
    %vm4417 = vcmask 48128
    %v4418 = vsel %vm4417, %v4416, 0.0
    %4419 = vadd.xlane.f32.xlu0 %v4418
    %v4420 = vpop.xlane.xlu0 %4419
    %v4421 = vadd.f32 %v4412, %v4420
    %4423 = vrot.lane.b32.xlu0 %v4416, 122
    %v4424 = vpop.permute.xlu0 %4423
    %vm4426 = vcmask 15360
    %v4427 = vsel %vm4426, %v4424, 0.0
    %4428 = vadd.xlane.f32.xlu0 %v4427
    %v4429 = vpop.xlane.xlu0 %4428
    %v4430 = vadd.f32 %v4421, %v4429
    %v4431 = vld [vmem:[#allocation2] sm:$0x1]
    %v4433 = vperm.slane %v4431, 0
    %v4435 = vadd.f32 %v4430, %v4433
    %v4436 = vmul.f32 %v4318, %v4318
    %4438 = vrot.lane.b32.xlu0 %v4436, 120
    %v4439 = vpop.permute.xlu0 %4438
    %vm4441 = vcmask 23552
    %v4442 = vsel %vm4441, %v4439, 0.0
    %4443 = vadd.xlane.f32.xlu0 %v4442
    %v4444 = vpop.xlane.xlu0 %4443
    %v4445 = vrsqrt.pop %v4444
    %v4446 = vmul.f32 %v4445, %v4444
    %v4447 = vmul.f32 %v4446, %v4445
    %v4448 = vmul.f32 0.5, %v4447
    %v4449 = vsub.f32 1.5, %v4448
    %v4450 = vmul.f32 %v4445, %v4449
    %v4451 = vmul.f32 %v4444, %v4450
    %vm4452 = vcmp.eq.f32.partialorder %v4444, inf
    %v4453 = vsel %vm4452, %v4444, %v4451
    %vm4454 = vcmp.eq.f32.partialorder %v4444, 0.0
    %v4455 = vand.u32 %v4444, 2147483648
    %v4456 = vsel %vm4454, %v4455, %v4453
    %v4457 = vadd.f32 %v4435, %v4456
    %4459 = vset.pattern.permute.xlu0 0
    %4460 = vperm.xlu0 %4459, %v4457
    %v4461 = vpop.permute.xlu0 %4460
    %4463 = vst [vmem:[#allocation3] sm:$0xff] %v4461
    // Predicated region
    $region46: #{tpu_custom_call.1} parent=1 // pred_check
      _
    $region47: #{tpu_custom_call.1} parent=1 // pred_check_branch
      %4465 = sbr.rel (0) target = $region49
    $region48: #{tpu_custom_call.1} parent=1 // pred_region
      %4467 = vsyncadd [#allocation4], 0
      %s4469 = sshll.u32 [#allocation3], 4
      %s4470 = int_to_ptr.vmem [resolvable:$true] %s4469
      %s4471 = sshll.u32 %s11, 4
      %s4472 = int_to_ptr.hbm [resolvable:$true] %s4471
      %4474 = dma.vmem_to_hbm [thread:$0]  %s4470, 128, %s4472, [#allocation4]
    $region49: #{tpu_custom_call.1} parent=1 // pred_fallthru
      _
    // Predicated region
    $region50: #{tpu_custom_call.1} parent=1 // pred_check
      _
    $region51: #{tpu_custom_call.1} parent=1 // pred_check_branch
      %4476 = sbr.rel (0) target = $region53
    $region52: #{tpu_custom_call.1} parent=1 // pred_region
      %4478 = dma.done [#allocation4], 128
    $region53: #{tpu_custom_call.1} parent=1 // pred_fallthru
      _
    %4479 = vsyncpa [#allocation4], 1

</llo_original>
